<compile_context>
chip_gen: v7x
topology: tpu7x:2x2x1
jax: 0.10.0
libtpu: 0.0.40
codegen_flags: <defaults>
</compile_context>

<pallas_src>
import math
import functools

import jax
import jax.numpy as jnp
from jax.experimental import pallas as pl
from jax.experimental.pallas import tpu as pltpu


VMEM_LIMIT_BYTES = 32 * 1024 * 1024   # well under v7x's 64 MiB physical VMEM

# Tile targets for the tiled per-op path (engaged only when dims are large).
TM_TARGET = 512   # token-tile (rows); rows are padded, never fall back to full M
TN_TARGET = 512   # output-feature tile (multiple of 128 — enough for v5e MXU)
TK_TARGET = 512   # contraction tile   (multiple of 128)

# Whole-block fusion threshold: weights + activations trivially fit in VMEM.
FUSE_BLOCK_MAX_WIDTH = 256
FUSE_BLOCK_MAX_TOKENS = 512


def _round_up(x, m):
    return ((x + m - 1) // m) * m


def _pick_tile(dim, target, quantum):
    """Largest tile <= target that is a multiple of `quantum` and divides `dim`.
    Used only for weight (lane) dims, which are model hyper-parameters and
    bounded; falls back to the full dim (a legal single block) otherwise."""
    if dim <= target:
        return dim
    t = (target // quantum) * quantum
    while t >= quantum:
        if dim % t == 0:
            return t
        t -= quantum
    return dim


# ----------------------------------------------------------------------------
# Fused (LayerNorm) + Linear (+ bias / QuickGELU / residual) kernel, K-tiled.
# LayerNorm result is cached in a bf16 VMEM scratch and reused across N tiles.
# ----------------------------------------------------------------------------
def _fused_linear_kernel(has_ln, has_bias, act, has_res, *refs):
    n_scratch = 2 if has_ln else 1
    out_ref = refs[-(n_scratch + 1)]
    acc_ref = refs[-n_scratch]
    xn_ref = refs[-1] if has_ln else None
    ins = refs[:-(n_scratch + 1)]

    idx = 0
    x_ref = ins[idx]; idx += 1
    w_ref = ins[idx]; idx += 1
    if has_ln:
        g_ref = ins[idx]; idx += 1
        bta_ref = ins[idx]; idx += 1
    if has_bias:
        bias_ref = ins[idx]; idx += 1
    if has_res:
        res_ref = ins[idx]; idx += 1

    j = pl.program_id(1)
    k = pl.program_id(2)

    if has_ln:
        # Normalize once per M-tile (j == 0; tk == K so k == 0 always) into a
        # bf16 scratch, reuse for every N tile -> no per-j mean/var/rsqrt redo.
        @pl.when(jnp.logical_and(j == 0, k == 0))
        def _():
            xf = x_ref[...].astype(jnp.float32)
            mu = jnp.mean(xf, axis=-1, keepdims=True)
            var = jnp.mean((xf - mu) * (xf - mu), axis=-1, keepdims=True)
            xn = (xf - mu) * jax.lax.rsqrt(var + 1e-5)
            xn_ref[...] = (xn * g_ref[...] + bta_ref[...]).astype(jnp.bfloat16)
        xin = xn_ref[...]
    else:
        xin = x_ref[...].astype(jnp.bfloat16)

    @pl.when(k == 0)
    def _():
        acc_ref[...] = jnp.zeros_like(acc_ref)

    # bf16 MXU inputs, f32 accumulation.
    acc_ref[...] += jnp.dot(xin, w_ref[...], preferred_element_type=jnp.float32)

    @pl.when(k == pl.num_programs(2) - 1)
    def _():
        y = acc_ref[...]
        if has_bias:
            y = y + bias_ref[...].astype(jnp.float32)
        if act == "quick_gelu":                 # QuickGELU: x * sigmoid(1.702 x)
            y = y * jax.nn.sigmoid(1.702 * y)
        if has_res:
            y = y + res_ref[...].astype(jnp.float32)
        out_ref[...] = y.astype(out_ref.dtype)


def pallas_linear(x, w, b=None, ln=None, act=None, residual=None, out_dtype=None):
    """o = act(LN(x) @ w + b) (+ residual).

    x:(M,K) f32/bf16, w:(K,N) bf16, b:(1,N) f32, ln=(gamma,beta) each (1,K) f32,
    residual:(M,N) (aliased to the output when dtypes match).
    `out_dtype` controls the streamed activation dtype (bf16 for intermediates).
    """
    M, K = x.shape
    Kw, N = w.shape
    assert K == Kw
    if out_dtype is None:
        out_dtype = residual.dtype if residual is not None else jnp.float32

    # Row tiling: pad rows up to a tile multiple instead of collapsing to a
    # full-M block (bounded VMEM on v7x / scoped-VMEM defaults).
    if M <= TM_TARGET:
        tm, m_pad = M, M
    else:
        tm = TM_TARGET
        m_pad = _round_up(M, tm)
    tn = _pick_tile(N, TN_TARGET, 128)
    # LayerNorm needs the whole feature row in one block.
    tk = K if ln is not None else _pick_tile(K, TK_TARGET, 128)
    grid = (m_pad // tm, N // tn, K // tk)

    xp = x if m_pad == M else jnp.pad(x, ((0, m_pad - M), (0, 0)))

    in_arrays = [xp, w.astype(jnp.bfloat16)]
    in_specs = [
        pl.BlockSpec((tm, tk), lambda i, j, k: (i, k)),
        pl.BlockSpec((tk, tn), lambda i, j, k: (k, j)),
    ]
    if ln is not None:
        g, beta = ln
        in_arrays += [g.reshape(1, K), beta.reshape(1, K)]
        in_specs += [pl.BlockSpec((1, tk), lambda i, j, k: (0, k)),
                     pl.BlockSpec((1, tk), lambda i, j, k: (0, k))]
    if b is not None:
        in_arrays.append(b.reshape(1, N))
        in_specs.append(pl.BlockSpec((1, tn), lambda i, j, k: (0, j)))

    io_aliases = {}
    if residual is not None:
        rp = residual if m_pad == M else jnp.pad(residual, ((0, m_pad - M), (0, 0)))
        if rp.dtype == out_dtype:
            io_aliases = {len(in_arrays): 0}      # residual buffer -> output buffer
        in_arrays.append(rp)
        in_specs.append(pl.BlockSpec((tm, tn), lambda i, j, k: (i, j)))

    scratch = [pltpu.VMEM((tm, tn), jnp.float32)]
    if ln is not None:
        scratch.append(pltpu.VMEM((tm, K), jnp.bfloat16))   # cached normalized x

    kernel = functools.partial(
        _fused_linear_kernel, ln is not None, b is not None, act, residual is not None)

    # With LN-caching the j axis must stay sequential on one core.
    dims = (("parallel", "arbitrary", "arbitrary") if ln is not None
            else ("parallel", "parallel", "arbitrary"))

    out = pl.pallas_call(
        kernel,
        out_shape=jax.ShapeDtypeStruct((m_pad, N), out_dtype),
        grid=grid,
        in_specs=in_specs,
        out_specs=pl.BlockSpec((tm, tn), lambda i, j, k: (i, j)),
        scratch_shapes=scratch,
        compiler_params=pltpu.CompilerParams(
            dimension_semantics=dims,
            vmem_limit_bytes=VMEM_LIMIT_BYTES),
        input_output_aliases=io_aliases,
    )(*in_arrays)
    return out if m_pad == M else out[:M]


# ----------------------------------------------------------------------------
# Standalone LayerNorm (only used for ln_pre, which feeds the residual stream).
# ----------------------------------------------------------------------------
def _layernorm_kernel(x_ref, g_ref, b_ref, o_ref):
    x = x_ref[...].astype(jnp.float32)
    mean = jnp.mean(x, axis=-1, keepdims=True)
    var = jnp.mean((x - mean) * (x - mean), axis=-1, keepdims=True)
    o_ref[...] = (((x - mean) * jax.lax.rsqrt(var + 1e-5)) * g_ref[...]
                  + b_ref[...]).astype(o_ref.dtype)


def pallas_layernorm(x, g, b):
    M, D = x.shape
    if M <= 512:
        tm, m_pad = M, M
    else:
        tm = 512
        m_pad = _round_up(M, tm)
    xp = x if m_pad == M else jnp.pad(x, ((0, m_pad - M), (0, 0)))
    out = pl.pallas_call(
        _layernorm_kernel,
        out_shape=jax.ShapeDtypeStruct((m_pad, D), jnp.float32),
        grid=(m_pad // tm,),
        in_specs=[pl.BlockSpec((tm, D), lambda i: (i, 0)),
                  pl.BlockSpec((1, D), lambda i: (0, 0)),
                  pl.BlockSpec((1, D), lambda i: (0, 0))],
        out_specs=pl.BlockSpec((tm, D), lambda i: (i, 0)),
        compiler_params=pltpu.CompilerParams(
            dimension_semantics=("parallel",),
            vmem_limit_bytes=VMEM_LIMIT_BYTES),
    )(xp, g.reshape(1, D), b.reshape(1, D))
    return out if m_pad == M else out[:M]


# ----------------------------------------------------------------------------
# Fully fused residual transformer block (small widths): one pallas_call does
# LN1 + QKV + multi-head attention + out-proj + residual + LN2 + MLP + residual.
# ----------------------------------------------------------------------------
def _block_kernel(heads, scale, x_ref, ln1g_ref, ln1b_ref, win_ref, bin_ref,
                  wout_ref, bout_ref, ln2g_ref, ln2b_ref, wfc_ref, bfc_ref,
                  wmp_ref, bmp_ref, o_ref, attn_ref):
    W = o_ref.shape[-1]
    dh = W // heads

    def _ln(v, g_ref, b_ref):
        mu = jnp.mean(v, axis=-1, keepdims=True)
        var = jnp.mean((v - mu) * (v - mu), axis=-1, keepdims=True)
        return ((v - mu) * jax.lax.rsqrt(var + 1e-5)) * g_ref[...] + b_ref[...]

    x = x_ref[0].astype(jnp.float32)                     # (L, W) residual stream, f32

    # --- attention branch ---
    xn = _ln(x, ln1g_ref, ln1b_ref)
    qkv = jnp.dot(xn.astype(jnp.bfloat16), win_ref[...],
                  preferred_element_type=jnp.float32) + bin_ref[...]   # (L, 3W)
    for h in range(heads):                               # static loop over heads
        q = qkv[:, h * dh:(h + 1) * dh]
        k = qkv[:, W + h * dh:W + (h + 1) * dh]
        v = qkv[:, 2 * W + h * dh:2 * W + (h + 1) * dh]
        s = jax.lax.dot_general(q.astype(jnp.bfloat16), k.astype(jnp.bfloat16),
                                (((1,), (1,)), ((), ())),
                                preferred_element_type=jnp.float32) * scale
        s = s - jnp.max(s, axis=-1, keepdims=True)
        p = jnp.exp(s)
        p = p * pl.reciprocal(jnp.sum(p, axis=-1, keepdims=True), approx=True)
        # Each head writes straight into its lane slice of the VMEM scratch
        # (no concat of per-head outputs, short live ranges).
        attn_ref[:, h * dh:(h + 1) * dh] = jnp.dot(
            p.astype(jnp.bfloat16), v.astype(jnp.bfloat16),
            preferred_element_type=jnp.float32)
    x = x + jnp.dot(attn_ref[...].astype(jnp.bfloat16), wout_ref[...],
                    preferred_element_type=jnp.float32) + bout_ref[...]

    # --- MLP branch ---
    xn2 = _ln(x, ln2g_ref, ln2b_ref)
    hmid = jnp.dot(xn2.astype(jnp.bfloat16), wfc_ref[...],
                   preferred_element_type=jnp.float32) + bfc_ref[...]
    hmid = hmid * jax.nn.sigmoid(1.702 * hmid)           # QuickGELU
    x = x + jnp.dot(hmid.astype(jnp.bfloat16), wmp_ref[...],
                    preferred_element_type=jnp.float32) + bmp_ref[...]

    o_ref[0] = x.astype(o_ref.dtype)


def pallas_transformer_block(x, blk, heads):
    """x: (B, L, W) f32 -> (B, L, W) f32, one grid step per batch element."""
    B, L, W = x.shape
    dh = W // heads
    scale = 1.0 / math.sqrt(dh)
    kernel = functools.partial(_block_kernel, heads, scale)
    wspec = lambda r, c: pl.BlockSpec((r, c), lambda b: (0, 0))
    return pl.pallas_call(
        kernel,
        out_shape=jax.ShapeDtypeStruct((B, L, W), jnp.float32),
        grid=(B,),
        in_specs=[
            pl.BlockSpec((1, L, W), lambda b: (b, 0, 0)),   # x
            wspec(1, W), wspec(1, W),                        # ln1 g/b
            wspec(W, 3 * W), wspec(1, 3 * W),                # w_in / b_in
            wspec(W, W), wspec(1, W),                        # w_out / b_out
            wspec(1, W), wspec(1, W),                        # ln2 g/b
            wspec(W, 4 * W), wspec(1, 4 * W),                # w_fc / b_fc
            wspec(4 * W, W), wspec(1, W),                    # w_mp / b_mp
        ],
        out_specs=pl.BlockSpec((1, L, W), lambda b: (b, 0, 0)),
        scratch_shapes=[pltpu.VMEM((L, W), jnp.float32)],    # attention output
        compiler_params=pltpu.CompilerParams(
            dimension_semantics=("parallel",),
            vmem_limit_bytes=VMEM_LIMIT_BYTES),
    )(x, blk["ln1_g"], blk["ln1_b"], blk["w_in"], blk["b_in"],
      blk["w_out"], blk["b_out"], blk["ln2_g"], blk["ln2_b"],
      blk["w_fc"], blk["b_fc"], blk["w_mp"], blk["b_mp"])


# ----------------------------------------------------------------------------
# Standalone multi-head attention (tiled per-op path, real CLIP widths).
# QKV stays packed as (B, L, 3W) bf16; per-head results are stored directly
# into their output lane slice.
# ----------------------------------------------------------------------------
def _attention_kernel(heads, scale, qkv_ref, o_ref):
    # TODO(synk): add flash-style KV tiling (online softmax with m/l/acc scratch)
    # before scaling L beyond a few hundred tokens, and a (B, heads//2) grid with
    # 128-lane head-pair BlockSpecs to feed v7x's two TensorCores at small B.
    W = o_ref.shape[-1]
    dh = W // heads
    qkv = qkv_ref[0]                                     # (L, 3W)
    for h in range(heads):
        q = qkv[:, h * dh:(h + 1) * dh]
        k = qkv[:, W + h * dh:W + (h + 1) * dh]
        v = qkv[:, 2 * W + h * dh:2 * W + (h + 1) * dh]
        s = jax.lax.dot_general(q.astype(jnp.bfloat16), k.astype(jnp.bfloat16),
                                (((1,), (1,)), ((), ())),
                                preferred_element_type=jnp.float32) * scale
        s = s - jnp.max(s, axis=-1, keepdims=True)
        p = jnp.exp(s)
        p = p * pl.reciprocal(jnp.sum(p, axis=-1, keepdims=True), approx=True)
        o_ref[0, :, h * dh:(h + 1) * dh] = jnp.dot(
            p.astype(jnp.bfloat16), v.astype(jnp.bfloat16),
            preferred_element_type=jnp.float32).astype(o_ref.dtype)


def pallas_attention(qkv, heads):
    """qkv: (B, L, 3W) packed [q | k | v] along features -> (B, L, W) bf16."""
    B, L, W3 = qkv.shape
    W = W3 // 3
    dh = W // heads
    scale = 1.0 / math.sqrt(dh)
    kernel = functools.partial(_attention_kernel, heads, scale)
    return pl.pallas_call(
        kernel,
        out_shape=jax.ShapeDtypeStruct((B, L, W), jnp.bfloat16),
        grid=(B,),
        in_specs=[pl.BlockSpec((1, L, W3), lambda b: (b, 0, 0))],
        out_specs=pl.BlockSpec((1, L, W), lambda b: (b, 0, 0)),
        compiler_params=pltpu.CompilerParams(
            dimension_semantics=("parallel",),
            vmem_limit_bytes=VMEM_LIMIT_BYTES),
    )(qkv)


# ----------------------------------------------------------------------------
# Parameter construction (deterministic, synthetic).  Matmul weights in bf16.
# ----------------------------------------------------------------------------
def init_vit_params(key, patch_dim, num_patches, width, layers, heads, embed_dim):
    scale = width ** (-0.5)
    keys = iter(jax.random.split(key, 4 + 4 * layers))
    f32, bf16 = jnp.float32, jnp.bfloat16
    p = {
        "conv_w": (0.02 * jax.random.normal(next(keys), (patch_dim, width), f32)).astype(bf16),
        "class_emb": scale * jax.random.normal(next(keys), (width,), f32),
        "pos_emb": scale * jax.random.normal(next(keys), (num_patches + 1, width), f32),
        "ln_pre_g": jnp.ones((1, width), f32),
        "ln_pre_b": jnp.zeros((1, width), f32),
        "ln_post_g": jnp.ones((1, width), f32),
        "ln_post_b": jnp.zeros((1, width), f32),
    }
    blocks = []
    for _ in range(layers):
        blk = {
            "ln1_g": jnp.ones((1, width), f32), "ln1_b": jnp.zeros((1, width), f32),
            "w_in": (0.5 * scale * jax.random.normal(next(keys), (width, 3 * width), f32)).astype(bf16),
            "b_in": jnp.zeros((1, 3 * width), f32),
            "w_out": (0.5 * scale * jax.random.normal(next(keys), (width, width), f32)).astype(bf16),
            "b_out": jnp.zeros((1, width), f32),
            "ln2_g": jnp.ones((1, width), f32), "ln2_b": jnp.zeros((1, width), f32),
            "w_fc": (0.5 * scale * jax.random.normal(next(keys), (width, 4 * width), f32)).astype(bf16),
            "b_fc": jnp.zeros((1, 4 * width), f32),
            "w_mp": (0.5 * scale * jax.random.normal(next(keys), (4 * width, width), f32)).astype(bf16),
            "b_mp": jnp.zeros((1, width), f32),
        }
        blocks.append(blk)
    p["blocks"] = blocks
    # Final projection, zero-padded to a lane-dense (>=128) output width.
    proj = scale * jax.random.normal(next(keys), (width, embed_dim), f32)
    n_pad = _round_up(embed_dim, 128)
    p["proj"] = jnp.pad(proj, ((0, 0), (0, n_pad - embed_dim))).astype(bf16)
    return p


# ----------------------------------------------------------------------------
# Forward pass (layout glue in JAX, compute in Pallas)
# ----------------------------------------------------------------------------
def extract_patches_nchw(x, kh, kw):
    """NCHW strided non-overlapping patches -> (B, num_patches, C*kh*kw).
    Matches Conv2d(stride=kernel, bias=False) + reshape(B, W, -1).permute(0,2,1)."""
    B, C, H, W = x.shape
    nh, nw = H // kh, W // kw
    x = x.reshape(B, C, nh, kh, nw, kw)
    x = x.transpose(0, 2, 4, 1, 3, 5)          # (B, nh, nw, C, kh, kw)
    return x.reshape(B, nh * nw, C * kh * kw)


def vit_forward(patches, p, heads, embed_dim):
    """patches: (B, NP, patch_dim) -> (B, embed_dim)."""
    B, NP, PD = patches.shape
    width = p["conv_w"].shape[1]

    # patch embedding (== bias-free strided conv)
    x = pallas_linear(patches.reshape(B * NP, PD), p["conv_w"]).reshape(B, NP, width)

    # class token + positional embedding (pure layout / tiny adds in JAX)
    cls = jnp.broadcast_to(p["class_emb"][None, None, :], (B, 1, width))
    x = jnp.concatenate([cls, x], axis=1) + p["pos_emb"][None, :, :]
    L = NP + 1

    x2 = pallas_layernorm(x.reshape(B * L, width), p["ln_pre_g"], p["ln_pre_b"])

    if width <= FUSE_BLOCK_MAX_WIDTH and L <= FUSE_BLOCK_MAX_TOKENS:
        # Small model: one fused pallas_call per residual block (all weights
        # resident in VMEM, no intermediate HBM round trips, ~1/5 the launches).
        xb = x2.reshape(B, L, width)
        for blk in p["blocks"]:
            xb = pallas_transformer_block(xb, blk, heads)
        x2 = xb.reshape(B * L, width)
    else:
        # Real CLIP widths: tiled per-op path with bf16 activation streaming.
        for blk in p["blocks"]:
            qkv = pallas_linear(x2, blk["w_in"], blk["b_in"],
                                ln=(blk["ln1_g"], blk["ln1_b"]),
                                out_dtype=jnp.bfloat16)                   # (B*L, 3W) bf16
            ao = pallas_attention(qkv.reshape(B, L, 3 * width), heads)    # (B, L, W)  bf16
            x2 = pallas_linear(ao.reshape(B * L, width), blk["w_out"], blk["b_out"],
                               residual=x2)                               # f32 residual
            m = pallas_linear(x2, blk["w_fc"], blk["b_fc"],
                              ln=(blk["ln2_g"], blk["ln2_b"]), act="quick_gelu",
                              out_dtype=jnp.bfloat16)                     # (B*L, 4W) bf16
            x2 = pallas_linear(m, blk["w_mp"], blk["b_mp"], residual=x2)  # f32 residual

    cls_tok = x2.reshape(B, L, width)[:, 0, :]                            # (B, width)
    # fused ln_post + projection; lane-dense padded output, sliced back here
    emb = pallas_linear(cls_tok, p["proj"], ln=(p["ln_post_g"], p["ln_post_b"]))
    return emb[:, :embed_dim]


def make_clip_forward(img_cfg, eeg_cfg):
    def fwd(image, eeg, img_params, eeg_params):
        img_patches = extract_patches_nchw(image, img_cfg["patch_size"], img_cfg["patch_size"])
        eeg_patches = extract_patches_nchw(eeg, eeg_cfg["Cpatch_size"], eeg_cfg["Tpatch_size"])
        img_features = vit_forward(img_patches, img_params, img_cfg["heads"], img_cfg["embed_dim"])
        eeg_features = vit_forward(eeg_patches, eeg_params, eeg_cfg["heads"], eeg_cfg["embed_dim"])
        # TODO(synk): logit_scale exists in CLIP.__init__ but is unused in CLIP.forward,
        # which returns raw (un-normalized) features — matched here.
        return img_features, eeg_features
    return jax.jit(fwd)


# ----------------------------------------------------------------------------
# Main
# ----------------------------------------------------------------------------
if __name__ == "__main__":
    key = jax.random.PRNGKey(0)
    k_img_x, k_eeg_x, k_img_p, k_eeg_p = jax.random.split(key, 4)

    # IMG ViT config
    img_cfg = dict(input_resolution=16, patch_size=8, width=32, layers=2, heads=4, embed_dim=16)
    # EEG ViT config
    eeg_cfg = dict(num_electrodes=4, chunk_size=16, Tpatch_size=4, Cpatch_size=2,
                   width=32, layers=2, heads=4, embed_dim=16)

    B = 2
    image = jax.random.normal(
        k_img_x, (B, 3, img_cfg["input_resolution"], img_cfg["input_resolution"]), jnp.float32)  # NCHW
    eeg = jax.random.normal(
        k_eeg_x, (B, 1, eeg_cfg["num_electrodes"], eeg_cfg["chunk_size"]), jnp.float32)           # NCHW

    img_np = (img_cfg["input_resolution"] // img_cfg["patch_size"]) ** 2
    eeg_np = (eeg_cfg["num_electrodes"] // eeg_cfg["Cpatch_size"]) * \
             (eeg_cfg["chunk_size"] // eeg_cfg["Tpatch_size"])

    img_params = init_vit_params(k_img_p, 3 * img_cfg["patch_size"] ** 2, img_np,
                                 img_cfg["width"], img_cfg["layers"], img_cfg["heads"],
                                 img_cfg["embed_dim"])
    eeg_params = init_vit_params(k_eeg_p, 1 * eeg_cfg["Cpatch_size"] * eeg_cfg["Tpatch_size"], eeg_np,
                                 eeg_cfg["width"], eeg_cfg["layers"], eeg_cfg["heads"],
                                 eeg_cfg["embed_dim"])

    clip_forward = make_clip_forward(img_cfg, eeg_cfg)
    img_feat, eeg_feat = clip_forward(image, eeg, img_params, eeg_params)
    img_feat = jax.block_until_ready(img_feat)
    eeg_feat = jax.block_until_ready(eeg_feat)

    assert img_feat.shape == (B, img_cfg["embed_dim"])
    assert eeg_feat.shape == (B, eeg_cfg["embed_dim"])
    assert jnp.all(jnp.isfinite(img_feat)) and jnp.all(jnp.isfinite(eeg_feat))
    print("KERNEL_OK")
</pallas_src>

<mosaic_0001>
module attributes {stable_mosaic.version = 11 : i64} {
  func.func @_fused_linear_kernel(%arg0: i32, %arg1: i32, %arg2: i32, %arg3: memref<8x192xf32, #tpu.memory_space<vmem>>, %arg4: memref<192x32xbf16, #tpu.memory_space<vmem>>, %arg5: memref<8x32xf32, #tpu.memory_space<vmem>>, %arg6: memref<8x32xf32, #tpu.memory_space<vmem>>) attributes {dimension_semantics = [#tpu.dimension_semantics<parallel>, #tpu.dimension_semantics<parallel>, #tpu.dimension_semantics<arbitrary>], iteration_bounds = array<i64: 1, 1, 1>, scalar_prefetch = 0 : i64, scratch_operands = 1 : i64, tpu.core_type = #tpu.core_type<tc>, window_params = [{transform_indices = @transform_0, window_bounds = array<i64: 8, 192>}, {transform_indices = @transform_1, window_bounds = array<i64: 192, 32>}, {transform_indices = @transform_2, window_bounds = array<i64: 8, 32>}]} {
    %c0 = arith.constant 0 : index
    %c0_0 = arith.constant 0 : index
    %0 = vector.load %arg3[%c0, %c0_0] : memref<8x192xf32, #tpu.memory_space<vmem>>, vector<8x192xf32>
    %1 = arith.truncf %0 : vector<8x192xf32> to vector<8x192xbf16>
    %c0_i32 = arith.constant 0 : i32
    %2 = arith.cmpi eq, %arg2, %c0_i32 : i32
    %3 = arith.extui %2 : i1 to i32
    %c0_i32_1 = arith.constant 0 : i32
    %4 = arith.cmpi ne, %3, %c0_i32_1 : i32
    scf.if %4 {
      %cst_10 = arith.constant 0.000000e+00 : f32
      %13 = vector.broadcast %cst_10 : f32 to vector<8x32xf32>
      %c0_11 = arith.constant 0 : index
      %c0_12 = arith.constant 0 : index
      %14 = vector.load %arg6[%c0_11, %c0_12] : memref<8x32xf32, #tpu.memory_space<vmem>>, vector<8x32xf32>
      tpu.vector_store %arg6[%c0_11, %c0_12], %13 {strides = array<i32>} : memref<8x32xf32, #tpu.memory_space<vmem>>, vector<8x32xf32>,
    } else {
    }
    %c0_2 = arith.constant 0 : index
    %c0_3 = arith.constant 0 : index
    %5 = vector.load %arg6[%c0_2, %c0_3] : memref<8x32xf32, #tpu.memory_space<vmem>>, vector<8x32xf32>
    %c0_4 = arith.constant 0 : index
    %c0_5 = arith.constant 0 : index
    %6 = vector.load %arg4[%c0_4, %c0_5] : memref<192x32xbf16, #tpu.memory_space<vmem>>, vector<192x32xbf16>
    %cst = arith.constant dense<0.000000e+00> : vector<8x32xf32>
    %7 = tpu.matmul %1, %6, %cst {dimension_numbers = #tpu.dot_dimension_numbers<[1], [0], [0], [1], [0, 0, 1, 1], [], []>} : vector<8x192xbf16>, vector<192x32xbf16>, vector<8x32xf32> -> vector<8x32xf32>
    %8 = arith.addf %5, %7 : vector<8x32xf32>
    %c0_6 = arith.constant 0 : index
    %c0_7 = arith.constant 0 : index
    %9 = vector.load %arg6[%c0_6, %c0_7] : memref<8x32xf32, #tpu.memory_space<vmem>>, vector<8x32xf32>
    tpu.vector_store %arg6[%c0_6, %c0_7], %8 {strides = array<i32>} : memref<8x32xf32, #tpu.memory_space<vmem>>, vector<8x32xf32>,
    %c0_i32_8 = arith.constant 0 : i32
    %10 = arith.cmpi eq, %arg2, %c0_i32_8 : i32
    %11 = arith.extui %10 : i1 to i32
    %c0_i32_9 = arith.constant 0 : i32
    %12 = arith.cmpi ne, %11, %c0_i32_9 : i32
    scf.if %12 {
      %c0_10 = arith.constant 0 : index
      %c0_11 = arith.constant 0 : index
      %13 = vector.load %arg6[%c0_10, %c0_11] : memref<8x32xf32, #tpu.memory_space<vmem>>, vector<8x32xf32>
      %c0_12 = arith.constant 0 : index
      %c0_13 = arith.constant 0 : index
      %14 = vector.load %arg5[%c0_12, %c0_13] : memref<8x32xf32, #tpu.memory_space<vmem>>, vector<8x32xf32>
      tpu.vector_store %arg5[%c0_12, %c0_13], %13 {strides = array<i32>} : memref<8x32xf32, #tpu.memory_space<vmem>>, vector<8x32xf32>,
    } else {
    }
    return
  }
  func.func @transform_0(%arg0: i32, %arg1: i32, %arg2: i32) -> (i32, i32) {
    %c0_i32 = arith.constant 0 : i32
    return %arg0, %arg2 : i32, i32
  }
  func.func @transform_1(%arg0: i32, %arg1: i32, %arg2: i32) -> (i32, i32) {
    %c0_i32 = arith.constant 0 : i32
    return %arg2, %arg1 : i32, i32
  }
  func.func @transform_2(%arg0: i32, %arg1: i32, %arg2: i32) -> (i32, i32) {
    %c0_i32 = arith.constant 0 : i32
    return %arg0, %arg1 : i32, i32
  }
}

module attributes {stable_mosaic.version = 11 : i64} {
  func.func @_layernorm_kernel(%arg0: i32, %arg1: memref<10x32xf32, #tpu.memory_space<vmem>>, %arg2: memref<1x32xf32, #tpu.memory_space<vmem>>, %arg3: memref<1x32xf32, #tpu.memory_space<vmem>>, %arg4: memref<10x32xf32, #tpu.memory_space<vmem>>) attributes {dimension_semantics = [#tpu.dimension_semantics<parallel>], iteration_bounds = array<i64: 1>, scalar_prefetch = 0 : i64, scratch_operands = 0 : i64, tpu.core_type = #tpu.core_type<tc>, window_params = [{transform_indices = @transform_0, window_bounds = array<i64: 10, 32>}, {pipeline_mode = #tpu.pipeline_mode<synchronous>, transform_indices = @transform_1, window_bounds = array<i64: 1, 32>}, {pipeline_mode = #tpu.pipeline_mode<synchronous>, transform_indices = @transform_2, window_bounds = array<i64: 1, 32>}, {transform_indices = @transform_3, window_bounds = array<i64: 10, 32>}]} {
    %c0 = arith.constant 0 : index
    %c0_0 = arith.constant 0 : index
    %0 = vector.load %arg1[%c0, %c0_0] : memref<10x32xf32, #tpu.memory_space<vmem>>, vector<10x32xf32>
    %cst = arith.constant dense<0.000000e+00> : vector<10xf32>
    %1 = vector.multi_reduction <add>, %0, %cst [1] : vector<10x32xf32> to vector<10xf32>
    %2 = vector.shape_cast %1 : vector<10xf32> to vector<10x1xf32>
    %cst_1 = arith.constant 3.200000e+01 : f32
    %3 = vector.broadcast %cst_1 : f32 to vector<10x1xf32>
    %4 = arith.divf %2, %3 : vector<10x1xf32>
    %5 = vector.broadcast %4 : vector<10x1xf32> to vector<10x32xf32>
    %6 = arith.subf %0, %5 : vector<10x32xf32>
    %7 = vector.broadcast %4 : vector<10x1xf32> to vector<10x32xf32>
    %8 = arith.subf %0, %7 : vector<10x32xf32>
    %9 = arith.mulf %6, %8 : vector<10x32xf32>
    %cst_2 = arith.constant dense<0.000000e+00> : vector<10xf32>
    %10 = vector.multi_reduction <add>, %9, %cst_2 [1] : vector<10x32xf32> to vector<10xf32>
    %11 = vector.shape_cast %10 : vector<10xf32> to vector<10x1xf32>
    %cst_3 = arith.constant 3.200000e+01 : f32
    %12 = vector.broadcast %cst_3 : f32 to vector<10x1xf32>
    %13 = arith.divf %11, %12 : vector<10x1xf32>
    %14 = vector.broadcast %4 : vector<10x1xf32> to vector<10x32xf32>
    %15 = arith.subf %0, %14 : vector<10x32xf32>
    %cst_4 = arith.constant 9.99999974E-6 : f32
    %16 = vector.broadcast %cst_4 : f32 to vector<10x1xf32>
    %17 = arith.addf %13, %16 : vector<10x1xf32>
    %18 = math.rsqrt %17 : vector<10x1xf32>
    %19 = vector.broadcast %18 : vector<10x1xf32> to vector<10x32xf32>
    %20 = arith.mulf %15, %19 : vector<10x32xf32>
    %c0_5 = arith.constant 0 : index
    %c0_6 = arith.constant 0 : index
    %21 = vector.load %arg2[%c0_5, %c0_6] : memref<1x32xf32, #tpu.memory_space<vmem>>, vector<1x32xf32>
    %22 = vector.broadcast %21 : vector<1x32xf32> to vector<10x32xf32>
    %23 = arith.mulf %20, %22 : vector<10x32xf32>
    %c0_7 = arith.constant 0 : index
    %c0_8 = arith.constant 0 : index
    %24 = vector.load %arg3[%c0_7, %c0_8] : memref<1x32xf32, #tpu.memory_space<vmem>>, vector<1x32xf32>
    %25 = vector.broadcast %24 : vector<1x32xf32> to vector<10x32xf32>
    %26 = arith.addf %23, %25 : vector<10x32xf32>
    %c0_9 = arith.constant 0 : index
    %c0_10 = arith.constant 0 : index
    %27 = vector.load %arg4[%c0_9, %c0_10] : memref<10x32xf32, #tpu.memory_space<vmem>>, vector<10x32xf32>
    tpu.vector_store %arg4[%c0_9, %c0_10], %26 {strides = array<i32>} : memref<10x32xf32, #tpu.memory_space<vmem>>, vector<10x32xf32>,
    return
  }
  func.func @transform_0(%arg0: i32) -> (i32, i32) {
    %c0_i32 = arith.constant 0 : i32
    %c0_i32_0 = arith.constant 0 : i32
    return %arg0, %c0_i32 : i32, i32
  }
  func.func @transform_1(%arg0: i32) -> (i32, i32) {
    %c0_i32 = arith.constant 0 : i32
    %c0_i32_0 = arith.constant 0 : i32
    %c0_i32_1 = arith.constant 0 : i32
    return %c0_i32, %c0_i32_0 : i32, i32
  }
  func.func @transform_2(%arg0: i32) -> (i32, i32) {
    %c0_i32 = arith.constant 0 : i32
    %c0_i32_0 = arith.constant 0 : i32
    %c0_i32_1 = arith.constant 0 : i32
    return %c0_i32, %c0_i32_0 : i32, i32
  }
  func.func @transform_3(%arg0: i32) -> (i32, i32) {
    %c0_i32 = arith.constant 0 : i32
    %c0_i32_0 = arith.constant 0 : i32
    return %arg0, %c0_i32 : i32, i32
  }
}

module attributes {stable_mosaic.version = 11 : i64} {
  func.func @_block_kernel(%arg0: i32, %arg1: memref<1x5x32xf32, #tpu.memory_space<vmem>>, %arg2: memref<1x32xf32, #tpu.memory_space<vmem>>, %arg3: memref<1x32xf32, #tpu.memory_space<vmem>>, %arg4: memref<32x96xbf16, #tpu.memory_space<vmem>>, %arg5: memref<1x96xf32, #tpu.memory_space<vmem>>, %arg6: memref<32x32xbf16, #tpu.memory_space<vmem>>, %arg7: memref<1x32xf32, #tpu.memory_space<vmem>>, %arg8: memref<1x32xf32, #tpu.memory_space<vmem>>, %arg9: memref<1x32xf32, #tpu.memory_space<vmem>>, %arg10: memref<32x128xbf16, #tpu.memory_space<vmem>>, %arg11: memref<1x128xf32, #tpu.memory_space<vmem>>, %arg12: memref<128x32xbf16, #tpu.memory_space<vmem>>, %arg13: memref<1x32xf32, #tpu.memory_space<vmem>>, %arg14: memref<1x5x32xf32, #tpu.memory_space<vmem>>, %arg15: memref<5x32xf32, #tpu.memory_space<vmem>>) attributes {dimension_semantics = [#tpu.dimension_semantics<parallel>], iteration_bounds = array<i64: 2>, scalar_prefetch = 0 : i64, scratch_operands = 1 : i64, tpu.core_type = #tpu.core_type<tc>, window_params = [{transform_indices = @transform_0, window_bounds = array<i64: 1, 5, 32>}, {pipeline_mode = #tpu.pipeline_mode<synchronous>, transform_indices = @transform_1, window_bounds = array<i64: 1, 32>}, {pipeline_mode = #tpu.pipeline_mode<synchronous>, transform_indices = @transform_2, window_bounds = array<i64: 1, 32>}, {pipeline_mode = #tpu.pipeline_mode<synchronous>, transform_indices = @transform_3, window_bounds = array<i64: 32, 96>}, {pipeline_mode = #tpu.pipeline_mode<synchronous>, transform_indices = @transform_4, window_bounds = array<i64: 1, 96>}, {pipeline_mode = #tpu.pipeline_mode<synchronous>, transform_indices = @transform_5, window_bounds = array<i64: 32, 32>}, {pipeline_mode = #tpu.pipeline_mode<synchronous>, transform_indices = @transform_6, window_bounds = array<i64: 1, 32>}, {pipeline_mode = #tpu.pipeline_mode<synchronous>, transform_indices = @transform_7, window_bounds = array<i64: 1, 32>}, {pipeline_mode = #tpu.pipeline_mode<synchronous>, transform_indices = @transform_8, window_bounds = array<i64: 1, 32>}, {pipeline_mode = #tpu.pipeline_mode<synchronous>, transform_indices = @transform_9, window_bounds = array<i64: 32, 128>}, {pipeline_mode = #tpu.pipeline_mode<synchronous>, transform_indices = @transform_10, window_bounds = array<i64: 1, 128>}, {pipeline_mode = #tpu.pipeline_mode<synchronous>, transform_indices = @transform_11, window_bounds = array<i64: 128, 32>}, {pipeline_mode = #tpu.pipeline_mode<synchronous>, transform_indices = @transform_12, window_bounds = array<i64: 1, 32>}, {transform_indices = @transform_13, window_bounds = array<i64: 1, 5, 32>}]} {
    %c0 = arith.constant 0 : index
    %c0_0 = arith.constant 0 : index
    %c0_1 = arith.constant 0 : index
    %0 = vector.load %arg1[%c0, %c0_0, %c0_1] : memref<1x5x32xf32, #tpu.memory_space<vmem>>, vector<1x5x32xf32>
    %1 = vector.shape_cast %0 : vector<1x5x32xf32> to vector<5x32xf32>
    %cst = arith.constant dense<0.000000e+00> : vector<5xf32>
    %2 = vector.multi_reduction <add>, %1, %cst [1] : vector<5x32xf32> to vector<5xf32>
    %3 = vector.shape_cast %2 : vector<5xf32> to vector<5x1xf32>
    %cst_2 = arith.constant 3.200000e+01 : f32
    %4 = vector.broadcast %cst_2 : f32 to vector<5x1xf32>
    %5 = arith.divf %3, %4 : vector<5x1xf32>
    %6 = vector.broadcast %5 : vector<5x1xf32> to vector<5x32xf32>
    %7 = arith.subf %1, %6 : vector<5x32xf32>
    %8 = vector.broadcast %5 : vector<5x1xf32> to vector<5x32xf32>
    %9 = arith.subf %1, %8 : vector<5x32xf32>
    %10 = arith.mulf %7, %9 : vector<5x32xf32>
    %cst_3 = arith.constant dense<0.000000e+00> : vector<5xf32>
    %11 = vector.multi_reduction <add>, %10, %cst_3 [1] : vector<5x32xf32> to vector<5xf32>
    %12 = vector.shape_cast %11 : vector<5xf32> to vector<5x1xf32>
    %cst_4 = arith.constant 3.200000e+01 : f32
    %13 = vector.broadcast %cst_4 : f32 to vector<5x1xf32>
    %14 = arith.divf %12, %13 : vector<5x1xf32>
    %15 = vector.broadcast %5 : vector<5x1xf32> to vector<5x32xf32>
    %16 = arith.subf %1, %15 : vector<5x32xf32>
    %cst_5 = arith.constant 9.99999974E-6 : f32
    %17 = vector.broadcast %cst_5 : f32 to vector<5x1xf32>
    %18 = arith.addf %14, %17 : vector<5x1xf32>
    %19 = math.rsqrt %18 : vector<5x1xf32>
    %20 = vector.broadcast %19 : vector<5x1xf32> to vector<5x32xf32>
    %21 = arith.mulf %16, %20 : vector<5x32xf32>
    %c0_6 = arith.constant 0 : index
    %c0_7 = arith.constant 0 : index
    %22 = vector.load %arg2[%c0_6, %c0_7] : memref<1x32xf32, #tpu.memory_space<vmem>>, vector<1x32xf32>
    %23 = vector.broadcast %22 : vector<1x32xf32> to vector<5x32xf32>
    %24 = arith.mulf %21, %23 : vector<5x32xf32>
    %c0_8 = arith.constant 0 : index
    %c0_9 = arith.constant 0 : index
    %25 = vector.load %arg3[%c0_8, %c0_9] : memref<1x32xf32, #tpu.memory_space<vmem>>, vector<1x32xf32>
    %26 = vector.broadcast %25 : vector<1x32xf32> to vector<5x32xf32>
    %27 = arith.addf %24, %26 : vector<5x32xf32>
    %28 = arith.truncf %27 : vector<5x32xf32> to vector<5x32xbf16>
    %c0_10 = arith.constant 0 : index
    %c0_11 = arith.constant 0 : index
    %29 = vector.load %arg4[%c0_10, %c0_11] : memref<32x96xbf16, #tpu.memory_space<vmem>>, vector<32x96xbf16>
    %cst_12 = arith.constant dense<0.000000e+00> : vector<5x96xf32>
    %30 = tpu.matmul %28, %29, %cst_12 {dimension_numbers = #tpu.dot_dimension_numbers<[1], [0], [0], [1], [0, 0, 1, 1], [], []>} : vector<5x32xbf16>, vector<32x96xbf16>, vector<5x96xf32> -> vector<5x96xf32>
    %c0_13 = arith.constant 0 : index
    %c0_14 = arith.constant 0 : index
    %31 = vector.load %arg5[%c0_13, %c0_14] : memref<1x96xf32, #tpu.memory_space<vmem>>, vector<1x96xf32>
    %32 = vector.broadcast %31 : vector<1x96xf32> to vector<5x96xf32>
    %33 = arith.addf %30, %32 : vector<5x96xf32>
    %34 = vector.extract_strided_slice %33 {offsets = [0, 0], sizes = [5, 8], strides = [1, 1]} : vector<5x96xf32> to vector<5x8xf32>
    %35 = vector.extract_strided_slice %33 {offsets = [0, 32], sizes = [5, 8], strides = [1, 1]} : vector<5x96xf32> to vector<5x8xf32>
    %36 = vector.extract_strided_slice %33 {offsets = [0, 64], sizes = [5, 8], strides = [1, 1]} : vector<5x96xf32> to vector<5x8xf32>
    %37 = arith.truncf %34 : vector<5x8xf32> to vector<5x8xbf16>
    %38 = arith.truncf %35 : vector<5x8xf32> to vector<5x8xbf16>
    %cst_15 = arith.constant dense<0.000000e+00> : vector<5x5xf32>
    %39 = tpu.matmul %37, %38, %cst_15 {dimension_numbers = #tpu.dot_dimension_numbers<[1], [1], [0], [0], [0, 0, 1, 0], [], []>} : vector<5x8xbf16>, vector<5x8xbf16>, vector<5x5xf32> -> vector<5x5xf32>
    %cst_16 = arith.constant 0.353553385 : f32
    %40 = vector.broadcast %cst_16 : f32 to vector<5x5xf32>
    %41 = arith.mulf %39, %40 : vector<5x5xf32>
    %cst_17 = arith.constant dense<0xFF800000> : vector<5xf32>
    %42 = vector.multi_reduction <maximumf>, %41, %cst_17 [1] : vector<5x5xf32> to vector<5xf32>
    %43 = vector.shape_cast %42 : vector<5xf32> to vector<5x1xf32>
    %44 = vector.broadcast %43 : vector<5x1xf32> to vector<5x5xf32>
    %45 = arith.subf %41, %44 : vector<5x5xf32>
    %46 = math.exp %45 : vector<5x5xf32>
    %cst_18 = arith.constant dense<0.000000e+00> : vector<5xf32>
    %47 = vector.multi_reduction <add>, %46, %cst_18 [1] : vector<5x5xf32> to vector<5xf32>
    %48 = vector.shape_cast %47 : vector<5xf32> to vector<5x1xf32>
    %49 = tpu.reciprocal %48 {approx = true} : vector<5x1xf32> -> vector<5x1xf32>
    %50 = vector.broadcast %49 : vector<5x1xf32> to vector<5x5xf32>
    %51 = arith.mulf %46, %50 : vector<5x5xf32>
    %52 = arith.truncf %51 : vector<5x5xf32> to vector<5x5xbf16>
    %53 = arith.truncf %36 : vector<5x8xf32> to vector<5x8xbf16>
    %cst_19 = arith.constant dense<0.000000e+00> : vector<5x8xf32>
    %54 = tpu.matmul %52, %53, %cst_19 {dimension_numbers = #tpu.dot_dimension_numbers<[1], [0], [0], [1], [0, 0, 1, 1], [], []>} : vector<5x5xbf16>, vector<5x8xbf16>, vector<5x8xf32> -> vector<5x8xf32>
    %c0_20 = arith.constant 0 : index
    %c0_21 = arith.constant 0 : index
    %55 = vector.load %arg15[%c0_20, %c0_21] : memref<5x32xf32, #tpu.memory_space<vmem>>, vector<5x8xf32>
    tpu.vector_store %arg15[%c0_20, %c0_21], %54 {strides = array<i32>} : memref<5x32xf32, #tpu.memory_space<vmem>>, vector<5x8xf32>,
    %56 = vector.extract_strided_slice %33 {offsets = [0, 8], sizes = [5, 8], strides = [1, 1]} : vector<5x96xf32> to vector<5x8xf32>
    %57 = vector.extract_strided_slice %33 {offsets = [0, 40], sizes = [5, 8], strides = [1, 1]} : vector<5x96xf32> to vector<5x8xf32>
    %58 = vector.extract_strided_slice %33 {offsets = [0, 72], sizes = [5, 8], strides = [1, 1]} : vector<5x96xf32> to vector<5x8xf32>
    %59 = arith.truncf %56 : vector<5x8xf32> to vector<5x8xbf16>
    %60 = arith.truncf %57 : vector<5x8xf32> to vector<5x8xbf16>
    %cst_22 = arith.constant dense<0.000000e+00> : vector<5x5xf32>
    %61 = tpu.matmul %59, %60, %cst_22 {dimension_numbers = #tpu.dot_dimension_numbers<[1], [1], [0], [0], [0, 0, 1, 0], [], []>} : vector<5x8xbf16>, vector<5x8xbf16>, vector<5x5xf32> -> vector<5x5xf32>
    %cst_23 = arith.constant 0.353553385 : f32
    %62 = vector.broadcast %cst_23 : f32 to vector<5x5xf32>
    %63 = arith.mulf %61, %62 : vector<5x5xf32>
    %cst_24 = arith.constant dense<0xFF800000> : vector<5xf32>
    %64 = vector.multi_reduction <maximumf>, %63, %cst_24 [1] : vector<5x5xf32> to vector<5xf32>
    %65 = vector.shape_cast %64 : vector<5xf32> to vector<5x1xf32>
    %66 = vector.broadcast %65 : vector<5x1xf32> to vector<5x5xf32>
    %67 = arith.subf %63, %66 : vector<5x5xf32>
    %68 = math.exp %67 : vector<5x5xf32>
    %cst_25 = arith.constant dense<0.000000e+00> : vector<5xf32>
    %69 = vector.multi_reduction <add>, %68, %cst_25 [1] : vector<5x5xf32> to vector<5xf32>
    %70 = vector.shape_cast %69 : vector<5xf32> to vector<5x1xf32>
    %71 = tpu.reciprocal %70 {approx = true} : vector<5x1xf32> -> vector<5x1xf32>
    %72 = vector.broadcast %71 : vector<5x1xf32> to vector<5x5xf32>
    %73 = arith.mulf %68, %72 : vector<5x5xf32>
    %74 = arith.truncf %73 : vector<5x5xf32> to vector<5x5xbf16>
    %75 = arith.truncf %58 : vector<5x8xf32> to vector<5x8xbf16>
    %cst_26 = arith.constant dense<0.000000e+00> : vector<5x8xf32>
    %76 = tpu.matmul %74, %75, %cst_26 {dimension_numbers = #tpu.dot_dimension_numbers<[1], [0], [0], [1], [0, 0, 1, 1], [], []>} : vector<5x5xbf16>, vector<5x8xbf16>, vector<5x8xf32> -> vector<5x8xf32>
    %c0_27 = arith.constant 0 : index
    %c8 = arith.constant 8 : index
    %77 = vector.load %arg15[%c0_27, %c8] : memref<5x32xf32, #tpu.memory_space<vmem>>, vector<5x8xf32>
    tpu.vector_store %arg15[%c0_27, %c8], %76 {strides = array<i32>} : memref<5x32xf32, #tpu.memory_space<vmem>>, vector<5x8xf32>,
    %78 = vector.extract_strided_slice %33 {offsets = [0, 16], sizes = [5, 8], strides = [1, 1]} : vector<5x96xf32> to vector<5x8xf32>
    %79 = vector.extract_strided_slice %33 {offsets = [0, 48], sizes = [5, 8], strides = [1, 1]} : vector<5x96xf32> to vector<5x8xf32>
    %80 = vector.extract_strided_slice %33 {offsets = [0, 80], sizes = [5, 8], strides = [1, 1]} : vector<5x96xf32> to vector<5x8xf32>
    %81 = arith.truncf %78 : vector<5x8xf32> to vector<5x8xbf16>
    %82 = arith.truncf %79 : vector<5x8xf32> to vector<5x8xbf16>
    %cst_28 = arith.constant dense<0.000000e+00> : vector<5x5xf32>
    %83 = tpu.matmul %81, %82, %cst_28 {dimension_numbers = #tpu.dot_dimension_numbers<[1], [1], [0], [0], [0, 0, 1, 0], [], []>} : vector<5x8xbf16>, vector<5x8xbf16>, vector<5x5xf32> -> vector<5x5xf32>
    %cst_29 = arith.constant 0.353553385 : f32
    %84 = vector.broadcast %cst_29 : f32 to vector<5x5xf32>
    %85 = arith.mulf %83, %84 : vector<5x5xf32>
    %cst_30 = arith.constant dense<0xFF800000> : vector<5xf32>
    %86 = vector.multi_reduction <maximumf>, %85, %cst_30 [1] : vector<5x5xf32> to vector<5xf32>
    %87 = vector.shape_cast %86 : vector<5xf32> to vector<5x1xf32>
    %88 = vector.broadcast %87 : vector<5x1xf32> to vector<5x5xf32>
    %89 = arith.subf %85, %88 : vector<5x5xf32>
    %90 = math.exp %89 : vector<5x5xf32>
    %cst_31 = arith.constant dense<0.000000e+00> : vector<5xf32>
    %91 = vector.multi_reduction <add>, %90, %cst_31 [1] : vector<5x5xf32> to vector<5xf32>
    %92 = vector.shape_cast %91 : vector<5xf32> to vector<5x1xf32>
    %93 = tpu.reciprocal %92 {approx = true} : vector<5x1xf32> -> vector<5x1xf32>
    %94 = vector.broadcast %93 : vector<5x1xf32> to vector<5x5xf32>
    %95 = arith.mulf %90, %94 : vector<5x5xf32>
    %96 = arith.truncf %95 : vector<5x5xf32> to vector<5x5xbf16>
    %97 = arith.truncf %80 : vector<5x8xf32> to vector<5x8xbf16>
    %cst_32 = arith.constant dense<0.000000e+00> : vector<5x8xf32>
    %98 = tpu.matmul %96, %97, %cst_32 {dimension_numbers = #tpu.dot_dimension_numbers<[1], [0], [0], [1], [0, 0, 1, 1], [], []>} : vector<5x5xbf16>, vector<5x8xbf16>, vector<5x8xf32> -> vector<5x8xf32>
    %c0_33 = arith.constant 0 : index
    %c16 = arith.constant 16 : index
    %99 = vector.load %arg15[%c0_33, %c16] : memref<5x32xf32, #tpu.memory_space<vmem>>, vector<5x8xf32>
    tpu.vector_store %arg15[%c0_33, %c16], %98 {strides = array<i32>} : memref<5x32xf32, #tpu.memory_space<vmem>>, vector<5x8xf32>,
    %100 = vector.extract_strided_slice %33 {offsets = [0, 24], sizes = [5, 8], strides = [1, 1]} : vector<5x96xf32> to vector<5x8xf32>
    %101 = vector.extract_strided_slice %33 {offsets = [0, 56], sizes = [5, 8], strides = [1, 1]} : vector<5x96xf32> to vector<5x8xf32>
    %102 = vector.extract_strided_slice %33 {offsets = [0, 88], sizes = [5, 8], strides = [1, 1]} : vector<5x96xf32> to vector<5x8xf32>
    %103 = arith.truncf %100 : vector<5x8xf32> to vector<5x8xbf16>
    %104 = arith.truncf %101 : vector<5x8xf32> to vector<5x8xbf16>
    %cst_34 = arith.constant dense<0.000000e+00> : vector<5x5xf32>
    %105 = tpu.matmul %103, %104, %cst_34 {dimension_numbers = #tpu.dot_dimension_numbers<[1], [1], [0], [0], [0, 0, 1, 0], [], []>} : vector<5x8xbf16>, vector<5x8xbf16>, vector<5x5xf32> -> vector<5x5xf32>
    %cst_35 = arith.constant 0.353553385 : f32
    %106 = vector.broadcast %cst_35 : f32 to vector<5x5xf32>
    %107 = arith.mulf %105, %106 : vector<5x5xf32>
    %cst_36 = arith.constant dense<0xFF800000> : vector<5xf32>
    %108 = vector.multi_reduction <maximumf>, %107, %cst_36 [1] : vector<5x5xf32> to vector<5xf32>
    %109 = vector.shape_cast %108 : vector<5xf32> to vector<5x1xf32>
    %110 = vector.broadcast %109 : vector<5x1xf32> to vector<5x5xf32>
    %111 = arith.subf %107, %110 : vector<5x5xf32>
    %112 = math.exp %111 : vector<5x5xf32>
    %cst_37 = arith.constant dense<0.000000e+00> : vector<5xf32>
    %113 = vector.multi_reduction <add>, %112, %cst_37 [1] : vector<5x5xf32> to vector<5xf32>
    %114 = vector.shape_cast %113 : vector<5xf32> to vector<5x1xf32>
    %115 = tpu.reciprocal %114 {approx = true} : vector<5x1xf32> -> vector<5x1xf32>
    %116 = vector.broadcast %115 : vector<5x1xf32> to vector<5x5xf32>
    %117 = arith.mulf %112, %116 : vector<5x5xf32>
    %118 = arith.truncf %117 : vector<5x5xf32> to vector<5x5xbf16>
    %119 = arith.truncf %102 : vector<5x8xf32> to vector<5x8xbf16>
    %cst_38 = arith.constant dense<0.000000e+00> : vector<5x8xf32>
    %120 = tpu.matmul %118, %119, %cst_38 {dimension_numbers = #tpu.dot_dimension_numbers<[1], [0], [0], [1], [0, 0, 1, 1], [], []>} : vector<5x5xbf16>, vector<5x8xbf16>, vector<5x8xf32> -> vector<5x8xf32>
    %c0_39 = arith.constant 0 : index
    %c24 = arith.constant 24 : index
    %121 = vector.load %arg15[%c0_39, %c24] : memref<5x32xf32, #tpu.memory_space<vmem>>, vector<5x8xf32>
    tpu.vector_store %arg15[%c0_39, %c24], %120 {strides = array<i32>} : memref<5x32xf32, #tpu.memory_space<vmem>>, vector<5x8xf32>,
    %c0_40 = arith.constant 0 : index
    %c0_41 = arith.constant 0 : index
    %122 = vector.load %arg15[%c0_40, %c0_41] : memref<5x32xf32, #tpu.memory_space<vmem>>, vector<5x32xf32>
    %123 = arith.truncf %122 : vector<5x32xf32> to vector<5x32xbf16>
    %c0_42 = arith.constant 0 : index
    %c0_43 = arith.constant 0 : index
    %124 = vector.load %arg6[%c0_42, %c0_43] : memref<32x32xbf16, #tpu.memory_space<vmem>>, vector<32x32xbf16>
    %cst_44 = arith.constant dense<0.000000e+00> : vector<5x32xf32>
    %125 = tpu.matmul %123, %124, %cst_44 {dimension_numbers = #tpu.dot_dimension_numbers<[1], [0], [0], [1], [0, 0, 1, 1], [], []>} : vector<5x32xbf16>, vector<32x32xbf16>, vector<5x32xf32> -> vector<5x32xf32>
    %126 = arith.addf %1, %125 : vector<5x32xf32>
    %c0_45 = arith.constant 0 : index
    %c0_46 = arith.constant 0 : index
    %127 = vector.load %arg7[%c0_45, %c0_46] : memref<1x32xf32, #tpu.memory_space<vmem>>, vector<1x32xf32>
    %128 = vector.broadcast %127 : vector<1x32xf32> to vector<5x32xf32>
    %129 = arith.addf %126, %128 : vector<5x32xf32>
    %cst_47 = arith.constant dense<0.000000e+00> : vector<5xf32>
    %130 = vector.multi_reduction <add>, %129, %cst_47 [1] : vector<5x32xf32> to vector<5xf32>
    %131 = vector.shape_cast %130 : vector<5xf32> to vector<5x1xf32>
    %cst_48 = arith.constant 3.200000e+01 : f32
    %132 = vector.broadcast %cst_48 : f32 to vector<5x1xf32>
    %133 = arith.divf %131, %132 : vector<5x1xf32>
    %134 = vector.broadcast %133 : vector<5x1xf32> to vector<5x32xf32>
    %135 = arith.subf %129, %134 : vector<5x32xf32>
    %136 = vector.broadcast %133 : vector<5x1xf32> to vector<5x32xf32>
    %137 = arith.subf %129, %136 : vector<5x32xf32>
    %138 = arith.mulf %135, %137 : vector<5x32xf32>
    %cst_49 = arith.constant dense<0.000000e+00> : vector<5xf32>
    %139 = vector.multi_reduction <add>, %138, %cst_49 [1] : vector<5x32xf32> to vector<5xf32>
    %140 = vector.shape_cast %139 : vector<5xf32> to vector<5x1xf32>
    %cst_50 = arith.constant 3.200000e+01 : f32
    %141 = vector.broadcast %cst_50 : f32 to vector<5x1xf32>
    %142 = arith.divf %140, %141 : vector<5x1xf32>
    %143 = vector.broadcast %133 : vector<5x1xf32> to vector<5x32xf32>
    %144 = arith.subf %129, %143 : vector<5x32xf32>
    %cst_51 = arith.constant 9.99999974E-6 : f32
    %145 = vector.broadcast %cst_51 : f32 to vector<5x1xf32>
    %146 = arith.addf %142, %145 : vector<5x1xf32>
    %147 = math.rsqrt %146 : vector<5x1xf32>
    %148 = vector.broadcast %147 : vector<5x1xf32> to vector<5x32xf32>
    %149 = arith.mulf %144, %148 : vector<5x32xf32>
    %c0_52 = arith.constant 0 : index
    %c0_53 = arith.constant 0 : index
    %150 = vector.load %arg8[%c0_52, %c0_53] : memref<1x32xf32, #tpu.memory_space<vmem>>, vector<1x32xf32>
    %151 = vector.broadcast %150 : vector<1x32xf32> to vector<5x32xf32>
    %152 = arith.mulf %149, %151 : vector<5x32xf32>
    %c0_54 = arith.constant 0 : index
    %c0_55 = arith.constant 0 : index
    %153 = vector.load %arg9[%c0_54, %c0_55] : memref<1x32xf32, #tpu.memory_space<vmem>>, vector<1x32xf32>
    %154 = vector.broadcast %153 : vector<1x32xf32> to vector<5x32xf32>
    %155 = arith.addf %152, %154 : vector<5x32xf32>
    %156 = arith.truncf %155 : vector<5x32xf32> to vector<5x32xbf16>
    %c0_56 = arith.constant 0 : index
    %c0_57 = arith.constant 0 : index
    %157 = vector.load %arg10[%c0_56, %c0_57] : memref<32x128xbf16, #tpu.memory_space<vmem>>, vector<32x128xbf16>
    %cst_58 = arith.constant dense<0.000000e+00> : vector<5x128xf32>
    %158 = tpu.matmul %156, %157, %cst_58 {dimension_numbers = #tpu.dot_dimension_numbers<[1], [0], [0], [1], [0, 0, 1, 1], [], []>} : vector<5x32xbf16>, vector<32x128xbf16>, vector<5x128xf32> -> vector<5x128xf32>
    %c0_59 = arith.constant 0 : index
    %c0_60 = arith.constant 0 : index
    %159 = vector.load %arg11[%c0_59, %c0_60] : memref<1x128xf32, #tpu.memory_space<vmem>>, vector<1x128xf32>
    %160 = vector.broadcast %159 : vector<1x128xf32> to vector<5x128xf32>
    %161 = arith.addf %158, %160 : vector<5x128xf32>
    %cst_61 = arith.constant 1.702000e+00 : f32
    %162 = vector.broadcast %cst_61 : f32 to vector<5x128xf32>
    %163 = arith.mulf %162, %161 : vector<5x128xf32>
    %164 = arith.negf %163 : vector<5x128xf32>
    %165 = math.exp %164 : vector<5x128xf32>
    %cst_62 = arith.constant 1.000000e+00 : f32
    %166 = vector.broadcast %cst_62 : f32 to vector<5x128xf32>
    %167 = arith.addf %166, %165 : vector<5x128xf32>
    %168 = arith.divf %166, %167 : vector<5x128xf32>
    %169 = arith.mulf %161, %168 : vector<5x128xf32>
    %170 = arith.truncf %169 : vector<5x128xf32> to vector<5x128xbf16>
    %c0_63 = arith.constant 0 : index
    %c0_64 = arith.constant 0 : index
    %171 = vector.load %arg12[%c0_63, %c0_64] : memref<128x32xbf16, #tpu.memory_space<vmem>>, vector<128x32xbf16>
    %cst_65 = arith.constant dense<0.000000e+00> : vector<5x32xf32>
    %172 = tpu.matmul %170, %171, %cst_65 {dimension_numbers = #tpu.dot_dimension_numbers<[1], [0], [0], [1], [0, 0, 1, 1], [], []>} : vector<5x128xbf16>, vector<128x32xbf16>, vector<5x32xf32> -> vector<5x32xf32>
    %173 = arith.addf %129, %172 : vector<5x32xf32>
    %c0_66 = arith.constant 0 : index
    %c0_67 = arith.constant 0 : index
    %174 = vector.load %arg13[%c0_66, %c0_67] : memref<1x32xf32, #tpu.memory_space<vmem>>, vector<1x32xf32>
    %175 = vector.broadcast %174 : vector<1x32xf32> to vector<5x32xf32>
    %176 = arith.addf %173, %175 : vector<5x32xf32>
    %c0_68 = arith.constant 0 : index
    %c0_69 = arith.constant 0 : index
    %c0_70 = arith.constant 0 : index
    %177 = vector.load %arg14[%c0_68, %c0_69, %c0_70] : memref<1x5x32xf32, #tpu.memory_space<vmem>>, vector<1x5x32xf32>
    %178 = vector.shape_cast %177 : vector<1x5x32xf32> to vector<5x32xf32>
    %179 = vector.shape_cast %176 : vector<5x32xf32> to vector<1x5x32xf32>
    tpu.vector_store %arg14[%c0_68, %c0_69, %c0_70], %179 {strides = array<i32>} : memref<1x5x32xf32, #tpu.memory_space<vmem>>, vector<1x5x32xf32>,
    return
  }
  func.func @transform_0(%arg0: i32) -> (i32, i32, i32) {
    %c0_i32 = arith.constant 0 : i32
    %c0_i32_0 = arith.constant 0 : i32
    %c0_i32_1 = arith.constant 0 : i32
    return %arg0, %c0_i32, %c0_i32_0 : i32, i32, i32
  }
  func.func @transform_1(%arg0: i32) -> (i32, i32) {
    %c0_i32 = arith.constant 0 : i32
    %c0_i32_0 = arith.constant 0 : i32
    %c0_i32_1 = arith.constant 0 : i32
    return %c0_i32, %c0_i32_0 : i32, i32
  }
  func.func @transform_2(%arg0: i32) -> (i32, i32) {
    %c0_i32 = arith.constant 0 : i32
    %c0_i32_0 = arith.constant 0 : i32
    %c0_i32_1 = arith.constant 0 : i32
    return %c0_i32, %c0_i32_0 : i32, i32
  }
  func.func @transform_3(%arg0: i32) -> (i32, i32) {
    %c0_i32 = arith.constant 0 : i32
    %c0_i32_0 = arith.constant 0 : i32
    %c0_i32_1 = arith.constant 0 : i32
    return %c0_i32, %c0_i32_0 : i32, i32
  }
  func.func @transform_4(%arg0: i32) -> (i32, i32) {
    %c0_i32 = arith.constant 0 : i32
    %c0_i32_0 = arith.constant 0 : i32
    %c0_i32_1 = arith.constant 0 : i32
    return %c0_i32, %c0_i32_0 : i32, i32
  }
  func.func @transform_5(%arg0: i32) -> (i32, i32) {
    %c0_i32 = arith.constant 0 : i32
    %c0_i32_0 = arith.constant 0 : i32
    %c0_i32_1 = arith.constant 0 : i32
    return %c0_i32, %c0_i32_0 : i32, i32
  }
  func.func @transform_6(%arg0: i32) -> (i32, i32) {
    %c0_i32 = arith.constant 0 : i32
    %c0_i32_0 = arith.constant 0 : i32
    %c0_i32_1 = arith.constant 0 : i32
    return %c0_i32, %c0_i32_0 : i32, i32
  }
  func.func @transform_7(%arg0: i32) -> (i32, i32) {
    %c0_i32 = arith.constant 0 : i32
    %c0_i32_0 = arith.constant 0 : i32
    %c0_i32_1 = arith.constant 0 : i32
    return %c0_i32, %c0_i32_0 : i32, i32
  }
  func.func @transform_8(%arg0: i32) -> (i32, i32) {
    %c0_i32 = arith.constant 0 : i32
    %c0_i32_0 = arith.constant 0 : i32
    %c0_i32_1 = arith.constant 0 : i32
    return %c0_i32, %c0_i32_0 : i32, i32
  }
  func.func @transform_9(%arg0: i32) -> (i32, i32) {
    %c0_i32 = arith.constant 0 : i32
    %c0_i32_0 = arith.constant 0 : i32
    %c0_i32_1 = arith.constant 0 : i32
    return %c0_i32, %c0_i32_0 : i32, i32
  }
  func.func @transform_10(%arg0: i32) -> (i32, i32) {
    %c0_i32 = arith.constant 0 : i32
    %c0_i32_0 = arith.constant 0 : i32
    %c0_i32_1 = arith.constant 0 : i32
    return %c0_i32, %c0_i32_0 : i32, i32
  }
  func.func @transform_11(%arg0: i32) -> (i32, i32) {
    %c0_i32 = arith.constant 0 : i32
    %c0_i32_0 = arith.constant 0 : i32
    %c0_i32_1 = arith.constant 0 : i32
    return %c0_i32, %c0_i32_0 : i32, i32
  }
  func.func @transform_12(%arg0: i32) -> (i32, i32) {
    %c0_i32 = arith.constant 0 : i32
    %c0_i32_0 = arith.constant 0 : i32
    %c0_i32_1 = arith.constant 0 : i32
    return %c0_i32, %c0_i32_0 : i32, i32
  }
  func.func @transform_13(%arg0: i32) -> (i32, i32, i32) {
    %c0_i32 = arith.constant 0 : i32
    %c0_i32_0 = arith.constant 0 : i32
    %c0_i32_1 = arith.constant 0 : i32
    return %arg0, %c0_i32, %c0_i32_0 : i32, i32, i32
  }
}

module attributes {stable_mosaic.version = 11 : i64} {
  func.func @_fused_linear_kernel(%arg0: i32, %arg1: i32, %arg2: i32, %arg3: memref<2x32xf32, #tpu.memory_space<vmem>>, %arg4: memref<32x128xbf16, #tpu.memory_space<vmem>>, %arg5: memref<1x32xf32, #tpu.memory_space<vmem>>, %arg6: memref<1x32xf32, #tpu.memory_space<vmem>>, %arg7: memref<2x128xf32, #tpu.memory_space<vmem>>, %arg8: memref<2x128xf32, #tpu.memory_space<vmem>>, %arg9: memref<2x32xbf16, #tpu.memory_space<vmem>>) attributes {dimension_semantics = [#tpu.dimension_semantics<parallel>, #tpu.dimension_semantics<arbitrary>, #tpu.dimension_semantics<arbitrary>], iteration_bounds = array<i64: 1, 1, 1>, scalar_prefetch = 0 : i64, scratch_operands = 2 : i64, tpu.core_type = #tpu.core_type<tc>, window_params = [{transform_indices = @transform_0, window_bounds = array<i64: 2, 32>}, {transform_indices = @transform_1, window_bounds = array<i64: 32, 128>}, {transform_indices = @transform_2, window_bounds = array<i64: 1, 32>}, {transform_indices = @transform_3, window_bounds = array<i64: 1, 32>}, {transform_indices = @transform_4, window_bounds = array<i64: 2, 128>}]} {
    %c0_i32 = arith.constant 0 : i32
    %0 = arith.cmpi eq, %arg1, %c0_i32 : i32
    %c0_i32_0 = arith.constant 0 : i32
    %1 = arith.cmpi eq, %arg2, %c0_i32_0 : i32
    %2 = arith.andi %0, %1 : i1
    %3 = arith.extui %2 : i1 to i32
    %c0_i32_1 = arith.constant 0 : i32
    %4 = arith.cmpi ne, %3, %c0_i32_1 : i32
    scf.if %4 {
      %c0_13 = arith.constant 0 : index
      %c0_14 = arith.constant 0 : index
      %17 = vector.load %arg3[%c0_13, %c0_14] : memref<2x32xf32, #tpu.memory_space<vmem>>, vector<2x32xf32>
      %cst_15 = arith.constant dense<0.000000e+00> : vector<2xf32>
      %18 = vector.multi_reduction <add>, %17, %cst_15 [1] : vector<2x32xf32> to vector<2xf32>
      %19 = vector.shape_cast %18 : vector<2xf32> to vector<2x1xf32>
      %cst_16 = arith.constant 3.200000e+01 : f32
      %20 = vector.broadcast %cst_16 : f32 to vector<2x1xf32>
      %21 = arith.divf %19, %20 : vector<2x1xf32>
      %22 = vector.broadcast %21 : vector<2x1xf32> to vector<2x32xf32>
      %23 = arith.subf %17, %22 : vector<2x32xf32>
      %24 = vector.broadcast %21 : vector<2x1xf32> to vector<2x32xf32>
      %25 = arith.subf %17, %24 : vector<2x32xf32>
      %26 = arith.mulf %23, %25 : vector<2x32xf32>
      %cst_17 = arith.constant dense<0.000000e+00> : vector<2xf32>
      %27 = vector.multi_reduction <add>, %26, %cst_17 [1] : vector<2x32xf32> to vector<2xf32>
      %28 = vector.shape_cast %27 : vector<2xf32> to vector<2x1xf32>
      %cst_18 = arith.constant 3.200000e+01 : f32
      %29 = vector.broadcast %cst_18 : f32 to vector<2x1xf32>
      %30 = arith.divf %28, %29 : vector<2x1xf32>
      %31 = vector.broadcast %21 : vector<2x1xf32> to vector<2x32xf32>
      %32 = arith.subf %17, %31 : vector<2x32xf32>
      %cst_19 = arith.constant 9.99999974E-6 : f32
      %33 = vector.broadcast %cst_19 : f32 to vector<2x1xf32>
      %34 = arith.addf %30, %33 : vector<2x1xf32>
      %35 = math.rsqrt %34 : vector<2x1xf32>
      %36 = vector.broadcast %35 : vector<2x1xf32> to vector<2x32xf32>
      %37 = arith.mulf %32, %36 : vector<2x32xf32>
      %c0_20 = arith.constant 0 : index
      %c0_21 = arith.constant 0 : index
      %38 = vector.load %arg5[%c0_20, %c0_21] : memref<1x32xf32, #tpu.memory_space<vmem>>, vector<1x32xf32>
      %39 = vector.broadcast %38 : vector<1x32xf32> to vector<2x32xf32>
      %40 = arith.mulf %37, %39 : vector<2x32xf32>
      %c0_22 = arith.constant 0 : index
      %c0_23 = arith.constant 0 : index
      %41 = vector.load %arg6[%c0_22, %c0_23] : memref<1x32xf32, #tpu.memory_space<vmem>>, vector<1x32xf32>
      %42 = vector.broadcast %41 : vector<1x32xf32> to vector<2x32xf32>
      %43 = arith.addf %40, %42 : vector<2x32xf32>
      %44 = arith.truncf %43 : vector<2x32xf32> to vector<2x32xbf16>
      %c0_24 = arith.constant 0 : index
      %c0_25 = arith.constant 0 : index
      %45 = vector.load %arg9[%c0_24, %c0_25] : memref<2x32xbf16, #tpu.memory_space<vmem>>, vector<2x32xbf16>
      tpu.vector_store %arg9[%c0_24, %c0_25], %44 {strides = array<i32>} : memref<2x32xbf16, #tpu.memory_space<vmem>>, vector<2x32xbf16>,
    } else {
    }
    %c0 = arith.constant 0 : index
    %c0_2 = arith.constant 0 : index
    %5 = vector.load %arg9[%c0, %c0_2] : memref<2x32xbf16, #tpu.memory_space<vmem>>, vector<2x32xbf16>
    %c0_i32_3 = arith.constant 0 : i32
    %6 = arith.cmpi eq, %arg2, %c0_i32_3 : i32
    %7 = arith.extui %6 : i1 to i32
    %c0_i32_4 = arith.constant 0 : i32
    %8 = arith.cmpi ne, %7, %c0_i32_4 : i32
    scf.if %8 {
      %cst_13 = arith.constant 0.000000e+00 : f32
      %17 = vector.broadcast %cst_13 : f32 to vector<2x128xf32>
      %c0_14 = arith.constant 0 : index
      %c0_15 = arith.constant 0 : index
      %18 = vector.load %arg8[%c0_14, %c0_15] : memref<2x128xf32, #tpu.memory_space<vmem>>, vector<2x128xf32>
      tpu.vector_store %arg8[%c0_14, %c0_15], %17 {strides = array<i32>} : memref<2x128xf32, #tpu.memory_space<vmem>>, vector<2x128xf32>,
    } else {
    }
    %c0_5 = arith.constant 0 : index
    %c0_6 = arith.constant 0 : index
    %9 = vector.load %arg8[%c0_5, %c0_6] : memref<2x128xf32, #tpu.memory_space<vmem>>, vector<2x128xf32>
    %c0_7 = arith.constant 0 : index
    %c0_8 = arith.constant 0 : index
    %10 = vector.load %arg4[%c0_7, %c0_8] : memref<32x128xbf16, #tpu.memory_space<vmem>>, vector<32x128xbf16>
    %cst = arith.constant dense<0.000000e+00> : vector<2x128xf32>
    %11 = tpu.matmul %5, %10, %cst {dimension_numbers = #tpu.dot_dimension_numbers<[1], [0], [0], [1], [0, 0, 1, 1], [], []>} : vector<2x32xbf16>, vector<32x128xbf16>, vector<2x128xf32> -> vector<2x128xf32>
    %12 = arith.addf %9, %11 : vector<2x128xf32>
    %c0_9 = arith.constant 0 : index
    %c0_10 = arith.constant 0 : index
    %13 = vector.load %arg8[%c0_9, %c0_10] : memref<2x128xf32, #tpu.memory_space<vmem>>, vector<2x128xf32>
    tpu.vector_store %arg8[%c0_9, %c0_10], %12 {strides = array<i32>} : memref<2x128xf32, #tpu.memory_space<vmem>>, vector<2x128xf32>,
    %c0_i32_11 = arith.constant 0 : i32
    %14 = arith.cmpi eq, %arg2, %c0_i32_11 : i32
    %15 = arith.extui %14 : i1 to i32
    %c0_i32_12 = arith.constant 0 : i32
    %16 = arith.cmpi ne, %15, %c0_i32_12 : i32
    scf.if %16 {
      %c0_13 = arith.constant 0 : index
      %c0_14 = arith.constant 0 : index
      %17 = vector.load %arg8[%c0_13, %c0_14] : memref<2x128xf32, #tpu.memory_space<vmem>>, vector<2x128xf32>
      %c0_15 = arith.constant 0 : index
      %c0_16 = arith.constant 0 : index
      %18 = vector.load %arg7[%c0_15, %c0_16] : memref<2x128xf32, #tpu.memory_space<vmem>>, vector<2x128xf32>
      tpu.vector_store %arg7[%c0_15, %c0_16], %17 {strides = array<i32>} : memref<2x128xf32, #tpu.memory_space<vmem>>, vector<2x128xf32>,
    } else {
    }
    return
  }
  func.func @transform_0(%arg0: i32, %arg1: i32, %arg2: i32) -> (i32, i32) {
    %c0_i32 = arith.constant 0 : i32
    return %arg0, %arg2 : i32, i32
  }
  func.func @transform_1(%arg0: i32, %arg1: i32, %arg2: i32) -> (i32, i32) {
    %c0_i32 = arith.constant 0 : i32
    return %arg2, %arg1 : i32, i32
  }
  func.func @transform_2(%arg0: i32, %arg1: i32, %arg2: i32) -> (i32, i32) {
    %c0_i32 = arith.constant 0 : i32
    %c0_i32_0 = arith.constant 0 : i32
    return %c0_i32, %arg2 : i32, i32
  }
  func.func @transform_3(%arg0: i32, %arg1: i32, %arg2: i32) -> (i32, i32) {
    %c0_i32 = arith.constant 0 : i32
    %c0_i32_0 = arith.constant 0 : i32
    return %c0_i32, %arg2 : i32, i32
  }
  func.func @transform_4(%arg0: i32, %arg1: i32, %arg2: i32) -> (i32, i32) {
    %c0_i32 = arith.constant 0 : i32
    return %arg0, %arg1 : i32, i32
  }
}

module attributes {stable_mosaic.version = 11 : i64} {
  func.func @_fused_linear_kernel(%arg0: i32, %arg1: i32, %arg2: i32, %arg3: memref<16x8xf32, #tpu.memory_space<vmem>>, %arg4: memref<8x32xbf16, #tpu.memory_space<vmem>>, %arg5: memref<16x32xf32, #tpu.memory_space<vmem>>, %arg6: memref<16x32xf32, #tpu.memory_space<vmem>>) attributes {dimension_semantics = [#tpu.dimension_semantics<parallel>, #tpu.dimension_semantics<parallel>, #tpu.dimension_semantics<arbitrary>], iteration_bounds = array<i64: 1, 1, 1>, scalar_prefetch = 0 : i64, scratch_operands = 1 : i64, tpu.core_type = #tpu.core_type<tc>, window_params = [{transform_indices = @transform_0, window_bounds = array<i64: 16, 8>}, {transform_indices = @transform_1, window_bounds = array<i64: 8, 32>}, {transform_indices = @transform_2, window_bounds = array<i64: 16, 32>}]} {
    %c0 = arith.constant 0 : index
    %c0_0 = arith.constant 0 : index
    %0 = vector.load %arg3[%c0, %c0_0] : memref<16x8xf32, #tpu.memory_space<vmem>>, vector<16x8xf32>
    %1 = arith.truncf %0 : vector<16x8xf32> to vector<16x8xbf16>
    %c0_i32 = arith.constant 0 : i32
    %2 = arith.cmpi eq, %arg2, %c0_i32 : i32
    %3 = arith.extui %2 : i1 to i32
    %c0_i32_1 = arith.constant 0 : i32
    %4 = arith.cmpi ne, %3, %c0_i32_1 : i32
    scf.if %4 {
      %cst_10 = arith.constant 0.000000e+00 : f32
      %13 = vector.broadcast %cst_10 : f32 to vector<16x32xf32>
      %c0_11 = arith.constant 0 : index
      %c0_12 = arith.constant 0 : index
      %14 = vector.load %arg6[%c0_11, %c0_12] : memref<16x32xf32, #tpu.memory_space<vmem>>, vector<16x32xf32>
      tpu.vector_store %arg6[%c0_11, %c0_12], %13 {strides = array<i32>} : memref<16x32xf32, #tpu.memory_space<vmem>>, vector<16x32xf32>,
    } else {
    }
    %c0_2 = arith.constant 0 : index
    %c0_3 = arith.constant 0 : index
    %5 = vector.load %arg6[%c0_2, %c0_3] : memref<16x32xf32, #tpu.memory_space<vmem>>, vector<16x32xf32>
    %c0_4 = arith.constant 0 : index
    %c0_5 = arith.constant 0 : index
    %6 = vector.load %arg4[%c0_4, %c0_5] : memref<8x32xbf16, #tpu.memory_space<vmem>>, vector<8x32xbf16>
    %cst = arith.constant dense<0.000000e+00> : vector<16x32xf32>
    %7 = tpu.matmul %1, %6, %cst {dimension_numbers = #tpu.dot_dimension_numbers<[1], [0], [0], [1], [0, 0, 1, 1], [], []>} : vector<16x8xbf16>, vector<8x32xbf16>, vector<16x32xf32> -> vector<16x32xf32>
    %8 = arith.addf %5, %7 : vector<16x32xf32>
    %c0_6 = arith.constant 0 : index
    %c0_7 = arith.constant 0 : index
    %9 = vector.load %arg6[%c0_6, %c0_7] : memref<16x32xf32, #tpu.memory_space<vmem>>, vector<16x32xf32>
    tpu.vector_store %arg6[%c0_6, %c0_7], %8 {strides = array<i32>} : memref<16x32xf32, #tpu.memory_space<vmem>>, vector<16x32xf32>,
    %c0_i32_8 = arith.constant 0 : i32
    %10 = arith.cmpi eq, %arg2, %c0_i32_8 : i32
    %11 = arith.extui %10 : i1 to i32
    %c0_i32_9 = arith.constant 0 : i32
    %12 = arith.cmpi ne, %11, %c0_i32_9 : i32
    scf.if %12 {
      %c0_10 = arith.constant 0 : index
      %c0_11 = arith.constant 0 : index
      %13 = vector.load %arg6[%c0_10, %c0_11] : memref<16x32xf32, #tpu.memory_space<vmem>>, vector<16x32xf32>
      %c0_12 = arith.constant 0 : index
      %c0_13 = arith.constant 0 : index
      %14 = vector.load %arg5[%c0_12, %c0_13] : memref<16x32xf32, #tpu.memory_space<vmem>>, vector<16x32xf32>
      tpu.vector_store %arg5[%c0_12, %c0_13], %13 {strides = array<i32>} : memref<16x32xf32, #tpu.memory_space<vmem>>, vector<16x32xf32>,
    } else {
    }
    return
  }
  func.func @transform_0(%arg0: i32, %arg1: i32, %arg2: i32) -> (i32, i32) {
    %c0_i32 = arith.constant 0 : i32
    return %arg0, %arg2 : i32, i32
  }
  func.func @transform_1(%arg0: i32, %arg1: i32, %arg2: i32) -> (i32, i32) {
    %c0_i32 = arith.constant 0 : i32
    return %arg2, %arg1 : i32, i32
  }
  func.func @transform_2(%arg0: i32, %arg1: i32, %arg2: i32) -> (i32, i32) {
    %c0_i32 = arith.constant 0 : i32
    return %arg0, %arg1 : i32, i32
  }
}

module attributes {stable_mosaic.version = 11 : i64} {
  func.func @_layernorm_kernel(%arg0: i32, %arg1: memref<18x32xf32, #tpu.memory_space<vmem>>, %arg2: memref<1x32xf32, #tpu.memory_space<vmem>>, %arg3: memref<1x32xf32, #tpu.memory_space<vmem>>, %arg4: memref<18x32xf32, #tpu.memory_space<vmem>>) attributes {dimension_semantics = [#tpu.dimension_semantics<parallel>], iteration_bounds = array<i64: 1>, scalar_prefetch = 0 : i64, scratch_operands = 0 : i64, tpu.core_type = #tpu.core_type<tc>, window_params = [{transform_indices = @transform_0, window_bounds = array<i64: 18, 32>}, {pipeline_mode = #tpu.pipeline_mode<synchronous>, transform_indices = @transform_1, window_bounds = array<i64: 1, 32>}, {pipeline_mode = #tpu.pipeline_mode<synchronous>, transform_indices = @transform_2, window_bounds = array<i64: 1, 32>}, {transform_indices = @transform_3, window_bounds = array<i64: 18, 32>}]} {
    %c0 = arith.constant 0 : index
    %c0_0 = arith.constant 0 : index
    %0 = vector.load %arg1[%c0, %c0_0] : memref<18x32xf32, #tpu.memory_space<vmem>>, vector<18x32xf32>
    %cst = arith.constant dense<0.000000e+00> : vector<18xf32>
    %1 = vector.multi_reduction <add>, %0, %cst [1] : vector<18x32xf32> to vector<18xf32>
    %2 = vector.shape_cast %1 : vector<18xf32> to vector<18x1xf32>
    %cst_1 = arith.constant 3.200000e+01 : f32
    %3 = vector.broadcast %cst_1 : f32 to vector<18x1xf32>
    %4 = arith.divf %2, %3 : vector<18x1xf32>
    %5 = vector.broadcast %4 : vector<18x1xf32> to vector<18x32xf32>
    %6 = arith.subf %0, %5 : vector<18x32xf32>
    %7 = vector.broadcast %4 : vector<18x1xf32> to vector<18x32xf32>
    %8 = arith.subf %0, %7 : vector<18x32xf32>
    %9 = arith.mulf %6, %8 : vector<18x32xf32>
    %cst_2 = arith.constant dense<0.000000e+00> : vector<18xf32>
    %10 = vector.multi_reduction <add>, %9, %cst_2 [1] : vector<18x32xf32> to vector<18xf32>
    %11 = vector.shape_cast %10 : vector<18xf32> to vector<18x1xf32>
    %cst_3 = arith.constant 3.200000e+01 : f32
    %12 = vector.broadcast %cst_3 : f32 to vector<18x1xf32>
    %13 = arith.divf %11, %12 : vector<18x1xf32>
    %14 = vector.broadcast %4 : vector<18x1xf32> to vector<18x32xf32>
    %15 = arith.subf %0, %14 : vector<18x32xf32>
    %cst_4 = arith.constant 9.99999974E-6 : f32
    %16 = vector.broadcast %cst_4 : f32 to vector<18x1xf32>
    %17 = arith.addf %13, %16 : vector<18x1xf32>
    %18 = math.rsqrt %17 : vector<18x1xf32>
    %19 = vector.broadcast %18 : vector<18x1xf32> to vector<18x32xf32>
    %20 = arith.mulf %15, %19 : vector<18x32xf32>
    %c0_5 = arith.constant 0 : index
    %c0_6 = arith.constant 0 : index
    %21 = vector.load %arg2[%c0_5, %c0_6] : memref<1x32xf32, #tpu.memory_space<vmem>>, vector<1x32xf32>
    %22 = vector.broadcast %21 : vector<1x32xf32> to vector<18x32xf32>
    %23 = arith.mulf %20, %22 : vector<18x32xf32>
    %c0_7 = arith.constant 0 : index
    %c0_8 = arith.constant 0 : index
    %24 = vector.load %arg3[%c0_7, %c0_8] : memref<1x32xf32, #tpu.memory_space<vmem>>, vector<1x32xf32>
    %25 = vector.broadcast %24 : vector<1x32xf32> to vector<18x32xf32>
    %26 = arith.addf %23, %25 : vector<18x32xf32>
    %c0_9 = arith.constant 0 : index
    %c0_10 = arith.constant 0 : index
    %27 = vector.load %arg4[%c0_9, %c0_10] : memref<18x32xf32, #tpu.memory_space<vmem>>, vector<18x32xf32>
    tpu.vector_store %arg4[%c0_9, %c0_10], %26 {strides = array<i32>} : memref<18x32xf32, #tpu.memory_space<vmem>>, vector<18x32xf32>,
    return
  }
  func.func @transform_0(%arg0: i32) -> (i32, i32) {
    %c0_i32 = arith.constant 0 : i32
    %c0_i32_0 = arith.constant 0 : i32
    return %arg0, %c0_i32 : i32, i32
  }
  func.func @transform_1(%arg0: i32) -> (i32, i32) {
    %c0_i32 = arith.constant 0 : i32
    %c0_i32_0 = arith.constant 0 : i32
    %c0_i32_1 = arith.constant 0 : i32
    return %c0_i32, %c0_i32_0 : i32, i32
  }
  func.func @transform_2(%arg0: i32) -> (i32, i32) {
    %c0_i32 = arith.constant 0 : i32
    %c0_i32_0 = arith.constant 0 : i32
    %c0_i32_1 = arith.constant 0 : i32
    return %c0_i32, %c0_i32_0 : i32, i32
  }
  func.func @transform_3(%arg0: i32) -> (i32, i32) {
    %c0_i32 = arith.constant 0 : i32
    %c0_i32_0 = arith.constant 0 : i32
    return %arg0, %c0_i32 : i32, i32
  }
}

module attributes {stable_mosaic.version = 11 : i64} {
  func.func @_block_kernel(%arg0: i32, %arg1: memref<1x9x32xf32, #tpu.memory_space<vmem>>, %arg2: memref<1x32xf32, #tpu.memory_space<vmem>>, %arg3: memref<1x32xf32, #tpu.memory_space<vmem>>, %arg4: memref<32x96xbf16, #tpu.memory_space<vmem>>, %arg5: memref<1x96xf32, #tpu.memory_space<vmem>>, %arg6: memref<32x32xbf16, #tpu.memory_space<vmem>>, %arg7: memref<1x32xf32, #tpu.memory_space<vmem>>, %arg8: memref<1x32xf32, #tpu.memory_space<vmem>>, %arg9: memref<1x32xf32, #tpu.memory_space<vmem>>, %arg10: memref<32x128xbf16, #tpu.memory_space<vmem>>, %arg11: memref<1x128xf32, #tpu.memory_space<vmem>>, %arg12: memref<128x32xbf16, #tpu.memory_space<vmem>>, %arg13: memref<1x32xf32, #tpu.memory_space<vmem>>, %arg14: memref<1x9x32xf32, #tpu.memory_space<vmem>>, %arg15: memref<9x32xf32, #tpu.memory_space<vmem>>) attributes {dimension_semantics = [#tpu.dimension_semantics<parallel>], iteration_bounds = array<i64: 2>, scalar_prefetch = 0 : i64, scratch_operands = 1 : i64, tpu.core_type = #tpu.core_type<tc>, window_params = [{transform_indices = @transform_0, window_bounds = array<i64: 1, 9, 32>}, {pipeline_mode = #tpu.pipeline_mode<synchronous>, transform_indices = @transform_1, window_bounds = array<i64: 1, 32>}, {pipeline_mode = #tpu.pipeline_mode<synchronous>, transform_indices = @transform_2, window_bounds = array<i64: 1, 32>}, {pipeline_mode = #tpu.pipeline_mode<synchronous>, transform_indices = @transform_3, window_bounds = array<i64: 32, 96>}, {pipeline_mode = #tpu.pipeline_mode<synchronous>, transform_indices = @transform_4, window_bounds = array<i64: 1, 96>}, {pipeline_mode = #tpu.pipeline_mode<synchronous>, transform_indices = @transform_5, window_bounds = array<i64: 32, 32>}, {pipeline_mode = #tpu.pipeline_mode<synchronous>, transform_indices = @transform_6, window_bounds = array<i64: 1, 32>}, {pipeline_mode = #tpu.pipeline_mode<synchronous>, transform_indices = @transform_7, window_bounds = array<i64: 1, 32>}, {pipeline_mode = #tpu.pipeline_mode<synchronous>, transform_indices = @transform_8, window_bounds = array<i64: 1, 32>}, {pipeline_mode = #tpu.pipeline_mode<synchronous>, transform_indices = @transform_9, window_bounds = array<i64: 32, 128>}, {pipeline_mode = #tpu.pipeline_mode<synchronous>, transform_indices = @transform_10, window_bounds = array<i64: 1, 128>}, {pipeline_mode = #tpu.pipeline_mode<synchronous>, transform_indices = @transform_11, window_bounds = array<i64: 128, 32>}, {pipeline_mode = #tpu.pipeline_mode<synchronous>, transform_indices = @transform_12, window_bounds = array<i64: 1, 32>}, {transform_indices = @transform_13, window_bounds = array<i64: 1, 9, 32>}]} {
    %c0 = arith.constant 0 : index
    %c0_0 = arith.constant 0 : index
    %c0_1 = arith.constant 0 : index
    %0 = vector.load %arg1[%c0, %c0_0, %c0_1] : memref<1x9x32xf32, #tpu.memory_space<vmem>>, vector<1x9x32xf32>
    %1 = vector.shape_cast %0 : vector<1x9x32xf32> to vector<9x32xf32>
    %cst = arith.constant dense<0.000000e+00> : vector<9xf32>
    %2 = vector.multi_reduction <add>, %1, %cst [1] : vector<9x32xf32> to vector<9xf32>
    %3 = vector.shape_cast %2 : vector<9xf32> to vector<9x1xf32>
    %cst_2 = arith.constant 3.200000e+01 : f32
    %4 = vector.broadcast %cst_2 : f32 to vector<9x1xf32>
    %5 = arith.divf %3, %4 : vector<9x1xf32>
    %6 = vector.broadcast %5 : vector<9x1xf32> to vector<9x32xf32>
    %7 = arith.subf %1, %6 : vector<9x32xf32>
    %8 = vector.broadcast %5 : vector<9x1xf32> to vector<9x32xf32>
    %9 = arith.subf %1, %8 : vector<9x32xf32>
    %10 = arith.mulf %7, %9 : vector<9x32xf32>
    %cst_3 = arith.constant dense<0.000000e+00> : vector<9xf32>
    %11 = vector.multi_reduction <add>, %10, %cst_3 [1] : vector<9x32xf32> to vector<9xf32>
    %12 = vector.shape_cast %11 : vector<9xf32> to vector<9x1xf32>
    %cst_4 = arith.constant 3.200000e+01 : f32
    %13 = vector.broadcast %cst_4 : f32 to vector<9x1xf32>
    %14 = arith.divf %12, %13 : vector<9x1xf32>
    %15 = vector.broadcast %5 : vector<9x1xf32> to vector<9x32xf32>
    %16 = arith.subf %1, %15 : vector<9x32xf32>
    %cst_5 = arith.constant 9.99999974E-6 : f32
    %17 = vector.broadcast %cst_5 : f32 to vector<9x1xf32>
    %18 = arith.addf %14, %17 : vector<9x1xf32>
    %19 = math.rsqrt %18 : vector<9x1xf32>
    %20 = vector.broadcast %19 : vector<9x1xf32> to vector<9x32xf32>
    %21 = arith.mulf %16, %20 : vector<9x32xf32>
    %c0_6 = arith.constant 0 : index
    %c0_7 = arith.constant 0 : index
    %22 = vector.load %arg2[%c0_6, %c0_7] : memref<1x32xf32, #tpu.memory_space<vmem>>, vector<1x32xf32>
    %23 = vector.broadcast %22 : vector<1x32xf32> to vector<9x32xf32>
    %24 = arith.mulf %21, %23 : vector<9x32xf32>
    %c0_8 = arith.constant 0 : index
    %c0_9 = arith.constant 0 : index
    %25 = vector.load %arg3[%c0_8, %c0_9] : memref<1x32xf32, #tpu.memory_space<vmem>>, vector<1x32xf32>
    %26 = vector.broadcast %25 : vector<1x32xf32> to vector<9x32xf32>
    %27 = arith.addf %24, %26 : vector<9x32xf32>
    %28 = arith.truncf %27 : vector<9x32xf32> to vector<9x32xbf16>
    %c0_10 = arith.constant 0 : index
    %c0_11 = arith.constant 0 : index
    %29 = vector.load %arg4[%c0_10, %c0_11] : memref<32x96xbf16, #tpu.memory_space<vmem>>, vector<32x96xbf16>
    %cst_12 = arith.constant dense<0.000000e+00> : vector<9x96xf32>
    %30 = tpu.matmul %28, %29, %cst_12 {dimension_numbers = #tpu.dot_dimension_numbers<[1], [0], [0], [1], [0, 0, 1, 1], [], []>} : vector<9x32xbf16>, vector<32x96xbf16>, vector<9x96xf32> -> vector<9x96xf32>
    %c0_13 = arith.constant 0 : index
    %c0_14 = arith.constant 0 : index
    %31 = vector.load %arg5[%c0_13, %c0_14] : memref<1x96xf32, #tpu.memory_space<vmem>>, vector<1x96xf32>
    %32 = vector.broadcast %31 : vector<1x96xf32> to vector<9x96xf32>
    %33 = arith.addf %30, %32 : vector<9x96xf32>
    %34 = vector.extract_strided_slice %33 {offsets = [0, 0], sizes = [9, 8], strides = [1, 1]} : vector<9x96xf32> to vector<9x8xf32>
    %35 = vector.extract_strided_slice %33 {offsets = [0, 32], sizes = [9, 8], strides = [1, 1]} : vector<9x96xf32> to vector<9x8xf32>
    %36 = vector.extract_strided_slice %33 {offsets = [0, 64], sizes = [9, 8], strides = [1, 1]} : vector<9x96xf32> to vector<9x8xf32>
    %37 = arith.truncf %34 : vector<9x8xf32> to vector<9x8xbf16>
    %38 = arith.truncf %35 : vector<9x8xf32> to vector<9x8xbf16>
    %cst_15 = arith.constant dense<0.000000e+00> : vector<9x9xf32>
    %39 = tpu.matmul %37, %38, %cst_15 {dimension_numbers = #tpu.dot_dimension_numbers<[1], [1], [0], [0], [0, 0, 1, 0], [], []>} : vector<9x8xbf16>, vector<9x8xbf16>, vector<9x9xf32> -> vector<9x9xf32>
    %cst_16 = arith.constant 0.353553385 : f32
    %40 = vector.broadcast %cst_16 : f32 to vector<9x9xf32>
    %41 = arith.mulf %39, %40 : vector<9x9xf32>
    %cst_17 = arith.constant dense<0xFF800000> : vector<9xf32>
    %42 = vector.multi_reduction <maximumf>, %41, %cst_17 [1] : vector<9x9xf32> to vector<9xf32>
    %43 = vector.shape_cast %42 : vector<9xf32> to vector<9x1xf32>
    %44 = vector.broadcast %43 : vector<9x1xf32> to vector<9x9xf32>
    %45 = arith.subf %41, %44 : vector<9x9xf32>
    %46 = math.exp %45 : vector<9x9xf32>
    %cst_18 = arith.constant dense<0.000000e+00> : vector<9xf32>
    %47 = vector.multi_reduction <add>, %46, %cst_18 [1] : vector<9x9xf32> to vector<9xf32>
    %48 = vector.shape_cast %47 : vector<9xf32> to vector<9x1xf32>
    %49 = tpu.reciprocal %48 {approx = true} : vector<9x1xf32> -> vector<9x1xf32>
    %50 = vector.broadcast %49 : vector<9x1xf32> to vector<9x9xf32>
    %51 = arith.mulf %46, %50 : vector<9x9xf32>
    %52 = arith.truncf %51 : vector<9x9xf32> to vector<9x9xbf16>
    %53 = arith.truncf %36 : vector<9x8xf32> to vector<9x8xbf16>
    %cst_19 = arith.constant dense<0.000000e+00> : vector<9x8xf32>
    %54 = tpu.matmul %52, %53, %cst_19 {dimension_numbers = #tpu.dot_dimension_numbers<[1], [0], [0], [1], [0, 0, 1, 1], [], []>} : vector<9x9xbf16>, vector<9x8xbf16>, vector<9x8xf32> -> vector<9x8xf32>
    %c0_20 = arith.constant 0 : index
    %c0_21 = arith.constant 0 : index
    %55 = vector.load %arg15[%c0_20, %c0_21] : memref<9x32xf32, #tpu.memory_space<vmem>>, vector<9x8xf32>
    tpu.vector_store %arg15[%c0_20, %c0_21], %54 {strides = array<i32>} : memref<9x32xf32, #tpu.memory_space<vmem>>, vector<9x8xf32>,
    %56 = vector.extract_strided_slice %33 {offsets = [0, 8], sizes = [9, 8], strides = [1, 1]} : vector<9x96xf32> to vector<9x8xf32>
    %57 = vector.extract_strided_slice %33 {offsets = [0, 40], sizes = [9, 8], strides = [1, 1]} : vector<9x96xf32> to vector<9x8xf32>
    %58 = vector.extract_strided_slice %33 {offsets = [0, 72], sizes = [9, 8], strides = [1, 1]} : vector<9x96xf32> to vector<9x8xf32>
    %59 = arith.truncf %56 : vector<9x8xf32> to vector<9x8xbf16>
    %60 = arith.truncf %57 : vector<9x8xf32> to vector<9x8xbf16>
    %cst_22 = arith.constant dense<0.000000e+00> : vector<9x9xf32>
    %61 = tpu.matmul %59, %60, %cst_22 {dimension_numbers = #tpu.dot_dimension_numbers<[1], [1], [0], [0], [0, 0, 1, 0], [], []>} : vector<9x8xbf16>, vector<9x8xbf16>, vector<9x9xf32> -> vector<9x9xf32>
    %cst_23 = arith.constant 0.353553385 : f32
    %62 = vector.broadcast %cst_23 : f32 to vector<9x9xf32>
    %63 = arith.mulf %61, %62 : vector<9x9xf32>
    %cst_24 = arith.constant dense<0xFF800000> : vector<9xf32>
    %64 = vector.multi_reduction <maximumf>, %63, %cst_24 [1] : vector<9x9xf32> to vector<9xf32>
    %65 = vector.shape_cast %64 : vector<9xf32> to vector<9x1xf32>
    %66 = vector.broadcast %65 : vector<9x1xf32> to vector<9x9xf32>
    %67 = arith.subf %63, %66 : vector<9x9xf32>
    %68 = math.exp %67 : vector<9x9xf32>
    %cst_25 = arith.constant dense<0.000000e+00> : vector<9xf32>
    %69 = vector.multi_reduction <add>, %68, %cst_25 [1] : vector<9x9xf32> to vector<9xf32>
    %70 = vector.shape_cast %69 : vector<9xf32> to vector<9x1xf32>
    %71 = tpu.reciprocal %70 {approx = true} : vector<9x1xf32> -> vector<9x1xf32>
    %72 = vector.broadcast %71 : vector<9x1xf32> to vector<9x9xf32>
    %73 = arith.mulf %68, %72 : vector<9x9xf32>
    %74 = arith.truncf %73 : vector<9x9xf32> to vector<9x9xbf16>
    %75 = arith.truncf %58 : vector<9x8xf32> to vector<9x8xbf16>
    %cst_26 = arith.constant dense<0.000000e+00> : vector<9x8xf32>
    %76 = tpu.matmul %74, %75, %cst_26 {dimension_numbers = #tpu.dot_dimension_numbers<[1], [0], [0], [1], [0, 0, 1, 1], [], []>} : vector<9x9xbf16>, vector<9x8xbf16>, vector<9x8xf32> -> vector<9x8xf32>
    %c0_27 = arith.constant 0 : index
    %c8 = arith.constant 8 : index
    %77 = vector.load %arg15[%c0_27, %c8] : memref<9x32xf32, #tpu.memory_space<vmem>>, vector<9x8xf32>
    tpu.vector_store %arg15[%c0_27, %c8], %76 {strides = array<i32>} : memref<9x32xf32, #tpu.memory_space<vmem>>, vector<9x8xf32>,
    %78 = vector.extract_strided_slice %33 {offsets = [0, 16], sizes = [9, 8], strides = [1, 1]} : vector<9x96xf32> to vector<9x8xf32>
    %79 = vector.extract_strided_slice %33 {offsets = [0, 48], sizes = [9, 8], strides = [1, 1]} : vector<9x96xf32> to vector<9x8xf32>
    %80 = vector.extract_strided_slice %33 {offsets = [0, 80], sizes = [9, 8], strides = [1, 1]} : vector<9x96xf32> to vector<9x8xf32>
    %81 = arith.truncf %78 : vector<9x8xf32> to vector<9x8xbf16>
    %82 = arith.truncf %79 : vector<9x8xf32> to vector<9x8xbf16>
    %cst_28 = arith.constant dense<0.000000e+00> : vector<9x9xf32>
    %83 = tpu.matmul %81, %82, %cst_28 {dimension_numbers = #tpu.dot_dimension_numbers<[1], [1], [0], [0], [0, 0, 1, 0], [], []>} : vector<9x8xbf16>, vector<9x8xbf16>, vector<9x9xf32> -> vector<9x9xf32>
    %cst_29 = arith.constant 0.353553385 : f32
    %84 = vector.broadcast %cst_29 : f32 to vector<9x9xf32>
    %85 = arith.mulf %83, %84 : vector<9x9xf32>
    %cst_30 = arith.constant dense<0xFF800000> : vector<9xf32>
    %86 = vector.multi_reduction <maximumf>, %85, %cst_30 [1] : vector<9x9xf32> to vector<9xf32>
    %87 = vector.shape_cast %86 : vector<9xf32> to vector<9x1xf32>
    %88 = vector.broadcast %87 : vector<9x1xf32> to vector<9x9xf32>
    %89 = arith.subf %85, %88 : vector<9x9xf32>
    %90 = math.exp %89 : vector<9x9xf32>
    %cst_31 = arith.constant dense<0.000000e+00> : vector<9xf32>
    %91 = vector.multi_reduction <add>, %90, %cst_31 [1] : vector<9x9xf32> to vector<9xf32>
    %92 = vector.shape_cast %91 : vector<9xf32> to vector<9x1xf32>
    %93 = tpu.reciprocal %92 {approx = true} : vector<9x1xf32> -> vector<9x1xf32>
    %94 = vector.broadcast %93 : vector<9x1xf32> to vector<9x9xf32>
    %95 = arith.mulf %90, %94 : vector<9x9xf32>
    %96 = arith.truncf %95 : vector<9x9xf32> to vector<9x9xbf16>
    %97 = arith.truncf %80 : vector<9x8xf32> to vector<9x8xbf16>
    %cst_32 = arith.constant dense<0.000000e+00> : vector<9x8xf32>
    %98 = tpu.matmul %96, %97, %cst_32 {dimension_numbers = #tpu.dot_dimension_numbers<[1], [0], [0], [1], [0, 0, 1, 1], [], []>} : vector<9x9xbf16>, vector<9x8xbf16>, vector<9x8xf32> -> vector<9x8xf32>
    %c0_33 = arith.constant 0 : index
    %c16 = arith.constant 16 : index
    %99 = vector.load %arg15[%c0_33, %c16] : memref<9x32xf32, #tpu.memory_space<vmem>>, vector<9x8xf32>
    tpu.vector_store %arg15[%c0_33, %c16], %98 {strides = array<i32>} : memref<9x32xf32, #tpu.memory_space<vmem>>, vector<9x8xf32>,
    %100 = vector.extract_strided_slice %33 {offsets = [0, 24], sizes = [9, 8], strides = [1, 1]} : vector<9x96xf32> to vector<9x8xf32>
    %101 = vector.extract_strided_slice %33 {offsets = [0, 56], sizes = [9, 8], strides = [1, 1]} : vector<9x96xf32> to vector<9x8xf32>
    %102 = vector.extract_strided_slice %33 {offsets = [0, 88], sizes = [9, 8], strides = [1, 1]} : vector<9x96xf32> to vector<9x8xf32>
    %103 = arith.truncf %100 : vector<9x8xf32> to vector<9x8xbf16>
    %104 = arith.truncf %101 : vector<9x8xf32> to vector<9x8xbf16>
    %cst_34 = arith.constant dense<0.000000e+00> : vector<9x9xf32>
    %105 = tpu.matmul %103, %104, %cst_34 {dimension_numbers = #tpu.dot_dimension_numbers<[1], [1], [0], [0], [0, 0, 1, 0], [], []>} : vector<9x8xbf16>, vector<9x8xbf16>, vector<9x9xf32> -> vector<9x9xf32>
    %cst_35 = arith.constant 0.353553385 : f32
    %106 = vector.broadcast %cst_35 : f32 to vector<9x9xf32>
    %107 = arith.mulf %105, %106 : vector<9x9xf32>
    %cst_36 = arith.constant dense<0xFF800000> : vector<9xf32>
    %108 = vector.multi_reduction <maximumf>, %107, %cst_36 [1] : vector<9x9xf32> to vector<9xf32>
    %109 = vector.shape_cast %108 : vector<9xf32> to vector<9x1xf32>
    %110 = vector.broadcast %109 : vector<9x1xf32> to vector<9x9xf32>
    %111 = arith.subf %107, %110 : vector<9x9xf32>
    %112 = math.exp %111 : vector<9x9xf32>
    %cst_37 = arith.constant dense<0.000000e+00> : vector<9xf32>
    %113 = vector.multi_reduction <add>, %112, %cst_37 [1] : vector<9x9xf32> to vector<9xf32>
    %114 = vector.shape_cast %113 : vector<9xf32> to vector<9x1xf32>
    %115 = tpu.reciprocal %114 {approx = true} : vector<9x1xf32> -> vector<9x1xf32>
    %116 = vector.broadcast %115 : vector<9x1xf32> to vector<9x9xf32>
    %117 = arith.mulf %112, %116 : vector<9x9xf32>
    %118 = arith.truncf %117 : vector<9x9xf32> to vector<9x9xbf16>
    %119 = arith.truncf %102 : vector<9x8xf32> to vector<9x8xbf16>
    %cst_38 = arith.constant dense<0.000000e+00> : vector<9x8xf32>
    %120 = tpu.matmul %118, %119, %cst_38 {dimension_numbers = #tpu.dot_dimension_numbers<[1], [0], [0], [1], [0, 0, 1, 1], [], []>} : vector<9x9xbf16>, vector<9x8xbf16>, vector<9x8xf32> -> vector<9x8xf32>
    %c0_39 = arith.constant 0 : index
    %c24 = arith.constant 24 : index
    %121 = vector.load %arg15[%c0_39, %c24] : memref<9x32xf32, #tpu.memory_space<vmem>>, vector<9x8xf32>
    tpu.vector_store %arg15[%c0_39, %c24], %120 {strides = array<i32>} : memref<9x32xf32, #tpu.memory_space<vmem>>, vector<9x8xf32>,
    %c0_40 = arith.constant 0 : index
    %c0_41 = arith.constant 0 : index
    %122 = vector.load %arg15[%c0_40, %c0_41] : memref<9x32xf32, #tpu.memory_space<vmem>>, vector<9x32xf32>
    %123 = arith.truncf %122 : vector<9x32xf32> to vector<9x32xbf16>
    %c0_42 = arith.constant 0 : index
    %c0_43 = arith.constant 0 : index
    %124 = vector.load %arg6[%c0_42, %c0_43] : memref<32x32xbf16, #tpu.memory_space<vmem>>, vector<32x32xbf16>
    %cst_44 = arith.constant dense<0.000000e+00> : vector<9x32xf32>
    %125 = tpu.matmul %123, %124, %cst_44 {dimension_numbers = #tpu.dot_dimension_numbers<[1], [0], [0], [1], [0, 0, 1, 1], [], []>} : vector<9x32xbf16>, vector<32x32xbf16>, vector<9x32xf32> -> vector<9x32xf32>
    %126 = arith.addf %1, %125 : vector<9x32xf32>
    %c0_45 = arith.constant 0 : index
    %c0_46 = arith.constant 0 : index
    %127 = vector.load %arg7[%c0_45, %c0_46] : memref<1x32xf32, #tpu.memory_space<vmem>>, vector<1x32xf32>
    %128 = vector.broadcast %127 : vector<1x32xf32> to vector<9x32xf32>
    %129 = arith.addf %126, %128 : vector<9x32xf32>
    %cst_47 = arith.constant dense<0.000000e+00> : vector<9xf32>
    %130 = vector.multi_reduction <add>, %129, %cst_47 [1] : vector<9x32xf32> to vector<9xf32>
    %131 = vector.shape_cast %130 : vector<9xf32> to vector<9x1xf32>
    %cst_48 = arith.constant 3.200000e+01 : f32
    %132 = vector.broadcast %cst_48 : f32 to vector<9x1xf32>
    %133 = arith.divf %131, %132 : vector<9x1xf32>
    %134 = vector.broadcast %133 : vector<9x1xf32> to vector<9x32xf32>
    %135 = arith.subf %129, %134 : vector<9x32xf32>
    %136 = vector.broadcast %133 : vector<9x1xf32> to vector<9x32xf32>
    %137 = arith.subf %129, %136 : vector<9x32xf32>
    %138 = arith.mulf %135, %137 : vector<9x32xf32>
    %cst_49 = arith.constant dense<0.000000e+00> : vector<9xf32>
    %139 = vector.multi_reduction <add>, %138, %cst_49 [1] : vector<9x32xf32> to vector<9xf32>
    %140 = vector.shape_cast %139 : vector<9xf32> to vector<9x1xf32>
    %cst_50 = arith.constant 3.200000e+01 : f32
    %141 = vector.broadcast %cst_50 : f32 to vector<9x1xf32>
    %142 = arith.divf %140, %141 : vector<9x1xf32>
    %143 = vector.broadcast %133 : vector<9x1xf32> to vector<9x32xf32>
    %144 = arith.subf %129, %143 : vector<9x32xf32>
    %cst_51 = arith.constant 9.99999974E-6 : f32
    %145 = vector.broadcast %cst_51 : f32 to vector<9x1xf32>
    %146 = arith.addf %142, %145 : vector<9x1xf32>
    %147 = math.rsqrt %146 : vector<9x1xf32>
    %148 = vector.broadcast %147 : vector<9x1xf32> to vector<9x32xf32>
    %149 = arith.mulf %144, %148 : vector<9x32xf32>
    %c0_52 = arith.constant 0 : index
    %c0_53 = arith.constant 0 : index
    %150 = vector.load %arg8[%c0_52, %c0_53] : memref<1x32xf32, #tpu.memory_space<vmem>>, vector<1x32xf32>
    %151 = vector.broadcast %150 : vector<1x32xf32> to vector<9x32xf32>
    %152 = arith.mulf %149, %151 : vector<9x32xf32>
    %c0_54 = arith.constant 0 : index
    %c0_55 = arith.constant 0 : index
    %153 = vector.load %arg9[%c0_54, %c0_55] : memref<1x32xf32, #tpu.memory_space<vmem>>, vector<1x32xf32>
    %154 = vector.broadcast %153 : vector<1x32xf32> to vector<9x32xf32>
    %155 = arith.addf %152, %154 : vector<9x32xf32>
    %156 = arith.truncf %155 : vector<9x32xf32> to vector<9x32xbf16>
    %c0_56 = arith.constant 0 : index
    %c0_57 = arith.constant 0 : index
    %157 = vector.load %arg10[%c0_56, %c0_57] : memref<32x128xbf16, #tpu.memory_space<vmem>>, vector<32x128xbf16>
    %cst_58 = arith.constant dense<0.000000e+00> : vector<9x128xf32>
    %158 = tpu.matmul %156, %157, %cst_58 {dimension_numbers = #tpu.dot_dimension_numbers<[1], [0], [0], [1], [0, 0, 1, 1], [], []>} : vector<9x32xbf16>, vector<32x128xbf16>, vector<9x128xf32> -> vector<9x128xf32>
    %c0_59 = arith.constant 0 : index
    %c0_60 = arith.constant 0 : index
    %159 = vector.load %arg11[%c0_59, %c0_60] : memref<1x128xf32, #tpu.memory_space<vmem>>, vector<1x128xf32>
    %160 = vector.broadcast %159 : vector<1x128xf32> to vector<9x128xf32>
    %161 = arith.addf %158, %160 : vector<9x128xf32>
    %cst_61 = arith.constant 1.702000e+00 : f32
    %162 = vector.broadcast %cst_61 : f32 to vector<9x128xf32>
    %163 = arith.mulf %162, %161 : vector<9x128xf32>
    %164 = arith.negf %163 : vector<9x128xf32>
    %165 = math.exp %164 : vector<9x128xf32>
    %cst_62 = arith.constant 1.000000e+00 : f32
    %166 = vector.broadcast %cst_62 : f32 to vector<9x128xf32>
    %167 = arith.addf %166, %165 : vector<9x128xf32>
    %168 = arith.divf %166, %167 : vector<9x128xf32>
    %169 = arith.mulf %161, %168 : vector<9x128xf32>
    %170 = arith.truncf %169 : vector<9x128xf32> to vector<9x128xbf16>
    %c0_63 = arith.constant 0 : index
    %c0_64 = arith.constant 0 : index
    %171 = vector.load %arg12[%c0_63, %c0_64] : memref<128x32xbf16, #tpu.memory_space<vmem>>, vector<128x32xbf16>
    %cst_65 = arith.constant dense<0.000000e+00> : vector<9x32xf32>
    %172 = tpu.matmul %170, %171, %cst_65 {dimension_numbers = #tpu.dot_dimension_numbers<[1], [0], [0], [1], [0, 0, 1, 1], [], []>} : vector<9x128xbf16>, vector<128x32xbf16>, vector<9x32xf32> -> vector<9x32xf32>
    %173 = arith.addf %129, %172 : vector<9x32xf32>
    %c0_66 = arith.constant 0 : index
    %c0_67 = arith.constant 0 : index
    %174 = vector.load %arg13[%c0_66, %c0_67] : memref<1x32xf32, #tpu.memory_space<vmem>>, vector<1x32xf32>
    %175 = vector.broadcast %174 : vector<1x32xf32> to vector<9x32xf32>
    %176 = arith.addf %173, %175 : vector<9x32xf32>
    %c0_68 = arith.constant 0 : index
    %c0_69 = arith.constant 0 : index
    %c0_70 = arith.constant 0 : index
    %177 = vector.load %arg14[%c0_68, %c0_69, %c0_70] : memref<1x9x32xf32, #tpu.memory_space<vmem>>, vector<1x9x32xf32>
    %178 = vector.shape_cast %177 : vector<1x9x32xf32> to vector<9x32xf32>
    %179 = vector.shape_cast %176 : vector<9x32xf32> to vector<1x9x32xf32>
    tpu.vector_store %arg14[%c0_68, %c0_69, %c0_70], %179 {strides = array<i32>} : memref<1x9x32xf32, #tpu.memory_space<vmem>>, vector<1x9x32xf32>,
    return
  }
  func.func @transform_0(%arg0: i32) -> (i32, i32, i32) {
    %c0_i32 = arith.constant 0 : i32
    %c0_i32_0 = arith.constant 0 : i32
    %c0_i32_1 = arith.constant 0 : i32
    return %arg0, %c0_i32, %c0_i32_0 : i32, i32, i32
  }
  func.func @transform_1(%arg0: i32) -> (i32, i32) {
    %c0_i32 = arith.constant 0 : i32
    %c0_i32_0 = arith.constant 0 : i32
    %c0_i32_1 = arith.constant 0 : i32
    return %c0_i32, %c0_i32_0 : i32, i32
  }
  func.func @transform_2(%arg0: i32) -> (i32, i32) {
    %c0_i32 = arith.constant 0 : i32
    %c0_i32_0 = arith.constant 0 : i32
    %c0_i32_1 = arith.constant 0 : i32
    return %c0_i32, %c0_i32_0 : i32, i32
  }
  func.func @transform_3(%arg0: i32) -> (i32, i32) {
    %c0_i32 = arith.constant 0 : i32
    %c0_i32_0 = arith.constant 0 : i32
    %c0_i32_1 = arith.constant 0 : i32
    return %c0_i32, %c0_i32_0 : i32, i32
  }
  func.func @transform_4(%arg0: i32) -> (i32, i32) {
    %c0_i32 = arith.constant 0 : i32
    %c0_i32_0 = arith.constant 0 : i32
    %c0_i32_1 = arith.constant 0 : i32
    return %c0_i32, %c0_i32_0 : i32, i32
  }
  func.func @transform_5(%arg0: i32) -> (i32, i32) {
    %c0_i32 = arith.constant 0 : i32
    %c0_i32_0 = arith.constant 0 : i32
    %c0_i32_1 = arith.constant 0 : i32
    return %c0_i32, %c0_i32_0 : i32, i32
  }
  func.func @transform_6(%arg0: i32) -> (i32, i32) {
    %c0_i32 = arith.constant 0 : i32
    %c0_i32_0 = arith.constant 0 : i32
    %c0_i32_1 = arith.constant 0 : i32
    return %c0_i32, %c0_i32_0 : i32, i32
  }
  func.func @transform_7(%arg0: i32) -> (i32, i32) {
    %c0_i32 = arith.constant 0 : i32
    %c0_i32_0 = arith.constant 0 : i32
    %c0_i32_1 = arith.constant 0 : i32
    return %c0_i32, %c0_i32_0 : i32, i32
  }
  func.func @transform_8(%arg0: i32) -> (i32, i32) {
    %c0_i32 = arith.constant 0 : i32
    %c0_i32_0 = arith.constant 0 : i32
    %c0_i32_1 = arith.constant 0 : i32
    return %c0_i32, %c0_i32_0 : i32, i32
  }
  func.func @transform_9(%arg0: i32) -> (i32, i32) {
    %c0_i32 = arith.constant 0 : i32
    %c0_i32_0 = arith.constant 0 : i32
    %c0_i32_1 = arith.constant 0 : i32
    return %c0_i32, %c0_i32_0 : i32, i32
  }
  func.func @transform_10(%arg0: i32) -> (i32, i32) {
    %c0_i32 = arith.constant 0 : i32
    %c0_i32_0 = arith.constant 0 : i32
    %c0_i32_1 = arith.constant 0 : i32
    return %c0_i32, %c0_i32_0 : i32, i32
  }
  func.func @transform_11(%arg0: i32) -> (i32, i32) {
    %c0_i32 = arith.constant 0 : i32
    %c0_i32_0 = arith.constant 0 : i32
    %c0_i32_1 = arith.constant 0 : i32
    return %c0_i32, %c0_i32_0 : i32, i32
  }
  func.func @transform_12(%arg0: i32) -> (i32, i32) {
    %c0_i32 = arith.constant 0 : i32
    %c0_i32_0 = arith.constant 0 : i32
    %c0_i32_1 = arith.constant 0 : i32
    return %c0_i32, %c0_i32_0 : i32, i32
  }
  func.func @transform_13(%arg0: i32) -> (i32, i32, i32) {
    %c0_i32 = arith.constant 0 : i32
    %c0_i32_0 = arith.constant 0 : i32
    %c0_i32_1 = arith.constant 0 : i32
    return %arg0, %c0_i32, %c0_i32_0 : i32, i32, i32
  }
}

</mosaic_0001>

<llo_original>
// kernel: fwd.11
$region0: #{fwd.11}
  #allocation0 [shape = 'u32[]', space=smem, size = 0x4, offset = 0x4, fixed_abs, tag = 'smem constant byte address 0x4 - core index']
  #allocation1 [shape = 'u32[144,128]{1,0:T(1,128)}', space=vmem, size = 0x12000, scoped, tag = 'internal scratch']
  %s0 = inlined_call_operand.vmem [shape: f32[10,32], index: 0, kind: input, shape index: {}]
  %s1 = inlined_call_operand.vmem [shape: f32[1,32], index: 1, kind: input, shape index: {}]
  %s2 = inlined_call_operand.vmem [shape: f32[1,32], index: 2, kind: input, shape index: {}]
  %s3 = inlined_call_operand.vmem [shape: f32[10,32], index: 3, kind: output, shape index: {}]
  %s4 = sld [smem:[#allocation0]]
  $region22: #{fwd.11} parent=0
    _
  %s6 = ssub.s32 1, %s4
  %s7 = scalar_select 0, %s6, %s4
  // Predicated region
  $region2: #{fwd.11} parent=0 // pred_check
    _
  $region3: #{fwd.11} parent=0 // pred_check_branch
    %9 = sbr.rel (0) target = $region5
  $region4: #{fwd.11} parent=0 // pred_region
    _
  $region5: #{fwd.11} parent=0 // pred_fallthru
    _
  // Predicated region
  $region6: #{fwd.11} parent=0 // pred_check
    _
  $region7: #{fwd.11} parent=0 // pred_check_branch
    %11 = sbr.rel (0) target = $region9
  $region8: #{fwd.11} parent=0 // pred_region
    _
  $region9: #{fwd.11} parent=0 // pred_fallthru
    _
  // Predicated region
  $region10: #{fwd.11} parent=0 // pred_check
    _
  $region11: #{fwd.11} parent=0 // pred_check_branch
    %13 = sbr.rel (0) target = $region13
  $region12: #{fwd.11} parent=0 // pred_region
    _
  $region13: #{fwd.11} parent=0 // pred_fallthru
    _
  %v14 = vld [vmem:[%s0] sm:$0xff]
  %v15 = vld [vmem:[%s0 + $0x8] sm:$0x3]
  %vm16 = vcmask 261120
  %v17 = vsel %vm16, %v14, 0.0
  %18 = vadd.xlane.f32.xlu0 %v17
  %v19 = vpop.xlane.xlu0 %18
  %vm20 = vcmask 254976
  %v21 = vsel %vm20, %v15, 0.0
  %22 = vadd.xlane.f32.xlu0 %v21
  %v23 = vpop.xlane.xlu0 %22
  %v24 = vrcp.pop 32.0
  %v25 = vmul.f32 %v19, %v24
  %v26 = vmul.f32 %v23, %v24
  %v27 = vsub.f32 %v14, %v25
  %v28 = vsub.f32 %v15, %v26
  %v29 = vmul.f32 %v27, %v27
  %v30 = vmul.f32 %v28, %v28
  %v31 = vsel %vm16, %v29, 0.0
  %32 = vadd.xlane.f32.xlu0 %v31
  %v33 = vpop.xlane.xlu0 %32
  %v34 = vsel %vm20, %v30, 0.0
  %35 = vadd.xlane.f32.xlu0 %v34
  %v36 = vpop.xlane.xlu0 %35
  %v37 = vmul.f32 %v33, %v24
  %v38 = vmul.f32 %v36, %v24
  %v39 = vadd.f32 %v37, 1e-05
  %v40 = vadd.f32 %v38, 1e-05
  %v41 = vrsqrt.pop %v39
  %v42 = vrsqrt.pop %v40
  %v43 = vmul.f32 %v27, %v41
  %v44 = vmul.f32 %v28, %v42
  %v45 = vld [vmem:[%s1] sm:$0x1]
  %v47 = vlaneseq
  %v48 = vshrl.u32 %v47, 7
  %v49 = vsub.s32 0, %v48
  %v50 = vrot.slane %v45, %v49
  %v52 = vmul.f32 %v43, %v50
  %v53 = vmul.f32 %v44, %v50
  %v54 = vld [vmem:[%s2] sm:$0x1]
  %v56 = vlaneseq
  %v57 = vshrl.u32 %v56, 7
  %v58 = vsub.s32 0, %v57
  %v59 = vrot.slane %v54, %v58
  %v61 = vadd.f32 %v52, %v59
  %v62 = vadd.f32 %v53, %v59
  %63 = vst.msk [vmem:[%s3] sm:$0xff] %vm16, %v61
  %64 = vst.msk [vmem:[%s3 + $0x8] sm:$0x3] %vm20, %v62
  // Predicated region
  $region14: #{fwd.11} parent=0 // pred_check
    _
  $region15: #{fwd.11} parent=0 // pred_check_branch
    %66 = sbr.rel (0) target = $region17
  $region16: #{fwd.11} parent=0 // pred_region
    _
  $region17: #{fwd.11} parent=0 // pred_fallthru
    _
  // Predicated region
  $region18: #{fwd.11} parent=0 // pred_check
    _
  $region19: #{fwd.11} parent=0 // pred_check_branch
    %68 = sbr.rel (0) target = $region21
  $region20: #{fwd.11} parent=0 // pred_region
    _
  $region21: #{fwd.11} parent=0 // pred_fallthru
    _

// kernel: fwd.10
$region0: #{fwd.10}
  #allocation0 [shape = 'u32[]', space=smem, size = 0x4, offset = 0x4, fixed_abs, tag = 'smem constant byte address 0x4 - core index']
  #allocation1 [shape = 'u32[144,128]{1,0:T(1,128)}', space=vmem, size = 0x12000, scoped, tag = 'internal scratch']
  #allocation2 [shape = 'f32[8,32]{1,0:T(8,128)}', space=vmem, size = 0x1000, scoped, tag = 'scratch operand']
  %s0 = inlined_call_operand.vmem [shape: f32[8,192], index: 0, kind: input, shape index: {}]
  %s1 = inlined_call_operand.vmem [shape: bf16[192,32], index: 1, kind: input, shape index: {}]
  %s2 = inlined_call_operand.vmem [shape: f32[8,32], index: 2, kind: output, shape index: {}]
  %s3 = sld [smem:[#allocation0]]
  $region26: #{fwd.10} parent=0
    _
  %s5 = ssub.s32 1, %s3
  %s6 = scalar_select 0, %s5, %s3
  // Predicated region
  $region2: #{fwd.10} parent=0 // pred_check
    _
  $region3: #{fwd.10} parent=0 // pred_check_branch
    %8 = sbr.rel (0) target = $region5
  $region4: #{fwd.10} parent=0 // pred_region
    _
  $region5: #{fwd.10} parent=0 // pred_fallthru
    _
  // Predicated region
  $region6: #{fwd.10} parent=0 // pred_check
    _
  $region7: #{fwd.10} parent=0 // pred_check_branch
    %10 = sbr.rel (0) target = $region9
  $region8: #{fwd.10} parent=0 // pred_region
    _
  $region9: #{fwd.10} parent=0 // pred_fallthru
    _
  %v12 = vld [vmem:[%s0] sm:$0xff]
  %v13 = vld [vmem:[%s0 + $0x8] sm:$0xff]
  %v14 = vpack.c.bf16 %v12, %v12
  %v15 = vpack.c.bf16 %v13, %v13
  %p16 = scmp.eq.s32.totalorder 0, 0
  // Predicated region
  $region10: #{fwd.10} parent=0 // pred_check
    %p17 = pneg %p16
  $region11: #{fwd.10} parent=0 // pred_check_branch
    %19 = sbr.rel (%p17) target = $region13
  $region12: #{fwd.10} parent=0 // pred_region
    %vm20 = vcmask 261120
    %21 = vst.msk [vmem:[#allocation2] sm:$0xff] %vm20, 0.0
  $region13: #{fwd.10} parent=0 // pred_fallthru
    _
  %v22 = vld [vmem:[#allocation2] sm:$0xff]
  %v23 = vld [vmem:[%s1] sm:$0xf]
  %v24 = vld [vmem:[%s1 + $0x4] sm:$0xf]
  %v25 = vld [vmem:[%s1 + $0x8] sm:$0xf]
  %v26 = vld [vmem:[%s1 + $0xc] sm:$0xf]
  %v27 = vld [vmem:[%s1 + $0x10] sm:$0xf]
  %v28 = vld [vmem:[%s1 + $0x14] sm:$0xf]
  %v29 = vld [vmem:[%s1 + $0x18] sm:$0xf]
  %v30 = vld [vmem:[%s1 + $0x1c] sm:$0xf]
  %v31 = vld [vmem:[%s1 + $0x20] sm:$0xf]
  %v32 = vld [vmem:[%s1 + $0x24] sm:$0xf]
  %v33 = vld [vmem:[%s1 + $0x28] sm:$0xf]
  %v34 = vld [vmem:[%s1 + $0x2c] sm:$0xf]
  %v35 = vld [vmem:[%s1 + $0x30] sm:$0xf]
  %v36 = vld [vmem:[%s1 + $0x34] sm:$0xf]
  %v37 = vld [vmem:[%s1 + $0x38] sm:$0xf]
  %v38 = vld [vmem:[%s1 + $0x3c] sm:$0xf]
  %v39 = vld [vmem:[%s1 + $0x40] sm:$0xf]
  %v40 = vld [vmem:[%s1 + $0x44] sm:$0xf]
  %v41 = vld [vmem:[%s1 + $0x48] sm:$0xf]
  %v42 = vld [vmem:[%s1 + $0x4c] sm:$0xf]
  %v43 = vld [vmem:[%s1 + $0x50] sm:$0xf]
  %v44 = vld [vmem:[%s1 + $0x54] sm:$0xf]
  %v45 = vld [vmem:[%s1 + $0x58] sm:$0xf]
  %v46 = vld [vmem:[%s1 + $0x5c] sm:$0xf]
  %v71 = vunpack.c.l.b16 %v23
  %v72 = vunpack.c.l.b16 %v24
  %v73 = vunpack.c.l.b16 %v25
  %v74 = vunpack.c.l.b16 %v26
  %v75 = vunpack.c.l.b16 %v27
  %v76 = vunpack.c.l.b16 %v28
  %v77 = vunpack.c.l.b16 %v29
  %v78 = vunpack.c.l.b16 %v30
  %v79 = vunpack.c.l.b16 %v31
  %v80 = vunpack.c.l.b16 %v32
  %v81 = vunpack.c.l.b16 %v33
  %v82 = vunpack.c.l.b16 %v34
  %v83 = vunpack.c.l.b16 %v35
  %v84 = vunpack.c.l.b16 %v36
  %v85 = vunpack.c.l.b16 %v37
  %v86 = vunpack.c.l.b16 %v38
  %v87 = vunpack.c.l.b16 %v39
  %v88 = vunpack.c.l.b16 %v40
  %v89 = vunpack.c.l.b16 %v41
  %v90 = vunpack.c.l.b16 %v42
  %v91 = vunpack.c.l.b16 %v43
  %v92 = vunpack.c.l.b16 %v44
  %v93 = vunpack.c.l.b16 %v45
  %v94 = vunpack.c.l.b16 %v46
  %v95 = vpack.c.b16 %v72, %v71
  %v96 = vpack.c.b16 %v74, %v73
  %v97 = vpack.c.b16 %v76, %v75
  %v98 = vpack.c.b16 %v78, %v77
  %v99 = vpack.c.b16 %v80, %v79
  %v100 = vpack.c.b16 %v82, %v81
  %v101 = vpack.c.b16 %v84, %v83
  %v102 = vpack.c.b16 %v86, %v85
  %v103 = vpack.c.b16 %v88, %v87
  %v104 = vpack.c.b16 %v90, %v89
  %v105 = vpack.c.b16 %v92, %v91
  %v106 = vpack.c.b16 %v94, %v93
  %vm119 = vcmask 523264
  %v121 = vsel %vm119, %v15, 0
  %123 = vmatprep.subr.bf16.mxu0 0
  %124 = vmatpush1.bf16.msra.mxu0 %v95
  %125 = vmatprep.subr.bf16.mxu0 0
  %126 = vmatpush1.bf16.msra.mxu0 %v96
  %127 = vmatprep.subr.bf16.mxu0 0
  %128 = vmatpush1.bf16.msra.mxu0 %v97
  %129 = vmatprep.subr.bf16.mxu0 0
  %130 = vmatpush1.bf16.msra.mxu0 %v98
  %131 = vmatprep.subr.bf16.mxu0 0
  %132 = vmatpush1.bf16.msra.mxu0 %v99
  %133 = vmatprep.subr.bf16.mxu0 0
  %134 = vmatpush1.bf16.msra.mxu0 %v100
  %135 = vmatprep.subr.bf16.mxu0 0
  %136 = vmatpush1.bf16.msra.mxu0 %v101
  %137 = vmatprep.subr.bf16.mxu0 0
  %138 = vmatpush1.bf16.msra.mxu0 %v102
  %139 = vmatprep.subr.bf16.mxu0 0
  %140 = vmatpush1.bf16.msra.mxu0 %v103
  %141 = vmatprep.subr.bf16.mxu0 0
  %142 = vmatpush1.bf16.msra.mxu0 %v104
  %143 = vmatprep.subr.bf16.mxu0 0
  %144 = vmatpush1.bf16.msra.mxu0 %v105
  %145 = vmatprep.subr.bf16.mxu0 0
  %146 = vmatpush1.bf16.msra.mxu0 %v106
  %147 = vmatprep.subr.bf16.mxu0 0
  %148 = vmatpush1.bf16.msra.mxu0 0
  %149 = vmatprep.subr.bf16.mxu0 0
  %150 = vmatpush1.bf16.msra.mxu0 0
  %151 = vmatprep.subr.bf16.mxu0 0
  %152 = vmatpush1.bf16.msra.mxu0 0
  %153 = vmatprep.subr.bf16.mxu0 0
  %154 = vmatpush1.bf16.msra.mxu0 0
  %155 = vmatprep.mubr.bf16.mxu0 %v121
  %156 = vmatmul.mubr.bf16.gmra.mrb[0].mxu0 %v14
  %v157 = vpop.f32.mrb[0].mxu0
  %v158 = vadd.f32 0.0, %v157
  %v159 = vpop.f32.mrb[0].mxu0
  %v160 = vpop.f32.mrb[0].mxu0
  %v161 = vpop.f32.mrb[0].mxu0
  %162 = vdwg.mxu0
  %v163 = vadd.f32 %v22, %v158
  %vm164 = vcmask 261120
  %165 = vst.msk [vmem:[#allocation2] sm:$0xff] %vm164, %v163
  // Predicated region
  $region14: #{fwd.10} parent=0 // pred_check
    %p166 = pneg %p16
  $region15: #{fwd.10} parent=0 // pred_check_branch
    %168 = sbr.rel (%p166) target = $region17
  $region16: #{fwd.10} parent=0 // pred_region
    %v169 = vld [vmem:[#allocation2] sm:$0xff]
    %170 = vst.msk [vmem:[%s2] sm:$0xff] %vm164, %v169
  $region17: #{fwd.10} parent=0 // pred_fallthru
    _
  // Predicated region
  $region18: #{fwd.10} parent=0 // pred_check
    _
  $region19: #{fwd.10} parent=0 // pred_check_branch
    %172 = sbr.rel (0) target = $region21
  $region20: #{fwd.10} parent=0 // pred_region
    _
  $region21: #{fwd.10} parent=0 // pred_fallthru
    _
  // Predicated region
  $region22: #{fwd.10} parent=0 // pred_check
    _
  $region23: #{fwd.10} parent=0 // pred_check_branch
    %174 = sbr.rel (0) target = $region25
  $region24: #{fwd.10} parent=0 // pred_region
    _
  $region25: #{fwd.10} parent=0 // pred_fallthru
    _

// kernel: fwd.14
$region0: #{fwd.14}
  #allocation0 [shape = 'u32[]', space=smem, size = 0x4, offset = 0x4, fixed_abs, tag = 'smem constant byte address 0x4 - core index']
  #allocation1 [shape = 'u32[144,128]{1,0:T(1,128)}', space=vmem, size = 0x12000, scoped, tag = 'internal scratch']
  #allocation2 [shape = 'f32[2,128]{1,0:T(2,128)}', space=vmem, size = 0x400, scoped, tag = 'scratch operand']
  #allocation3 [shape = 'bf16[2,32]{1,0:T(2,128)(2,1)}', space=vmem, size = 0x200, scoped, tag = 'scratch operand']
  %s0 = inlined_call_operand.vmem [shape: f32[2,32], index: 0, kind: input, shape index: {}]
  %s1 = inlined_call_operand.vmem [shape: bf16[32,128], index: 1, kind: input, shape index: {}]
  %s2 = inlined_call_operand.vmem [shape: f32[1,32], index: 2, kind: input, shape index: {}]
  %s3 = inlined_call_operand.vmem [shape: f32[1,32], index: 3, kind: input, shape index: {}]
  %s4 = inlined_call_operand.hbm [shape: f32[2,128], index: 4, kind: output, shape index: {}]
  %s5 = sld [smem:[#allocation0]]
  $region38: #{fwd.14} parent=0
    _
  %s7 = ssub.s32 1, %s5
  %s8 = scalar_select 0, %s7, %s5
  $region1: #{fwd.14} parent=0
    #allocation4 [shape = 'u8[1024]{0}', space=vmem, size = 0x400, scoped, tag = 'output window, operand 0, single buffered']
    #allocation5 [shape = 's32[1]{0}', space=sflag, size = 0x4, scoped, tag = 'scoped memory for fwd.14']
    %9 = vsyncpa [#allocation5], 0
    // Predicated region
    $region2: #{fwd.14} parent=1 // pred_check
      _
    $region3: #{fwd.14} parent=1 // pred_check_branch
      %11 = sbr.rel (0) target = $region5
    $region4: #{fwd.14} parent=1 // pred_region
      _
    $region5: #{fwd.14} parent=1 // pred_fallthru
      _
    // Predicated region
    $region6: #{fwd.14} parent=1 // pred_check
      _
    $region7: #{fwd.14} parent=1 // pred_check_branch
      %13 = sbr.rel (0) target = $region9
    $region8: #{fwd.14} parent=1 // pred_region
      _
    $region9: #{fwd.14} parent=1 // pred_fallthru
      _
    // Predicated region
    $region10: #{fwd.14} parent=1 // pred_check
      _
    $region11: #{fwd.14} parent=1 // pred_check_branch
      %15 = sbr.rel (0) target = $region13
    $region12: #{fwd.14} parent=1 // pred_region
      _
    $region13: #{fwd.14} parent=1 // pred_fallthru
      _
    // Predicated region
    $region14: #{fwd.14} parent=1 // pred_check
      _
    $region15: #{fwd.14} parent=1 // pred_check_branch
      %17 = sbr.rel (0) target = $region17
    $region16: #{fwd.14} parent=1 // pred_region
      _
    $region17: #{fwd.14} parent=1 // pred_fallthru
      _
    %p19 = scmp.eq.s32.totalorder 0, 0
    %p20 = scmp.eq.s32.totalorder 0, 0
    %p21 = pnand %p19, %p20
    %p22 = pneg %p21
    // Predicated region
    $region18: #{fwd.14} parent=1 // pred_check
      _
    $region19: #{fwd.14} parent=1 // pred_check_branch
      %24 = sbr.rel (%p21) target = $region21
    $region20: #{fwd.14} parent=1 // pred_region
      %v25 = vld [vmem:[%s0] sm:$0x3]
      %vm26 = vcmask 254976
      %v27 = vsel %vm26, %v25, 0.0
      %28 = vadd.xlane.f32.xlu0 %v27
      %v29 = vpop.xlane.xlu0 %28
      %v30 = vrcp.pop 32.0
      %v31 = vmul.f32 %v29, %v30
      %v32 = vsub.f32 %v25, %v31
      %v33 = vmul.f32 %v32, %v32
      %v34 = vsel %vm26, %v33, 0.0
      %35 = vadd.xlane.f32.xlu0 %v34
      %v36 = vpop.xlane.xlu0 %35
      %v37 = vmul.f32 %v36, %v30
      %v38 = vadd.f32 %v37, 1e-05
      %v39 = vrsqrt.pop %v38
      %v40 = vmul.f32 %v32, %v39
      %v41 = vld [vmem:[%s2] sm:$0x1]
      %v43 = vlaneseq
      %v44 = vshrl.u32 %v43, 7
      %v45 = vsub.s32 0, %v44
      %v46 = vrot.slane %v41, %v45
      %v48 = vmul.f32 %v40, %v46
      %v49 = vld [vmem:[%s3] sm:$0x1]
      %v51 = vlaneseq
      %v52 = vshrl.u32 %v51, 7
      %v53 = vsub.s32 0, %v52
      %v54 = vrot.slane %v49, %v53
      %v56 = vadd.f32 %v48, %v54
      %v57 = vpack.c.bf16 %v56, %v56
      %vm58 = vcmask 253952
      %59 = vst.msk [vmem:[#allocation3] sm:$0x1] %vm58, %v57
    $region21: #{fwd.14} parent=1 // pred_fallthru
      _
    %v60 = vld [vmem:[#allocation3] sm:$0x1]
    // Predicated region
    $region22: #{fwd.14} parent=1 // pred_check
      %p61 = pneg %p20
    $region23: #{fwd.14} parent=1 // pred_check_branch
      %63 = sbr.rel (%p61) target = $region25
    $region24: #{fwd.14} parent=1 // pred_region
      %64 = vst [vmem:[#allocation2] sm:$0x3] 0.0
    $region25: #{fwd.14} parent=1 // pred_fallthru
      _
    %v65 = vld [vmem:[#allocation2] sm:$0x3]
    %v66 = vld [vmem:[%s1] sm:$0xf]
    %v67 = vld [vmem:[%s1 + $0x4] sm:$0xf]
    %v68 = vld [vmem:[%s1 + $0x8] sm:$0xf]
    %v69 = vld [vmem:[%s1 + $0xc] sm:$0xf]
    %v74 = vunpack.c.l.b16 %v66
    %v75 = vunpack.c.l.b16 %v67
    %v76 = vunpack.c.l.b16 %v68
    %v77 = vunpack.c.l.b16 %v69
    %v78 = vpack.c.b16 %v75, %v74
    %v79 = vpack.c.b16 %v77, %v76
    %vm82 = vcmask 261120
    %v84 = vsel %vm82, %v60, 0
    %86 = vmatprep.subr.bf16.mxu0 0
    %87 = vmatpush1.bf16.msra.mxu0 %v78
    %88 = vmatprep.subr.bf16.mxu0 0
    %89 = vmatpush1.bf16.msra.mxu0 %v79
    %90 = vmatprep.subr.bf16.mxu0 0
    %91 = vmatpush1.bf16.msra.mxu0 0
    %92 = vmatprep.subr.bf16.mxu0 0
    %93 = vmatpush1.bf16.msra.mxu0 0
    %94 = vmatprep.subr.bf16.mxu0 0
    %95 = vmatpush1.bf16.msra.mxu0 0
    %96 = vmatprep.subr.bf16.mxu0 0
    %97 = vmatpush1.bf16.msra.mxu0 0
    %98 = vmatprep.subr.bf16.mxu0 0
    %99 = vmatpush1.bf16.msra.mxu0 0
    %100 = vmatprep.subr.bf16.mxu0 0
    %101 = vmatpush1.bf16.msra.mxu0 0
    %102 = vmatprep.subr.bf16.mxu0 0
    %103 = vmatpush1.bf16.msra.mxu0 0
    %104 = vmatprep.subr.bf16.mxu0 0
    %105 = vmatpush1.bf16.msra.mxu0 0
    %106 = vmatprep.subr.bf16.mxu0 0
    %107 = vmatpush1.bf16.msra.mxu0 0
    %108 = vmatprep.subr.bf16.mxu0 0
    %109 = vmatpush1.bf16.msra.mxu0 0
    %110 = vmatprep.subr.bf16.mxu0 0
    %111 = vmatpush1.bf16.msra.mxu0 0
    %112 = vmatprep.subr.bf16.mxu0 0
    %113 = vmatpush1.bf16.msra.mxu0 0
    %114 = vmatprep.subr.bf16.mxu0 0
    %115 = vmatpush1.bf16.msra.mxu0 0
    %116 = vmatprep.subr.bf16.mxu0 0
    %117 = vmatpush1.bf16.msra.mxu0 0
    %118 = vmatprep.mubr.bf16.mxu0 0
    %119 = vmatmul.mubr.bf16.gmra.mrb[0].mxu0 %v84
    %v120 = vpop.f32.mrb[0].mxu0
    %v121 = vadd.f32 0.0, %v120
    %v122 = vpop.f32.mrb[0].mxu0
    %v123 = vpop.f32.mrb[0].mxu0
    %v124 = vpop.f32.mrb[0].mxu0
    %125 = vdwg.mxu0
    %v126 = vadd.f32 %v65, %v121
    %127 = vst [vmem:[#allocation2] sm:$0x3] %v126
    // Predicated region
    $region26: #{fwd.14} parent=1 // pred_check
      %p128 = pneg %p20
    $region27: #{fwd.14} parent=1 // pred_check_branch
      %130 = sbr.rel (%p128) target = $region29
    $region28: #{fwd.14} parent=1 // pred_region
      %v131 = vld [vmem:[#allocation2] sm:$0x3]
      %132 = vst [vmem:[#allocation4] sm:$0x3] %v131
    $region29: #{fwd.14} parent=1 // pred_fallthru
      _
    // Predicated region
    $region30: #{fwd.14} parent=1 // pred_check
      _
    $region31: #{fwd.14} parent=1 // pred_check_branch
      %134 = sbr.rel (0) target = $region33
    $region32: #{fwd.14} parent=1 // pred_region
      %s136 = ssub.s32 32, 32
      %137 = vsyncadd [#allocation5], %s136
      %s139 = sshll.u32 [#allocation4], 4
      %s140 = int_to_ptr.vmem [resolvable:$true] %s139
      %142 = dma.vmem_to_hbm [thread:$0]  %s140, 32, %s4, [#allocation5]
    $region33: #{fwd.14} parent=1 // pred_fallthru
      _
    // Predicated region
    $region34: #{fwd.14} parent=1 // pred_check
      _
    $region35: #{fwd.14} parent=1 // pred_check_branch
      %144 = sbr.rel (0) target = $region37
    $region36: #{fwd.14} parent=1 // pred_region
      %145 = dma.done [#allocation5], 32
    $region37: #{fwd.14} parent=1 // pred_fallthru
      _
    %146 = vsyncpa [#allocation5], 1

// kernel: fwd.12
$region0: #{fwd.12}
  #allocation0 [shape = 'u32[]', space=smem, size = 0x4, offset = 0x4, fixed_abs, tag = 'smem constant byte address 0x4 - core index']
  #allocation1 [shape = 'u32[144,128]{1,0:T(1,128)}', space=vmem, size = 0x12000, scoped, tag = 'internal scratch']
  #allocation2 [shape = 'f32[5,32]{1,0:T(8,128)}', space=vmem, size = 0x1000, scoped, tag = 'scratch operand']
  %s0 = inlined_call_operand.vmem [shape: f32[2,5,32], index: 0, kind: input, shape index: {}]
  %s1 = inlined_call_operand.vmem [shape: f32[1,32], index: 1, kind: input, shape index: {}]
  %s2 = inlined_call_operand.vmem [shape: f32[1,32], index: 2, kind: input, shape index: {}]
  %s3 = inlined_call_operand.vmem [shape: bf16[32,96], index: 3, kind: input, shape index: {}]
  %s4 = inlined_call_operand.vmem [shape: f32[1,96], index: 4, kind: input, shape index: {}]
  %s5 = inlined_call_operand.vmem [shape: bf16[32,32], index: 5, kind: input, shape index: {}]
  %s6 = inlined_call_operand.vmem [shape: f32[1,32], index: 6, kind: input, shape index: {}]
  %s7 = inlined_call_operand.vmem [shape: f32[1,32], index: 7, kind: input, shape index: {}]
  %s8 = inlined_call_operand.vmem [shape: f32[1,32], index: 8, kind: input, shape index: {}]
  %s9 = inlined_call_operand.vmem [shape: bf16[32,128], index: 9, kind: input, shape index: {}]
  %s10 = inlined_call_operand.vmem [shape: f32[1,128], index: 10, kind: input, shape index: {}]
  %s11 = inlined_call_operand.vmem [shape: bf16[128,32], index: 11, kind: input, shape index: {}]
  %s12 = inlined_call_operand.vmem [shape: f32[1,32], index: 12, kind: input, shape index: {}]
  %s13 = inlined_call_operand.vmem [shape: f32[2,5,32], index: 13, kind: output, shape index: {}]
  %s14 = sld [smem:[#allocation0]]
  $region85: #{fwd.12} parent=0
    _
  %s16 = ssub.s32 1, %s14
  %s17 = scalar_select 0, %s16, %s14
  loop: start=0, step=1, limit=4
  $region2: #{fwd.12} parent=0 // loop_pre_header
    _
  $region3: #{fwd.12} parent=0 // loop_header
    %s19 = sphi 0, %s23
    %p20 = scmp.ge.s32.totalorder %s19, 4
    %s29 = sphi 0, %s31
    %s32 = sphi 0, %s29
    %s33 = sphi 0, %s32
    %s49 = sphi 0, %s33
    %s53 = sphi 0, %s53
    %s55 = sphi 0, %s53
    %s56 = sphi 0, %s55
    %s70 = sphi 0, %s56
    %s74 = sphi 0, %s74
    %s76 = sphi 0, %s74
    %s77 = sphi 0, %s76
    %s91 = sphi 0, %s77
    %s95 = sphi 0, %s95
    %s97 = sphi 0, %s95
    %s98 = sphi 0, %s97
    %s112 = sphi 0, %s98
    %s116 = sphi 0, %s116
    %s118 = sphi 0, %s116
    %s119 = sphi 0, %s118
    %s133 = sphi 0, %s119
    %s137 = sphi 0, %s137
    %s139 = sphi 0, %s137
    %s140 = sphi 0, %s139
    %s154 = sphi 0, %s140
    %s158 = sphi 0, %s158
    %s160 = sphi 0, %s158
    %s161 = sphi 0, %s160
    %s175 = sphi 0, %s161
    %s179 = sphi 0, %s179
    %s181 = sphi 0, %s179
    %s182 = sphi 0, %s181
    %s196 = sphi 0, %s182
    %s200 = sphi 0, %s200
    %s202 = sphi 0, %s200
    %s203 = sphi 0, %s202
    %s217 = sphi 0, %s203
    %s221 = sphi 0, %s221
    %s223 = sphi 0, %s221
    %s224 = sphi 0, %s223
    %s238 = sphi 0, %s224
    %s242 = sphi 0, %s242
    %s244 = sphi 0, %s242
    %s245 = sphi 0, %s244
    %s259 = sphi 0, %s245
    %s263 = sphi 0, %s263
    %s265 = sphi 0, %s263
    %s266 = sphi 0, %s265
    %s280 = sphi 0, %s266
    %s284 = sphi 0, %s284
    %s286 = sphi 0, %s284
    %s287 = sphi 0, %s286
    %s301 = sphi 0, %s287
    %s307 = sphi 0, %s309
    %s310 = sphi 0, %s307
    %s311 = sphi 0, %s310
    %s327 = sphi 0, %s311
  $region4: #{fwd.12} parent=0 // loop_header_branch
    %22 = sbr.rel (%p20) target = $region8
  $region5: #{fwd.12} parent=0 // loop_body
    %s24 = ssub.s32 %s19, 1
    %s25 = ssub.s32 %s19, 2
    %s26 = sadd.s32 %s19, 1
    %s27 = ssub.s32 %s19, %s26
    %p28 = scmp.eq.s32.totalorder %s27, 0
    %s30 = sadd.s32 %s29, 1
    %s31 = scalar_select %p28, %s29, %s30
    %p34 = pneg %p28
    %p35 = scmp.eq.s32.totalorder %s19, 1
    %p36 = por %p34, %p35
    %p37 = scmp.ne.s32.totalorder %s29, %s32
    %p38 = scmp.eq.s32.totalorder %s19, 0
    %p39 = por %p37, %p38
    %p40 = scmp.ne.s32.totalorder %s29, %s32
    %p41 = scmp.eq.s32.totalorder %s24, 1
    %p42 = por %p40, %p41
    %p43 = scmp.ne.s32.totalorder %s32, %s33
    %p44 = scmp.eq.s32.totalorder %s24, 0
    %p45 = por %p43, %p44
    %p46 = scmp.ne.s32.totalorder %s32, %s33
    %p47 = scmp.eq.s32.totalorder %s25, 1
    %p48 = por %p46, %p47
    %p50 = scmp.ne.s32.totalorder %s33, %s49
    %p51 = scmp.eq.s32.totalorder %s25, 0
    %p52 = por %p50, %p51
    %s54 = sadd.s32 %s53, 1
    %p57 = scmp.eq.s32.totalorder %s19, 1
    %p58 = scmp.ne.s32.totalorder %s53, %s55
    %p59 = scmp.eq.s32.totalorder %s19, 0
    %p60 = por %p58, %p59
    %p61 = scmp.ne.s32.totalorder %s53, %s55
    %p62 = scmp.eq.s32.totalorder %s24, 1
    %p63 = por %p61, %p62
    %p64 = scmp.ne.s32.totalorder %s55, %s56
    %p65 = scmp.eq.s32.totalorder %s24, 0
    %p66 = por %p64, %p65
    %p67 = scmp.ne.s32.totalorder %s55, %s56
    %p68 = scmp.eq.s32.totalorder %s25, 1
    %p69 = por %p67, %p68
    %p71 = scmp.ne.s32.totalorder %s56, %s70
    %p72 = scmp.eq.s32.totalorder %s25, 0
    %p73 = por %p71, %p72
    %s75 = sadd.s32 %s74, 1
    %p78 = scmp.eq.s32.totalorder %s19, 1
    %p79 = scmp.ne.s32.totalorder %s74, %s76
    %p80 = scmp.eq.s32.totalorder %s19, 0
    %p81 = por %p79, %p80
    %p82 = scmp.ne.s32.totalorder %s74, %s76
    %p83 = scmp.eq.s32.totalorder %s24, 1
    %p84 = por %p82, %p83
    %p85 = scmp.ne.s32.totalorder %s76, %s77
    %p86 = scmp.eq.s32.totalorder %s24, 0
    %p87 = por %p85, %p86
    %p88 = scmp.ne.s32.totalorder %s76, %s77
    %p89 = scmp.eq.s32.totalorder %s25, 1
    %p90 = por %p88, %p89
    %p92 = scmp.ne.s32.totalorder %s77, %s91
    %p93 = scmp.eq.s32.totalorder %s25, 0
    %p94 = por %p92, %p93
    %s96 = sadd.s32 %s95, 1
    %p99 = scmp.eq.s32.totalorder %s19, 1
    %p100 = scmp.ne.s32.totalorder %s95, %s97
    %p101 = scmp.eq.s32.totalorder %s19, 0
    %p102 = por %p100, %p101
    %p103 = scmp.ne.s32.totalorder %s95, %s97
    %p104 = scmp.eq.s32.totalorder %s24, 1
    %p105 = por %p103, %p104
    %p106 = scmp.ne.s32.totalorder %s97, %s98
    %p107 = scmp.eq.s32.totalorder %s24, 0
    %p108 = por %p106, %p107
    %p109 = scmp.ne.s32.totalorder %s97, %s98
    %p110 = scmp.eq.s32.totalorder %s25, 1
    %p111 = por %p109, %p110
    %p113 = scmp.ne.s32.totalorder %s98, %s112
    %p114 = scmp.eq.s32.totalorder %s25, 0
    %p115 = por %p113, %p114
    %s117 = sadd.s32 %s116, 1
    %p120 = scmp.eq.s32.totalorder %s19, 1
    %p121 = scmp.ne.s32.totalorder %s116, %s118
    %p122 = scmp.eq.s32.totalorder %s19, 0
    %p123 = por %p121, %p122
    %p124 = scmp.ne.s32.totalorder %s116, %s118
    %p125 = scmp.eq.s32.totalorder %s24, 1
    %p126 = por %p124, %p125
    %p127 = scmp.ne.s32.totalorder %s118, %s119
    %p128 = scmp.eq.s32.totalorder %s24, 0
    %p129 = por %p127, %p128
    %p130 = scmp.ne.s32.totalorder %s118, %s119
    %p131 = scmp.eq.s32.totalorder %s25, 1
    %p132 = por %p130, %p131
    %p134 = scmp.ne.s32.totalorder %s119, %s133
    %p135 = scmp.eq.s32.totalorder %s25, 0
    %p136 = por %p134, %p135
    %s138 = sadd.s32 %s137, 1
    %p141 = scmp.eq.s32.totalorder %s19, 1
    %p142 = scmp.ne.s32.totalorder %s137, %s139
    %p143 = scmp.eq.s32.totalorder %s19, 0
    %p144 = por %p142, %p143
    %p145 = scmp.ne.s32.totalorder %s137, %s139
    %p146 = scmp.eq.s32.totalorder %s24, 1
    %p147 = por %p145, %p146
    %p148 = scmp.ne.s32.totalorder %s139, %s140
    %p149 = scmp.eq.s32.totalorder %s24, 0
    %p150 = por %p148, %p149
    %p151 = scmp.ne.s32.totalorder %s139, %s140
    %p152 = scmp.eq.s32.totalorder %s25, 1
    %p153 = por %p151, %p152
    %p155 = scmp.ne.s32.totalorder %s140, %s154
    %p156 = scmp.eq.s32.totalorder %s25, 0
    %p157 = por %p155, %p156
    %s159 = sadd.s32 %s158, 1
    %p162 = scmp.eq.s32.totalorder %s19, 1
    %p163 = scmp.ne.s32.totalorder %s158, %s160
    %p164 = scmp.eq.s32.totalorder %s19, 0
    %p165 = por %p163, %p164
    %p166 = scmp.ne.s32.totalorder %s158, %s160
    %p167 = scmp.eq.s32.totalorder %s24, 1
    %p168 = por %p166, %p167
    %p169 = scmp.ne.s32.totalorder %s160, %s161
    %p170 = scmp.eq.s32.totalorder %s24, 0
    %p171 = por %p169, %p170
    %p172 = scmp.ne.s32.totalorder %s160, %s161
    %p173 = scmp.eq.s32.totalorder %s25, 1
    %p174 = por %p172, %p173
    %p176 = scmp.ne.s32.totalorder %s161, %s175
    %p177 = scmp.eq.s32.totalorder %s25, 0
    %p178 = por %p176, %p177
    %s180 = sadd.s32 %s179, 1
    %p183 = scmp.eq.s32.totalorder %s19, 1
    %p184 = scmp.ne.s32.totalorder %s179, %s181
    %p185 = scmp.eq.s32.totalorder %s19, 0
    %p186 = por %p184, %p185
    %p187 = scmp.ne.s32.totalorder %s179, %s181
    %p188 = scmp.eq.s32.totalorder %s24, 1
    %p189 = por %p187, %p188
    %p190 = scmp.ne.s32.totalorder %s181, %s182
    %p191 = scmp.eq.s32.totalorder %s24, 0
    %p192 = por %p190, %p191
    %p193 = scmp.ne.s32.totalorder %s181, %s182
    %p194 = scmp.eq.s32.totalorder %s25, 1
    %p195 = por %p193, %p194
    %p197 = scmp.ne.s32.totalorder %s182, %s196
    %p198 = scmp.eq.s32.totalorder %s25, 0
    %p199 = por %p197, %p198
    %s201 = sadd.s32 %s200, 1
    %p204 = scmp.eq.s32.totalorder %s19, 1
    %p205 = scmp.ne.s32.totalorder %s200, %s202
    %p206 = scmp.eq.s32.totalorder %s19, 0
    %p207 = por %p205, %p206
    %p208 = scmp.ne.s32.totalorder %s200, %s202
    %p209 = scmp.eq.s32.totalorder %s24, 1
    %p210 = por %p208, %p209
    %p211 = scmp.ne.s32.totalorder %s202, %s203
    %p212 = scmp.eq.s32.totalorder %s24, 0
    %p213 = por %p211, %p212
    %p214 = scmp.ne.s32.totalorder %s202, %s203
    %p215 = scmp.eq.s32.totalorder %s25, 1
    %p216 = por %p214, %p215
    %p218 = scmp.ne.s32.totalorder %s203, %s217
    %p219 = scmp.eq.s32.totalorder %s25, 0
    %p220 = por %p218, %p219
    %s222 = sadd.s32 %s221, 1
    %p225 = scmp.eq.s32.totalorder %s19, 1
    %p226 = scmp.ne.s32.totalorder %s221, %s223
    %p227 = scmp.eq.s32.totalorder %s19, 0
    %p228 = por %p226, %p227
    %p229 = scmp.ne.s32.totalorder %s221, %s223
    %p230 = scmp.eq.s32.totalorder %s24, 1
    %p231 = por %p229, %p230
    %p232 = scmp.ne.s32.totalorder %s223, %s224
    %p233 = scmp.eq.s32.totalorder %s24, 0
    %p234 = por %p232, %p233
    %p235 = scmp.ne.s32.totalorder %s223, %s224
    %p236 = scmp.eq.s32.totalorder %s25, 1
    %p237 = por %p235, %p236
    %p239 = scmp.ne.s32.totalorder %s224, %s238
    %p240 = scmp.eq.s32.totalorder %s25, 0
    %p241 = por %p239, %p240
    %s243 = sadd.s32 %s242, 1
    %p246 = scmp.eq.s32.totalorder %s19, 1
    %p247 = scmp.ne.s32.totalorder %s242, %s244
    %p248 = scmp.eq.s32.totalorder %s19, 0
    %p249 = por %p247, %p248
    %p250 = scmp.ne.s32.totalorder %s242, %s244
    %p251 = scmp.eq.s32.totalorder %s24, 1
    %p252 = por %p250, %p251
    %p253 = scmp.ne.s32.totalorder %s244, %s245
    %p254 = scmp.eq.s32.totalorder %s24, 0
    %p255 = por %p253, %p254
    %p256 = scmp.ne.s32.totalorder %s244, %s245
    %p257 = scmp.eq.s32.totalorder %s25, 1
    %p258 = por %p256, %p257
    %p260 = scmp.ne.s32.totalorder %s245, %s259
    %p261 = scmp.eq.s32.totalorder %s25, 0
    %p262 = por %p260, %p261
    %s264 = sadd.s32 %s263, 1
    %p267 = scmp.eq.s32.totalorder %s19, 1
    %p268 = scmp.ne.s32.totalorder %s263, %s265
    %p269 = scmp.eq.s32.totalorder %s19, 0
    %p270 = por %p268, %p269
    %p271 = scmp.ne.s32.totalorder %s263, %s265
    %p272 = scmp.eq.s32.totalorder %s24, 1
    %p273 = por %p271, %p272
    %p274 = scmp.ne.s32.totalorder %s265, %s266
    %p275 = scmp.eq.s32.totalorder %s24, 0
    %p276 = por %p274, %p275
    %p277 = scmp.ne.s32.totalorder %s265, %s266
    %p278 = scmp.eq.s32.totalorder %s25, 1
    %p279 = por %p277, %p278
    %p281 = scmp.ne.s32.totalorder %s266, %s280
    %p282 = scmp.eq.s32.totalorder %s25, 0
    %p283 = por %p281, %p282
    %s285 = sadd.s32 %s284, 1
    %p288 = scmp.eq.s32.totalorder %s19, 1
    %p289 = scmp.ne.s32.totalorder %s284, %s286
    %p290 = scmp.eq.s32.totalorder %s19, 0
    %p291 = por %p289, %p290
    %p292 = scmp.ne.s32.totalorder %s284, %s286
    %p293 = scmp.eq.s32.totalorder %s24, 1
    %p294 = por %p292, %p293
    %p295 = scmp.ne.s32.totalorder %s286, %s287
    %p296 = scmp.eq.s32.totalorder %s24, 0
    %p297 = por %p295, %p296
    %p298 = scmp.ne.s32.totalorder %s286, %s287
    %p299 = scmp.eq.s32.totalorder %s25, 1
    %p300 = por %p298, %p299
    %p302 = scmp.ne.s32.totalorder %s287, %s301
    %p303 = scmp.eq.s32.totalorder %s25, 0
    %p304 = por %p302, %p303
    %s305 = ssub.s32 %s19, %s26
    %p306 = scmp.eq.s32.totalorder %s305, 0
    %s308 = sadd.s32 %s307, 1
    %s309 = scalar_select %p306, %s307, %s308
    %p312 = pneg %p306
    %p313 = scmp.eq.s32.totalorder %s19, 1
    %p314 = por %p312, %p313
    %p315 = scmp.ne.s32.totalorder %s307, %s310
    %p316 = scmp.eq.s32.totalorder %s19, 0
    %p317 = por %p315, %p316
    %p318 = scmp.ne.s32.totalorder %s307, %s310
    %p319 = scmp.eq.s32.totalorder %s24, 1
    %p320 = por %p318, %p319
    %p321 = scmp.ne.s32.totalorder %s310, %s311
    %p322 = scmp.eq.s32.totalorder %s24, 0
    %p323 = por %p321, %p322
    %p324 = scmp.ne.s32.totalorder %s310, %s311
    %p325 = scmp.eq.s32.totalorder %s25, 1
    %p326 = por %p324, %p325
    %p328 = scmp.ne.s32.totalorder %s311, %s327
    %p329 = scmp.eq.s32.totalorder %s25, 0
    %p330 = por %p328, %p329
    %p331 = scmp.le.s32.totalorder 1, %s19
    %p332 = scmp.lt.s32.totalorder %s19, 3
    %p333 = pnand %p331, %p332
    %p334 = pneg %p333
    // Predicated region
    $region9: #{fwd.12} parent=5 // pred_check
      _
    $region10: #{fwd.12} parent=5 // pred_check_branch
      %336 = sbr.rel (%p333) target = $region12
    $region11: #{fwd.12} parent=5 // pred_region
      %s337 = ssub.s32 %s19, 1
      // Predicated region
      $region13: #{fwd.12} parent=11 // pred_check
        %p338 = pneg %p66
      $region14: #{fwd.12} parent=11 // pred_check_branch
        %340 = sbr.rel (%p338) target = $region16
      $region15: #{fwd.12} parent=11 // pred_region
        _
      $region16: #{fwd.12} parent=11 // pred_fallthru
        _
      // Predicated region
      $region17: #{fwd.12} parent=11 // pred_check
        %p341 = pneg %p87
      $region18: #{fwd.12} parent=11 // pred_check_branch
        %343 = sbr.rel (%p341) target = $region20
      $region19: #{fwd.12} parent=11 // pred_region
        _
      $region20: #{fwd.12} parent=11 // pred_fallthru
        _
      // Predicated region
      $region21: #{fwd.12} parent=11 // pred_check
        %p344 = pneg %p108
      $region22: #{fwd.12} parent=11 // pred_check_branch
        %346 = sbr.rel (%p344) target = $region24
      $region23: #{fwd.12} parent=11 // pred_region
        _
      $region24: #{fwd.12} parent=11 // pred_fallthru
        _
      // Predicated region
      $region25: #{fwd.12} parent=11 // pred_check
        %p347 = pneg %p129
      $region26: #{fwd.12} parent=11 // pred_check_branch
        %349 = sbr.rel (%p347) target = $region28
      $region27: #{fwd.12} parent=11 // pred_region
        _
      $region28: #{fwd.12} parent=11 // pred_fallthru
        _
      // Predicated region
      $region29: #{fwd.12} parent=11 // pred_check
        %p350 = pneg %p150
      $region30: #{fwd.12} parent=11 // pred_check_branch
        %352 = sbr.rel (%p350) target = $region32
      $region31: #{fwd.12} parent=11 // pred_region
        _
      $region32: #{fwd.12} parent=11 // pred_fallthru
        _
      // Predicated region
      $region33: #{fwd.12} parent=11 // pred_check
        %p353 = pneg %p171
      $region34: #{fwd.12} parent=11 // pred_check_branch
        %355 = sbr.rel (%p353) target = $region36
      $region35: #{fwd.12} parent=11 // pred_region
        _
      $region36: #{fwd.12} parent=11 // pred_fallthru
        _
      // Predicated region
      $region37: #{fwd.12} parent=11 // pred_check
        %p356 = pneg %p192
      $region38: #{fwd.12} parent=11 // pred_check_branch
        %358 = sbr.rel (%p356) target = $region40
      $region39: #{fwd.12} parent=11 // pred_region
        _
      $region40: #{fwd.12} parent=11 // pred_fallthru
        _
      // Predicated region
      $region41: #{fwd.12} parent=11 // pred_check
        %p359 = pneg %p213
      $region42: #{fwd.12} parent=11 // pred_check_branch
        %361 = sbr.rel (%p359) target = $region44
      $region43: #{fwd.12} parent=11 // pred_region
        _
      $region44: #{fwd.12} parent=11 // pred_fallthru
        _
      // Predicated region
      $region45: #{fwd.12} parent=11 // pred_check
        %p362 = pneg %p234
      $region46: #{fwd.12} parent=11 // pred_check_branch
        %364 = sbr.rel (%p362) target = $region48
      $region47: #{fwd.12} parent=11 // pred_region
        _
      $region48: #{fwd.12} parent=11 // pred_fallthru
        _
      // Predicated region
      $region49: #{fwd.12} parent=11 // pred_check
        %p365 = pneg %p255
      $region50: #{fwd.12} parent=11 // pred_check_branch
        %367 = sbr.rel (%p365) target = $region52
      $region51: #{fwd.12} parent=11 // pred_region
        _
      $region52: #{fwd.12} parent=11 // pred_fallthru
        _
      // Predicated region
      $region53: #{fwd.12} parent=11 // pred_check
        %p368 = pneg %p276
      $region54: #{fwd.12} parent=11 // pred_check_branch
        %370 = sbr.rel (%p368) target = $region56
      $region55: #{fwd.12} parent=11 // pred_region
        _
      $region56: #{fwd.12} parent=11 // pred_fallthru
        _
      // Predicated region
      $region57: #{fwd.12} parent=11 // pred_check
        %p371 = pneg %p297
      $region58: #{fwd.12} parent=11 // pred_check_branch
        %373 = sbr.rel (%p371) target = $region60
      $region59: #{fwd.12} parent=11 // pred_region
        _
      $region60: #{fwd.12} parent=11 // pred_fallthru
        _
    $region12: #{fwd.12} parent=5 // pred_fallthru
      _
    %p374 = scmp.lt.s32.totalorder %s19, 2
    // Predicated region
    $region61: #{fwd.12} parent=5 // pred_check
      %p375 = pneg %p374
    $region62: #{fwd.12} parent=5 // pred_check_branch
      %377 = sbr.rel (%p375) target = $region64
    $region63: #{fwd.12} parent=5 // pred_region
      // Predicated region
      $region65: #{fwd.12} parent=63 // pred_check
        %p378 = pneg %p39
      $region66: #{fwd.12} parent=63 // pred_check_branch
        %380 = sbr.rel (%p378) target = $region68
      $region67: #{fwd.12} parent=63 // pred_region
        %p381 = scmp.lt.s32.totalorder %s19, 1
        %s382 = scalar_select %p381, %s19, 1
        %s383 = smul.addr %s382, 8
        %s384 = scalar_lea.vmem %s0, %s383
      $region68: #{fwd.12} parent=63 // pred_fallthru
        _
    $region64: #{fwd.12} parent=5 // pred_fallthru
      _
    %p385 = scmp.le.s32.totalorder 1, %s19
    %p386 = scmp.lt.s32.totalorder %s19, 3
    %p387 = pnand %p385, %p386
    %p388 = pneg %p387
    // Predicated region
    $region69: #{fwd.12} parent=5 // pred_check
      _
    $region70: #{fwd.12} parent=5 // pred_check_branch
      %390 = sbr.rel (%p387) target = $region72
    $region71: #{fwd.12} parent=5 // pred_region
      %s391 = ssub.s32 %s19, 1
      %p392 = scmp.lt.s32.totalorder %s24, 1
      %s393 = scalar_select %p392, %s24, 1
      %s394 = smul.addr %s393, 8
      %s395 = scalar_lea.vmem %s0, %s394
      %p396 = pneg %p45
      %p397 = pneg %p42
      %p398 = pneg %p66
      %p399 = pneg %p63
      %p400 = pneg %p87
      %p401 = pneg %p84
      %p402 = pneg %p108
      %p403 = pneg %p105
      %p404 = pneg %p129
      %p405 = pneg %p126
      %p406 = pneg %p150
      %p407 = pneg %p147
      %p408 = pneg %p171
      %p409 = pneg %p168
      %p410 = pneg %p192
      %p411 = pneg %p189
      %p412 = pneg %p213
      %p413 = pneg %p210
      %p414 = pneg %p234
      %p415 = pneg %p231
      %p416 = pneg %p255
      %p417 = pneg %p252
      %p418 = pneg %p276
      %p419 = pneg %p273
      %p420 = pneg %p297
      %p421 = pneg %p294
      %p422 = pneg %p323
      %p423 = pneg %p320
      %p424 = scmp.lt.s32.totalorder %s24, 1
      %s425 = scalar_select %p424, %s24, 1
      %s426 = smul.addr %s425, 8
      %s427 = scalar_lea.vmem %s13, %s426
      %p428 = scmp.lt.s32.totalorder %s24, 1
      %s429 = scalar_select %p428, %s24, 1
      %s430 = smul.addr %s429, 8
      %s431 = scalar_lea.vmem %s0, %s430
      %p432 = scmp.lt.s32.totalorder %s24, 1
      %s433 = scalar_select %p432, %s24, 1
      %s434 = smul.addr %s433, 8
      %s435 = scalar_lea.vmem %s13, %s434
      %v437 = vld [vmem:[%s431] sm:$0x1f]
      %vm438 = vcmask 258048
      %v439 = vsel %vm438, %v437, 0.0
      %440 = vadd.xlane.f32.xlu0 %v439
      %v441 = vpop.xlane.xlu0 %440
      %v442 = vrcp.pop 32.0
      %v443 = vmul.f32 %v441, %v442
      %v444 = vsub.f32 %v437, %v443
      %v445 = vmul.f32 %v444, %v444
      %v446 = vsel %vm438, %v445, 0.0
      %447 = vadd.xlane.f32.xlu0 %v446
      %v448 = vpop.xlane.xlu0 %447
      %v449 = vmul.f32 %v448, %v442
      %v450 = vadd.f32 %v449, 1e-05
      %v451 = vrsqrt.pop %v450
      %v452 = vmul.f32 %v444, %v451
      %v453 = vld [vmem:[%s1] sm:$0x1]
      %v455 = vlaneseq
      %v456 = vshrl.u32 %v455, 7
      %v457 = vsub.s32 0, %v456
      %v458 = vrot.slane %v453, %v457
      %v460 = vmul.f32 %v452, %v458
      %v461 = vld [vmem:[%s2] sm:$0x1]
      %v463 = vlaneseq
      %v464 = vshrl.u32 %v463, 7
      %v465 = vsub.s32 0, %v464
      %v466 = vrot.slane %v461, %v465
      %v468 = vadd.f32 %v460, %v466
      %v469 = vpack.c.bf16 %v468, %v468
      %v470 = vld [vmem:[%s3] sm:$0xf]
      %v471 = vld [vmem:[%s3 + $0x4] sm:$0xf]
      %v472 = vld [vmem:[%s3 + $0x8] sm:$0xf]
      %v473 = vld [vmem:[%s3 + $0xc] sm:$0xf]
      %v474 = vld [vmem:[%s4] sm:$0x1]
      %v476 = vlaneseq
      %v477 = vshrl.u32 %v476, 7
      %v478 = vsub.s32 0, %v477
      %v479 = vrot.slane %v474, %v478
      %v485 = vunpack.c.l.b16 %v470
      %v486 = vunpack.c.l.b16 %v471
      %v487 = vunpack.c.l.b16 %v472
      %v488 = vunpack.c.l.b16 %v473
      %v489 = vpack.c.b16 %v486, %v485
      %v490 = vpack.c.b16 %v488, %v487
      %vm493 = vcmask 261120
      %v495 = vsel %vm493, %v469, 0
      %497 = vmatprep.subr.bf16.mxu0 0
      %498 = vmatpush1.bf16.msra.mxu0 %v489
      %499 = vmatprep.subr.bf16.mxu0 0
      %500 = vmatpush1.bf16.msra.mxu0 %v490
      %501 = vmatprep.subr.bf16.mxu0 0
      %502 = vmatpush1.bf16.msra.mxu0 0
      %503 = vmatprep.subr.bf16.mxu0 0
      %504 = vmatpush1.bf16.msra.mxu0 0
      %505 = vmatprep.subr.bf16.mxu0 0
      %506 = vmatpush1.bf16.msra.mxu0 0
      %507 = vmatprep.subr.bf16.mxu0 0
      %508 = vmatpush1.bf16.msra.mxu0 0
      %509 = vmatprep.subr.bf16.mxu0 0
      %510 = vmatpush1.bf16.msra.mxu0 0
      %511 = vmatprep.subr.bf16.mxu0 0
      %512 = vmatpush1.bf16.msra.mxu0 0
      %513 = vmatprep.subr.bf16.mxu0 0
      %514 = vmatpush1.bf16.msra.mxu0 0
      %515 = vmatprep.subr.bf16.mxu0 0
      %516 = vmatpush1.bf16.msra.mxu0 0
      %517 = vmatprep.subr.bf16.mxu0 0
      %518 = vmatpush1.bf16.msra.mxu0 0
      %519 = vmatprep.subr.bf16.mxu0 0
      %520 = vmatpush1.bf16.msra.mxu0 0
      %521 = vmatprep.subr.bf16.mxu0 0
      %522 = vmatpush1.bf16.msra.mxu0 0
      %523 = vmatprep.subr.bf16.mxu0 0
      %524 = vmatpush1.bf16.msra.mxu0 0
      %525 = vmatprep.subr.bf16.mxu0 0
      %526 = vmatpush1.bf16.msra.mxu0 0
      %527 = vmatprep.subr.bf16.mxu0 0
      %528 = vmatpush1.bf16.msra.mxu0 0
      %529 = vmatprep.mubr.bf16.mxu0 0
      %530 = vmatmul.mubr.bf16.gmra.mrb[0].mxu0 %v495
      %v531 = vpop.f32.mrb[0].mxu0
      %v532 = vadd.f32 %v479, %v531
      %v533 = vpop.f32.mrb[0].mxu0
      %v534 = vpop.f32.mrb[0].mxu0
      %v535 = vpop.f32.mrb[0].mxu0
      %536 = vdwg.mxu0
      %v537 = vpack.c.bf16 %v532, %v532
      %539 = vrot.lane.b32.xlu0 %v537, 96
      %v540 = vpop.permute.xlu0 %539
      %vm541 = vcmask 64512
      %v543 = vsel %vm541, %v537, 0
      %v546 = vsel %vm541, %v540, 0
      %548 = vmatprep.subr.bf16.mxu0 0
      %549 = vmatpush1.bf16.xpose.msra.mxu0 %v546
      %550 = vmatprep.subr.bf16.mxu0 0
      %551 = vmatpush1.bf16.xpose.msra.mxu0 0
      %552 = vmatprep.subr.bf16.mxu0 0
      %553 = vmatpush1.bf16.xpose.msra.mxu0 0
      %554 = vmatprep.subr.bf16.mxu0 0
      %555 = vmatpush1.bf16.xpose.msra.mxu0 0
      %556 = vmatprep.subr.bf16.mxu0 0
      %557 = vmatpush1.bf16.xpose.msra.mxu0 0
      %558 = vmatprep.subr.bf16.mxu0 0
      %559 = vmatpush1.bf16.xpose.msra.mxu0 0
      %560 = vmatprep.subr.bf16.mxu0 0
      %561 = vmatpush1.bf16.xpose.msra.mxu0 0
      %562 = vmatprep.subr.bf16.mxu0 0
      %563 = vmatpush1.bf16.xpose.msra.mxu0 0
      %564 = vmatprep.subr.bf16.mxu0 0
      %565 = vmatpush1.bf16.xpose.msra.mxu0 0
      %566 = vmatprep.subr.bf16.mxu0 0
      %567 = vmatpush1.bf16.xpose.msra.mxu0 0
      %568 = vmatprep.subr.bf16.mxu0 0
      %569 = vmatpush1.bf16.xpose.msra.mxu0 0
      %570 = vmatprep.subr.bf16.mxu0 0
      %571 = vmatpush1.bf16.xpose.msra.mxu0 0
      %572 = vmatprep.subr.bf16.mxu0 0
      %573 = vmatpush1.bf16.xpose.msra.mxu0 0
      %574 = vmatprep.subr.bf16.mxu0 0
      %575 = vmatpush1.bf16.xpose.msra.mxu0 0
      %576 = vmatprep.subr.bf16.mxu0 0
      %577 = vmatpush1.bf16.xpose.msra.mxu0 0
      %578 = vmatprep.subr.bf16.mxu0 0
      %579 = vmatpush1.bf16.xpose.msra.mxu0 0
      %580 = vmatprep.mubr.bf16.mxu0 0
      %581 = vmatmul.mubr.bf16.gmra.mrb[0].mxu0 %v543
      %v582 = vpop.f32.mrb[0].mxu0
      %v583 = vadd.f32 0.0, %v582
      %v584 = vpop.f32.mrb[0].mxu0
      %v585 = vpop.f32.mrb[0].mxu0
      %v586 = vpop.f32.mrb[0].mxu0
      %587 = vdwg.mxu0
      %v588 = vmul.f32 %v583, 0.35355338
      %vm589 = vcmask 36864
      %v590 = vsel %vm589, %v588, -inf
      %591 = vmax.xlane.f32.xlu0 %v590
      %v592 = vpop.xlane.xlu0 %591
      %v593 = vsub.f32 %v588, %v592
      %v594 = vmul.f32 %v593, 1.442695
      %v595 = vpow.pop %v594
      %v596 = vsel %vm589, %v595, 0.0
      %597 = vadd.xlane.f32.xlu0 %v596
      %v598 = vpop.xlane.xlu0 %597
      %v599 = vrcp.pop %v598
      %v600 = vmul.f32 %v595, %v599
      %v601 = vpack.c.bf16 %v600, %v600
      %602 = vrot.lane.b32.xlu0 %v537, 64
      %v603 = vpop.permute.xlu0 %602
      %vm604 = vcmask 39936
      %v606 = vsel %vm604, %v601, 0
      %vm608 = vcmask 1041408
      %vm609 = vcmask 1042432
      %v610 = vsel %vm608, 4294967295, 65535
      %v611 = vsel %vm609, %v610, 0
      %v613 = vand.u32 %v603, %v611
      %615 = vmatprep.subr.bf16.mxu0 0
      %616 = vmatpush1.bf16.msra.mxu0 %v613
      %617 = vmatprep.subr.bf16.mxu0 0
      %618 = vmatpush1.bf16.msra.mxu0 0
      %619 = vmatprep.subr.bf16.mxu0 0
      %620 = vmatpush1.bf16.msra.mxu0 0
      %621 = vmatprep.subr.bf16.mxu0 0
      %622 = vmatpush1.bf16.msra.mxu0 0
      %623 = vmatprep.subr.bf16.mxu0 0
      %624 = vmatpush1.bf16.msra.mxu0 0
      %625 = vmatprep.subr.bf16.mxu0 0
      %626 = vmatpush1.bf16.msra.mxu0 0
      %627 = vmatprep.subr.bf16.mxu0 0
      %628 = vmatpush1.bf16.msra.mxu0 0
      %629 = vmatprep.subr.bf16.mxu0 0
      %630 = vmatpush1.bf16.msra.mxu0 0
      %631 = vmatprep.subr.bf16.mxu0 0
      %632 = vmatpush1.bf16.msra.mxu0 0
      %633 = vmatprep.subr.bf16.mxu0 0
      %634 = vmatpush1.bf16.msra.mxu0 0
      %635 = vmatprep.subr.bf16.mxu0 0
      %636 = vmatpush1.bf16.msra.mxu0 0
      %637 = vmatprep.subr.bf16.mxu0 0
      %638 = vmatpush1.bf16.msra.mxu0 0
      %639 = vmatprep.subr.bf16.mxu0 0
      %640 = vmatpush1.bf16.msra.mxu0 0
      %641 = vmatprep.subr.bf16.mxu0 0
      %642 = vmatpush1.bf16.msra.mxu0 0
      %643 = vmatprep.subr.bf16.mxu0 0
      %644 = vmatpush1.bf16.msra.mxu0 0
      %645 = vmatprep.subr.bf16.mxu0 0
      %646 = vmatpush1.bf16.msra.mxu0 0
      %647 = vmatprep.mubr.bf16.mxu0 0
      %648 = vmatmul.mubr.bf16.gmra.mrb[0].mxu0 %v606
      %v649 = vpop.f32.mrb[0].mxu0
      %v650 = vadd.f32 0.0, %v649
      %v651 = vpop.f32.mrb[0].mxu0
      %v652 = vpop.f32.mrb[0].mxu0
      %v653 = vpop.f32.mrb[0].mxu0
      %654 = vdwg.mxu0
      %vm655 = vcmask 61440
      %656 = vst.msk [vmem:[#allocation2] sm:$0x1f] %vm655, %v650
      %657 = vrot.lane.b32.xlu0 %v537, 120
      %v658 = vpop.permute.xlu0 %657
      %659 = vrot.lane.b32.xlu0 %v537, 88
      %v660 = vpop.permute.xlu0 %659
      %v662 = vsel %vm541, %v658, 0
      %v665 = vsel %vm541, %v660, 0
      %667 = vmatprep.subr.bf16.mxu0 0
      %668 = vmatpush1.bf16.xpose.msra.mxu0 %v665
      %669 = vmatprep.subr.bf16.mxu0 0
      %670 = vmatpush1.bf16.xpose.msra.mxu0 0
      %671 = vmatprep.subr.bf16.mxu0 0
      %672 = vmatpush1.bf16.xpose.msra.mxu0 0
      %673 = vmatprep.subr.bf16.mxu0 0
      %674 = vmatpush1.bf16.xpose.msra.mxu0 0
      %675 = vmatprep.subr.bf16.mxu0 0
      %676 = vmatpush1.bf16.xpose.msra.mxu0 0
      %677 = vmatprep.subr.bf16.mxu0 0
      %678 = vmatpush1.bf16.xpose.msra.mxu0 0
      %679 = vmatprep.subr.bf16.mxu0 0
      %680 = vmatpush1.bf16.xpose.msra.mxu0 0
      %681 = vmatprep.subr.bf16.mxu0 0
      %682 = vmatpush1.bf16.xpose.msra.mxu0 0
      %683 = vmatprep.subr.bf16.mxu0 0
      %684 = vmatpush1.bf16.xpose.msra.mxu0 0
      %685 = vmatprep.subr.bf16.mxu0 0
      %686 = vmatpush1.bf16.xpose.msra.mxu0 0
      %687 = vmatprep.subr.bf16.mxu0 0
      %688 = vmatpush1.bf16.xpose.msra.mxu0 0
      %689 = vmatprep.subr.bf16.mxu0 0
      %690 = vmatpush1.bf16.xpose.msra.mxu0 0
      %691 = vmatprep.subr.bf16.mxu0 0
      %692 = vmatpush1.bf16.xpose.msra.mxu0 0
      %693 = vmatprep.subr.bf16.mxu0 0
      %694 = vmatpush1.bf16.xpose.msra.mxu0 0
      %695 = vmatprep.subr.bf16.mxu0 0
      %696 = vmatpush1.bf16.xpose.msra.mxu0 0
      %697 = vmatprep.subr.bf16.mxu0 0
      %698 = vmatpush1.bf16.xpose.msra.mxu0 0
      %699 = vmatprep.mubr.bf16.mxu0 0
      %700 = vmatmul.mubr.bf16.gmra.mrb[0].mxu0 %v662
      %v701 = vpop.f32.mrb[0].mxu0
      %v702 = vadd.f32 0.0, %v701
      %v703 = vpop.f32.mrb[0].mxu0
      %v704 = vpop.f32.mrb[0].mxu0
      %v705 = vpop.f32.mrb[0].mxu0
      %706 = vdwg.mxu0
      %v707 = vmul.f32 %v702, 0.35355338
      %v708 = vsel %vm589, %v707, -inf
      %709 = vmax.xlane.f32.xlu0 %v708
      %v710 = vpop.xlane.xlu0 %709
      %v711 = vsub.f32 %v707, %v710
      %v712 = vmul.f32 %v711, 1.442695
      %v713 = vpow.pop %v712
      %v714 = vsel %vm589, %v713, 0.0
      %715 = vadd.xlane.f32.xlu0 %v714
      %v716 = vpop.xlane.xlu0 %715
      %v717 = vrcp.pop %v716
      %v718 = vmul.f32 %v713, %v717
      %v719 = vpack.c.bf16 %v718, %v718
      %720 = vrot.lane.b32.xlu0 %v537, 56
      %v721 = vpop.permute.xlu0 %720
      %v723 = vsel %vm604, %v719, 0
      %v726 = vand.u32 %v721, %v611
      %728 = vmatprep.subr.bf16.mxu0 0
      %729 = vmatpush1.bf16.msra.mxu0 %v726
      %730 = vmatprep.subr.bf16.mxu0 0
      %731 = vmatpush1.bf16.msra.mxu0 0
      %732 = vmatprep.subr.bf16.mxu0 0
      %733 = vmatpush1.bf16.msra.mxu0 0
      %734 = vmatprep.subr.bf16.mxu0 0
      %735 = vmatpush1.bf16.msra.mxu0 0
      %736 = vmatprep.subr.bf16.mxu0 0
      %737 = vmatpush1.bf16.msra.mxu0 0
      %738 = vmatprep.subr.bf16.mxu0 0
      %739 = vmatpush1.bf16.msra.mxu0 0
      %740 = vmatprep.subr.bf16.mxu0 0
      %741 = vmatpush1.bf16.msra.mxu0 0
      %742 = vmatprep.subr.bf16.mxu0 0
      %743 = vmatpush1.bf16.msra.mxu0 0
      %744 = vmatprep.subr.bf16.mxu0 0
      %745 = vmatpush1.bf16.msra.mxu0 0
      %746 = vmatprep.subr.bf16.mxu0 0
      %747 = vmatpush1.bf16.msra.mxu0 0
      %748 = vmatprep.subr.bf16.mxu0 0
      %749 = vmatpush1.bf16.msra.mxu0 0
      %750 = vmatprep.subr.bf16.mxu0 0
      %751 = vmatpush1.bf16.msra.mxu0 0
      %752 = vmatprep.subr.bf16.mxu0 0
      %753 = vmatpush1.bf16.msra.mxu0 0
      %754 = vmatprep.subr.bf16.mxu0 0
      %755 = vmatpush1.bf16.msra.mxu0 0
      %756 = vmatprep.subr.bf16.mxu0 0
      %757 = vmatpush1.bf16.msra.mxu0 0
      %758 = vmatprep.subr.bf16.mxu0 0
      %759 = vmatpush1.bf16.msra.mxu0 0
      %760 = vmatprep.mubr.bf16.mxu0 0
      %761 = vmatmul.mubr.bf16.gmra.mrb[0].mxu0 %v723
      %v762 = vpop.f32.mrb[0].mxu0
      %v763 = vadd.f32 0.0, %v762
      %v764 = vpop.f32.mrb[0].mxu0
      %v765 = vpop.f32.mrb[0].mxu0
      %v766 = vpop.f32.mrb[0].mxu0
      %767 = vdwg.mxu0
      %769 = vrot.lane.b32.xlu0 %v763, 8
      %v770 = vpop.permute.xlu0 %769
      %vm772 = vcmask 127040
      %773 = vst.msk [vmem:[#allocation2] sm:$0x1f] %vm772, %v770
      %774 = vrot.lane.b32.xlu0 %v537, 112
      %v775 = vpop.permute.xlu0 %774
      %776 = vrot.lane.b32.xlu0 %v537, 80
      %v777 = vpop.permute.xlu0 %776
      %v779 = vsel %vm541, %v775, 0
      %v782 = vsel %vm541, %v777, 0
      %784 = vmatprep.subr.bf16.mxu0 0
      %785 = vmatpush1.bf16.xpose.msra.mxu0 %v782
      %786 = vmatprep.subr.bf16.mxu0 0
      %787 = vmatpush1.bf16.xpose.msra.mxu0 0
      %788 = vmatprep.subr.bf16.mxu0 0
      %789 = vmatpush1.bf16.xpose.msra.mxu0 0
      %790 = vmatprep.subr.bf16.mxu0 0
      %791 = vmatpush1.bf16.xpose.msra.mxu0 0
      %792 = vmatprep.subr.bf16.mxu0 0
      %793 = vmatpush1.bf16.xpose.msra.mxu0 0
      %794 = vmatprep.subr.bf16.mxu0 0
      %795 = vmatpush1.bf16.xpose.msra.mxu0 0
      %796 = vmatprep.subr.bf16.mxu0 0
      %797 = vmatpush1.bf16.xpose.msra.mxu0 0
      %798 = vmatprep.subr.bf16.mxu0 0
      %799 = vmatpush1.bf16.xpose.msra.mxu0 0
      %800 = vmatprep.subr.bf16.mxu0 0
      %801 = vmatpush1.bf16.xpose.msra.mxu0 0
      %802 = vmatprep.subr.bf16.mxu0 0
      %803 = vmatpush1.bf16.xpose.msra.mxu0 0
      %804 = vmatprep.subr.bf16.mxu0 0
      %805 = vmatpush1.bf16.xpose.msra.mxu0 0
      %806 = vmatprep.subr.bf16.mxu0 0
      %807 = vmatpush1.bf16.xpose.msra.mxu0 0
      %808 = vmatprep.subr.bf16.mxu0 0
      %809 = vmatpush1.bf16.xpose.msra.mxu0 0
      %810 = vmatprep.subr.bf16.mxu0 0
      %811 = vmatpush1.bf16.xpose.msra.mxu0 0
      %812 = vmatprep.subr.bf16.mxu0 0
      %813 = vmatpush1.bf16.xpose.msra.mxu0 0
      %814 = vmatprep.subr.bf16.mxu0 0
      %815 = vmatpush1.bf16.xpose.msra.mxu0 0
      %816 = vmatprep.mubr.bf16.mxu0 0
      %817 = vmatmul.mubr.bf16.gmra.mrb[0].mxu0 %v779
      %v818 = vpop.f32.mrb[0].mxu0
      %v819 = vadd.f32 0.0, %v818
      %v820 = vpop.f32.mrb[0].mxu0
      %v821 = vpop.f32.mrb[0].mxu0
      %v822 = vpop.f32.mrb[0].mxu0
      %823 = vdwg.mxu0
      %v824 = vmul.f32 %v819, 0.35355338
      %v825 = vsel %vm589, %v824, -inf
      %826 = vmax.xlane.f32.xlu0 %v825
      %v827 = vpop.xlane.xlu0 %826
      %v828 = vsub.f32 %v824, %v827
      %v829 = vmul.f32 %v828, 1.442695
      %v830 = vpow.pop %v829
      %v831 = vsel %vm589, %v830, 0.0
      %832 = vadd.xlane.f32.xlu0 %v831
      %v833 = vpop.xlane.xlu0 %832
      %v834 = vrcp.pop %v833
      %v835 = vmul.f32 %v830, %v834
      %v836 = vpack.c.bf16 %v835, %v835
      %837 = vrot.lane.b32.xlu0 %v537, 48
      %v838 = vpop.permute.xlu0 %837
      %v840 = vsel %vm604, %v836, 0
      %v843 = vand.u32 %v838, %v611
      %845 = vmatprep.subr.bf16.mxu0 0
      %846 = vmatpush1.bf16.msra.mxu0 %v843
      %847 = vmatprep.subr.bf16.mxu0 0
      %848 = vmatpush1.bf16.msra.mxu0 0
      %849 = vmatprep.subr.bf16.mxu0 0
      %850 = vmatpush1.bf16.msra.mxu0 0
      %851 = vmatprep.subr.bf16.mxu0 0
      %852 = vmatpush1.bf16.msra.mxu0 0
      %853 = vmatprep.subr.bf16.mxu0 0
      %854 = vmatpush1.bf16.msra.mxu0 0
      %855 = vmatprep.subr.bf16.mxu0 0
      %856 = vmatpush1.bf16.msra.mxu0 0
      %857 = vmatprep.subr.bf16.mxu0 0
      %858 = vmatpush1.bf16.msra.mxu0 0
      %859 = vmatprep.subr.bf16.mxu0 0
      %860 = vmatpush1.bf16.msra.mxu0 0
      %861 = vmatprep.subr.bf16.mxu0 0
      %862 = vmatpush1.bf16.msra.mxu0 0
      %863 = vmatprep.subr.bf16.mxu0 0
      %864 = vmatpush1.bf16.msra.mxu0 0
      %865 = vmatprep.subr.bf16.mxu0 0
      %866 = vmatpush1.bf16.msra.mxu0 0
      %867 = vmatprep.subr.bf16.mxu0 0
      %868 = vmatpush1.bf16.msra.mxu0 0
      %869 = vmatprep.subr.bf16.mxu0 0
      %870 = vmatpush1.bf16.msra.mxu0 0
      %871 = vmatprep.subr.bf16.mxu0 0
      %872 = vmatpush1.bf16.msra.mxu0 0
      %873 = vmatprep.subr.bf16.mxu0 0
      %874 = vmatpush1.bf16.msra.mxu0 0
      %875 = vmatprep.subr.bf16.mxu0 0
      %876 = vmatpush1.bf16.msra.mxu0 0
      %877 = vmatprep.mubr.bf16.mxu0 0
      %878 = vmatmul.mubr.bf16.gmra.mrb[0].mxu0 %v840
      %v879 = vpop.f32.mrb[0].mxu0
      %v880 = vadd.f32 0.0, %v879
      %v881 = vpop.f32.mrb[0].mxu0
      %v882 = vpop.f32.mrb[0].mxu0
      %v883 = vpop.f32.mrb[0].mxu0
      %884 = vdwg.mxu0
      %886 = vrot.lane.b32.xlu0 %v880, 16
      %v887 = vpop.permute.xlu0 %886
      %vm889 = vcmask 192640
      %890 = vst.msk [vmem:[#allocation2] sm:$0x1f] %vm889, %v887
      %891 = vrot.lane.b32.xlu0 %v537, 104
      %v892 = vpop.permute.xlu0 %891
      %893 = vrot.lane.b32.xlu0 %v537, 72
      %v894 = vpop.permute.xlu0 %893
      %v896 = vsel %vm541, %v892, 0
      %v899 = vsel %vm541, %v894, 0
      %901 = vmatprep.subr.bf16.mxu0 0
      %902 = vmatpush1.bf16.xpose.msra.mxu0 %v899
      %903 = vmatprep.subr.bf16.mxu0 0
      %904 = vmatpush1.bf16.xpose.msra.mxu0 0
      %905 = vmatprep.subr.bf16.mxu0 0
      %906 = vmatpush1.bf16.xpose.msra.mxu0 0
      %907 = vmatprep.subr.bf16.mxu0 0
      %908 = vmatpush1.bf16.xpose.msra.mxu0 0
      %909 = vmatprep.subr.bf16.mxu0 0
      %910 = vmatpush1.bf16.xpose.msra.mxu0 0
      %911 = vmatprep.subr.bf16.mxu0 0
      %912 = vmatpush1.bf16.xpose.msra.mxu0 0
      %913 = vmatprep.subr.bf16.mxu0 0
      %914 = vmatpush1.bf16.xpose.msra.mxu0 0
      %915 = vmatprep.subr.bf16.mxu0 0
      %916 = vmatpush1.bf16.xpose.msra.mxu0 0
      %917 = vmatprep.subr.bf16.mxu0 0
      %918 = vmatpush1.bf16.xpose.msra.mxu0 0
      %919 = vmatprep.subr.bf16.mxu0 0
      %920 = vmatpush1.bf16.xpose.msra.mxu0 0
      %921 = vmatprep.subr.bf16.mxu0 0
      %922 = vmatpush1.bf16.xpose.msra.mxu0 0
      %923 = vmatprep.subr.bf16.mxu0 0
      %924 = vmatpush1.bf16.xpose.msra.mxu0 0
      %925 = vmatprep.subr.bf16.mxu0 0
      %926 = vmatpush1.bf16.xpose.msra.mxu0 0
      %927 = vmatprep.subr.bf16.mxu0 0
      %928 = vmatpush1.bf16.xpose.msra.mxu0 0
      %929 = vmatprep.subr.bf16.mxu0 0
      %930 = vmatpush1.bf16.xpose.msra.mxu0 0
      %931 = vmatprep.subr.bf16.mxu0 0
      %932 = vmatpush1.bf16.xpose.msra.mxu0 0
      %933 = vmatprep.mubr.bf16.mxu0 0
      %934 = vmatmul.mubr.bf16.gmra.mrb[0].mxu0 %v896
      %v935 = vpop.f32.mrb[0].mxu0
      %v936 = vadd.f32 0.0, %v935
      %v937 = vpop.f32.mrb[0].mxu0
      %v938 = vpop.f32.mrb[0].mxu0
      %v939 = vpop.f32.mrb[0].mxu0
      %940 = vdwg.mxu0
      %v941 = vmul.f32 %v936, 0.35355338
      %v942 = vsel %vm589, %v941, -inf
      %943 = vmax.xlane.f32.xlu0 %v942
      %v944 = vpop.xlane.xlu0 %943
      %v945 = vsub.f32 %v941, %v944
      %v946 = vmul.f32 %v945, 1.442695
      %v947 = vpow.pop %v946
      %v948 = vsel %vm589, %v947, 0.0
      %949 = vadd.xlane.f32.xlu0 %v948
      %v950 = vpop.xlane.xlu0 %949
      %v951 = vrcp.pop %v950
      %v952 = vmul.f32 %v947, %v951
      %v953 = vpack.c.bf16 %v952, %v952
      %954 = vrot.lane.b32.xlu0 %v537, 40
      %v955 = vpop.permute.xlu0 %954
      %v957 = vsel %vm604, %v953, 0
      %v960 = vand.u32 %v955, %v611
      %962 = vmatprep.subr.bf16.mxu0 0
      %963 = vmatpush1.bf16.msra.mxu0 %v960
      %964 = vmatprep.subr.bf16.mxu0 0
      %965 = vmatpush1.bf16.msra.mxu0 0
      %966 = vmatprep.subr.bf16.mxu0 0
      %967 = vmatpush1.bf16.msra.mxu0 0
      %968 = vmatprep.subr.bf16.mxu0 0
      %969 = vmatpush1.bf16.msra.mxu0 0
      %970 = vmatprep.subr.bf16.mxu0 0
      %971 = vmatpush1.bf16.msra.mxu0 0
      %972 = vmatprep.subr.bf16.mxu0 0
      %973 = vmatpush1.bf16.msra.mxu0 0
      %974 = vmatprep.subr.bf16.mxu0 0
      %975 = vmatpush1.bf16.msra.mxu0 0
      %976 = vmatprep.subr.bf16.mxu0 0
      %977 = vmatpush1.bf16.msra.mxu0 0
      %978 = vmatprep.subr.bf16.mxu0 0
      %979 = vmatpush1.bf16.msra.mxu0 0
      %980 = vmatprep.subr.bf16.mxu0 0
      %981 = vmatpush1.bf16.msra.mxu0 0
      %982 = vmatprep.subr.bf16.mxu0 0
      %983 = vmatpush1.bf16.msra.mxu0 0
      %984 = vmatprep.subr.bf16.mxu0 0
      %985 = vmatpush1.bf16.msra.mxu0 0
      %986 = vmatprep.subr.bf16.mxu0 0
      %987 = vmatpush1.bf16.msra.mxu0 0
      %988 = vmatprep.subr.bf16.mxu0 0
      %989 = vmatpush1.bf16.msra.mxu0 0
      %990 = vmatprep.subr.bf16.mxu0 0
      %991 = vmatpush1.bf16.msra.mxu0 0
      %992 = vmatprep.subr.bf16.mxu0 0
      %993 = vmatpush1.bf16.msra.mxu0 0
      %994 = vmatprep.mubr.bf16.mxu0 0
      %995 = vmatmul.mubr.bf16.gmra.mrb[0].mxu0 %v957
      %v996 = vpop.f32.mrb[0].mxu0
      %v997 = vadd.f32 0.0, %v996
      %v998 = vpop.f32.mrb[0].mxu0
      %v999 = vpop.f32.mrb[0].mxu0
      %v1000 = vpop.f32.mrb[0].mxu0
      %1001 = vdwg.mxu0
      %1003 = vrot.lane.b32.xlu0 %v997, 24
      %v1004 = vpop.permute.xlu0 %1003
      %vm1006 = vcmask 258240
      %1007 = vst.msk [vmem:[#allocation2] sm:$0x1f] %vm1006, %v1004
      %v1008 = vld [vmem:[#allocation2] sm:$0x1f]
      %v1009 = vpack.c.bf16 %v1008, %v1008
      %v1010 = vld [vmem:[%s5] sm:$0xf]
      %v1011 = vld [vmem:[%s5 + $0x4] sm:$0xf]
      %v1012 = vld [vmem:[%s5 + $0x8] sm:$0xf]
      %v1013 = vld [vmem:[%s5 + $0xc] sm:$0xf]
      %v1018 = vunpack.c.l.b16 %v1010
      %v1019 = vunpack.c.l.b16 %v1011
      %v1020 = vunpack.c.l.b16 %v1012
      %v1021 = vunpack.c.l.b16 %v1013
      %v1022 = vpack.c.b16 %v1019, %v1018
      %v1023 = vpack.c.b16 %v1021, %v1020
      %v1027 = vsel %vm493, %v1009, 0
      %1029 = vmatprep.subr.bf16.mxu0 0
      %1030 = vmatpush1.bf16.msra.mxu0 %v1022
      %1031 = vmatprep.subr.bf16.mxu0 0
      %1032 = vmatpush1.bf16.msra.mxu0 %v1023
      %1033 = vmatprep.subr.bf16.mxu0 0
      %1034 = vmatpush1.bf16.msra.mxu0 0
      %1035 = vmatprep.subr.bf16.mxu0 0
      %1036 = vmatpush1.bf16.msra.mxu0 0
      %1037 = vmatprep.subr.bf16.mxu0 0
      %1038 = vmatpush1.bf16.msra.mxu0 0
      %1039 = vmatprep.subr.bf16.mxu0 0
      %1040 = vmatpush1.bf16.msra.mxu0 0
      %1041 = vmatprep.subr.bf16.mxu0 0
      %1042 = vmatpush1.bf16.msra.mxu0 0
      %1043 = vmatprep.subr.bf16.mxu0 0
      %1044 = vmatpush1.bf16.msra.mxu0 0
      %1045 = vmatprep.subr.bf16.mxu0 0
      %1046 = vmatpush1.bf16.msra.mxu0 0
      %1047 = vmatprep.subr.bf16.mxu0 0
      %1048 = vmatpush1.bf16.msra.mxu0 0
      %1049 = vmatprep.subr.bf16.mxu0 0
      %1050 = vmatpush1.bf16.msra.mxu0 0
      %1051 = vmatprep.subr.bf16.mxu0 0
      %1052 = vmatpush1.bf16.msra.mxu0 0
      %1053 = vmatprep.subr.bf16.mxu0 0
      %1054 = vmatpush1.bf16.msra.mxu0 0
      %1055 = vmatprep.subr.bf16.mxu0 0
      %1056 = vmatpush1.bf16.msra.mxu0 0
      %1057 = vmatprep.subr.bf16.mxu0 0
      %1058 = vmatpush1.bf16.msra.mxu0 0
      %1059 = vmatprep.subr.bf16.mxu0 0
      %1060 = vmatpush1.bf16.msra.mxu0 0
      %1061 = vmatprep.mubr.bf16.mxu0 0
      %1062 = vmatmul.mubr.bf16.gmra.mrb[0].mxu0 %v1027
      %v1063 = vpop.f32.mrb[0].mxu0
      %v1064 = vadd.f32 0.0, %v1063
      %v1065 = vpop.f32.mrb[0].mxu0
      %v1066 = vpop.f32.mrb[0].mxu0
      %v1067 = vpop.f32.mrb[0].mxu0
      %1068 = vdwg.mxu0
      %v1069 = vadd.f32 %v437, %v1064
      %v1070 = vld [vmem:[%s6] sm:$0x1]
      %v1072 = vlaneseq
      %v1073 = vshrl.u32 %v1072, 7
      %v1074 = vsub.s32 0, %v1073
      %v1075 = vrot.slane %v1070, %v1074
      %v1077 = vadd.f32 %v1069, %v1075
      %v1078 = vsel %vm438, %v1077, 0.0
      %1079 = vadd.xlane.f32.xlu0 %v1078
      %v1080 = vpop.xlane.xlu0 %1079
      %v1081 = vmul.f32 %v1080, %v442
      %v1082 = vsub.f32 %v1077, %v1081
      %v1083 = vmul.f32 %v1082, %v1082
      %v1084 = vsel %vm438, %v1083, 0.0
      %1085 = vadd.xlane.f32.xlu0 %v1084
      %v1086 = vpop.xlane.xlu0 %1085
      %v1087 = vmul.f32 %v1086, %v442
      %v1088 = vadd.f32 %v1087, 1e-05
      %v1089 = vrsqrt.pop %v1088
      %v1090 = vmul.f32 %v1082, %v1089
      %v1091 = vld [vmem:[%s7] sm:$0x1]
      %v1093 = vlaneseq
      %v1094 = vshrl.u32 %v1093, 7
      %v1095 = vsub.s32 0, %v1094
      %v1096 = vrot.slane %v1091, %v1095
      %v1098 = vmul.f32 %v1090, %v1096
      %v1099 = vld [vmem:[%s8] sm:$0x1]
      %v1101 = vlaneseq
      %v1102 = vshrl.u32 %v1101, 7
      %v1103 = vsub.s32 0, %v1102
      %v1104 = vrot.slane %v1099, %v1103
      %v1106 = vadd.f32 %v1098, %v1104
      %v1107 = vpack.c.bf16 %v1106, %v1106
      %v1108 = vld [vmem:[%s9] sm:$0xf]
      %v1109 = vld [vmem:[%s9 + $0x4] sm:$0xf]
      %v1110 = vld [vmem:[%s9 + $0x8] sm:$0xf]
      %v1111 = vld [vmem:[%s9 + $0xc] sm:$0xf]
      %v1112 = vld [vmem:[%s10] sm:$0x1]
      %v1114 = vlaneseq
      %v1115 = vshrl.u32 %v1114, 7
      %v1116 = vsub.s32 0, %v1115
      %v1117 = vrot.slane %v1112, %v1116
      %v1123 = vunpack.c.l.b16 %v1108
      %v1124 = vunpack.c.l.b16 %v1109
      %v1125 = vunpack.c.l.b16 %v1110
      %v1126 = vunpack.c.l.b16 %v1111
      %v1127 = vpack.c.b16 %v1124, %v1123
      %v1128 = vpack.c.b16 %v1126, %v1125
      %v1132 = vsel %vm493, %v1107, 0
      %1134 = vmatprep.subr.bf16.mxu0 0
      %1135 = vmatpush1.bf16.msra.mxu0 %v1127
      %1136 = vmatprep.subr.bf16.mxu0 0
      %1137 = vmatpush1.bf16.msra.mxu0 %v1128
      %1138 = vmatprep.subr.bf16.mxu0 0
      %1139 = vmatpush1.bf16.msra.mxu0 0
      %1140 = vmatprep.subr.bf16.mxu0 0
      %1141 = vmatpush1.bf16.msra.mxu0 0
      %1142 = vmatprep.subr.bf16.mxu0 0
      %1143 = vmatpush1.bf16.msra.mxu0 0
      %1144 = vmatprep.subr.bf16.mxu0 0
      %1145 = vmatpush1.bf16.msra.mxu0 0
      %1146 = vmatprep.subr.bf16.mxu0 0
      %1147 = vmatpush1.bf16.msra.mxu0 0
      %1148 = vmatprep.subr.bf16.mxu0 0
      %1149 = vmatpush1.bf16.msra.mxu0 0
      %1150 = vmatprep.subr.bf16.mxu0 0
      %1151 = vmatpush1.bf16.msra.mxu0 0
      %1152 = vmatprep.subr.bf16.mxu0 0
      %1153 = vmatpush1.bf16.msra.mxu0 0
      %1154 = vmatprep.subr.bf16.mxu0 0
      %1155 = vmatpush1.bf16.msra.mxu0 0
      %1156 = vmatprep.subr.bf16.mxu0 0
      %1157 = vmatpush1.bf16.msra.mxu0 0
      %1158 = vmatprep.subr.bf16.mxu0 0
      %1159 = vmatpush1.bf16.msra.mxu0 0
      %1160 = vmatprep.subr.bf16.mxu0 0
      %1161 = vmatpush1.bf16.msra.mxu0 0
      %1162 = vmatprep.subr.bf16.mxu0 0
      %1163 = vmatpush1.bf16.msra.mxu0 0
      %1164 = vmatprep.subr.bf16.mxu0 0
      %1165 = vmatpush1.bf16.msra.mxu0 0
      %1166 = vmatprep.mubr.bf16.mxu0 0
      %1167 = vmatmul.mubr.bf16.gmra.mrb[0].mxu0 %v1132
      %v1168 = vpop.f32.mrb[0].mxu0
      %v1169 = vadd.f32 %v1117, %v1168
      %v1170 = vpop.f32.mrb[0].mxu0
      %v1171 = vpop.f32.mrb[0].mxu0
      %v1172 = vpop.f32.mrb[0].mxu0
      %1173 = vdwg.mxu0
      %v1174 = vmul.f32 %v1169, 1.702
      %v1175 = vxor.u32 %v1174, 2147483648
      %v1176 = vmul.f32 %v1175, 1.442695
      %v1177 = vpow.pop %v1176
      %v1178 = vadd.f32 %v1177, 1.0
      %v1179 = vrcp.pop %v1178
      %v1180 = vmul.f32 1.0, %v1179
      %v1181 = vmul.f32 %v1169, %v1180
      %v1182 = vpack.c.bf16 %v1181, %v1181
      %v1183 = vld [vmem:[%s11] sm:$0xf]
      %v1184 = vld [vmem:[%s11 + $0x4] sm:$0xf]
      %v1185 = vld [vmem:[%s11 + $0x8] sm:$0xf]
      %v1186 = vld [vmem:[%s11 + $0xc] sm:$0xf]
      %v1187 = vld [vmem:[%s11 + $0x10] sm:$0xf]
      %v1188 = vld [vmem:[%s11 + $0x14] sm:$0xf]
      %v1189 = vld [vmem:[%s11 + $0x18] sm:$0xf]
      %v1190 = vld [vmem:[%s11 + $0x1c] sm:$0xf]
      %v1191 = vld [vmem:[%s11 + $0x20] sm:$0xf]
      %v1192 = vld [vmem:[%s11 + $0x24] sm:$0xf]
      %v1193 = vld [vmem:[%s11 + $0x28] sm:$0xf]
      %v1194 = vld [vmem:[%s11 + $0x2c] sm:$0xf]
      %v1195 = vld [vmem:[%s11 + $0x30] sm:$0xf]
      %v1196 = vld [vmem:[%s11 + $0x34] sm:$0xf]
      %v1197 = vld [vmem:[%s11 + $0x38] sm:$0xf]
      %v1198 = vld [vmem:[%s11 + $0x3c] sm:$0xf]
      %v1215 = vunpack.c.l.b16 %v1183
      %v1216 = vunpack.c.l.b16 %v1184
      %v1217 = vunpack.c.l.b16 %v1185
      %v1218 = vunpack.c.l.b16 %v1186
      %v1219 = vunpack.c.l.b16 %v1187
      %v1220 = vunpack.c.l.b16 %v1188
      %v1221 = vunpack.c.l.b16 %v1189
      %v1222 = vunpack.c.l.b16 %v1190
      %v1223 = vunpack.c.l.b16 %v1191
      %v1224 = vunpack.c.l.b16 %v1192
      %v1225 = vunpack.c.l.b16 %v1193
      %v1226 = vunpack.c.l.b16 %v1194
      %v1227 = vunpack.c.l.b16 %v1195
      %v1228 = vunpack.c.l.b16 %v1196
      %v1229 = vunpack.c.l.b16 %v1197
      %v1230 = vunpack.c.l.b16 %v1198
      %v1231 = vpack.c.b16 %v1216, %v1215
      %v1232 = vpack.c.b16 %v1218, %v1217
      %v1233 = vpack.c.b16 %v1220, %v1219
      %v1234 = vpack.c.b16 %v1222, %v1221
      %v1235 = vpack.c.b16 %v1224, %v1223
      %v1236 = vpack.c.b16 %v1226, %v1225
      %v1237 = vpack.c.b16 %v1228, %v1227
      %v1238 = vpack.c.b16 %v1230, %v1229
      %1247 = vmatprep.subr.bf16.mxu0 0
      %1248 = vmatpush1.bf16.msra.mxu0 %v1231
      %1249 = vmatprep.subr.bf16.mxu0 0
      %1250 = vmatpush1.bf16.msra.mxu0 %v1232
      %1251 = vmatprep.subr.bf16.mxu0 0
      %1252 = vmatpush1.bf16.msra.mxu0 %v1233
      %1253 = vmatprep.subr.bf16.mxu0 0
      %1254 = vmatpush1.bf16.msra.mxu0 %v1234
      %1255 = vmatprep.subr.bf16.mxu0 0
      %1256 = vmatpush1.bf16.msra.mxu0 %v1235
      %1257 = vmatprep.subr.bf16.mxu0 0
      %1258 = vmatpush1.bf16.msra.mxu0 %v1236
      %1259 = vmatprep.subr.bf16.mxu0 0
      %1260 = vmatpush1.bf16.msra.mxu0 %v1237
      %1261 = vmatprep.subr.bf16.mxu0 0
      %1262 = vmatpush1.bf16.msra.mxu0 %v1238
      %1263 = vmatprep.subr.bf16.mxu0 0
      %1264 = vmatpush1.bf16.msra.mxu0 0
      %1265 = vmatprep.subr.bf16.mxu0 0
      %1266 = vmatpush1.bf16.msra.mxu0 0
      %1267 = vmatprep.subr.bf16.mxu0 0
      %1268 = vmatpush1.bf16.msra.mxu0 0
      %1269 = vmatprep.subr.bf16.mxu0 0
      %1270 = vmatpush1.bf16.msra.mxu0 0
      %1271 = vmatprep.subr.bf16.mxu0 0
      %1272 = vmatpush1.bf16.msra.mxu0 0
      %1273 = vmatprep.subr.bf16.mxu0 0
      %1274 = vmatpush1.bf16.msra.mxu0 0
      %1275 = vmatprep.subr.bf16.mxu0 0
      %1276 = vmatpush1.bf16.msra.mxu0 0
      %1277 = vmatprep.subr.bf16.mxu0 0
      %1278 = vmatpush1.bf16.msra.mxu0 0
      %1279 = vmatprep.mubr.bf16.mxu0 0
      %1280 = vmatmul.mubr.bf16.gmra.mrb[0].mxu0 %v1182
      %v1281 = vpop.f32.mrb[0].mxu0
      %v1282 = vadd.f32 0.0, %v1281
      %v1283 = vpop.f32.mrb[0].mxu0
      %v1284 = vpop.f32.mrb[0].mxu0
      %v1285 = vpop.f32.mrb[0].mxu0
      %1286 = vdwg.mxu0
      %v1287 = vadd.f32 %v1077, %v1282
      %v1288 = vld [vmem:[%s12] sm:$0x1]
      %v1290 = vlaneseq
      %v1291 = vshrl.u32 %v1290, 7
      %v1292 = vsub.s32 0, %v1291
      %v1293 = vrot.slane %v1288, %v1292
      %v1295 = vadd.f32 %v1287, %v1293
      %1296 = vst.msk [vmem:[%s435] sm:$0x1f] %vm438, %v1295
      %p1297 = scmp.lt.s32.totalorder %s24, 1
      %s1298 = scalar_select %p1297, %s24, 1
      %s1299 = smul.addr %s1298, 8
      %s1300 = scalar_lea.vmem %s13, %s1299
      // Predicated region
      $region73: #{fwd.12} parent=71 // pred_check
        %p1301 = pneg %p320
      $region74: #{fwd.12} parent=71 // pred_check_branch
        %1303 = sbr.rel (%p1301) target = $region76
      $region75: #{fwd.12} parent=71 // pred_region
        _
      $region76: #{fwd.12} parent=71 // pred_fallthru
        _
    $region72: #{fwd.12} parent=5 // pred_fallthru
      _
    %p1304 = scmp.le.s32.totalorder 2, %s19
    // Predicated region
    $region77: #{fwd.12} parent=5 // pred_check
      %p1305 = pneg %p1304
    $region78: #{fwd.12} parent=5 // pred_check_branch
      %1307 = sbr.rel (%p1305) target = $region80
    $region79: #{fwd.12} parent=5 // pred_region
      %s1308 = ssub.s32 %s19, 2
      // Predicated region
      $region81: #{fwd.12} parent=79 // pred_check
        %p1309 = pneg %p326
      $region82: #{fwd.12} parent=79 // pred_check_branch
        %1311 = sbr.rel (%p1309) target = $region84
      $region83: #{fwd.12} parent=79 // pred_region
        %p1312 = scmp.lt.s32.totalorder %s25, 1
        %s1313 = scalar_select %p1312, %s25, 1
        %s1314 = smul.addr %s1313, 8
        %s1315 = scalar_lea.vmem %s13, %s1314
      $region84: #{fwd.12} parent=79 // pred_fallthru
        _
    $region80: #{fwd.12} parent=5 // pred_fallthru
      _
  $region6: #{fwd.12} parent=0 // loop_footer
    %s23 = sadd.s32 1, %s19
  $region7: #{fwd.12} parent=0 // loop_footer_branch
    %18 = sbr.rel target = $region3
  $region8: #{fwd.12} parent=0 // loop_exit
    _

// kernel: fwd.15
$region0: #{fwd.15}
  #allocation0 [shape = 'u32[]', space=smem, size = 0x4, offset = 0x4, fixed_abs, tag = 'smem constant byte address 0x4 - core index']
  #allocation1 [shape = 'u32[144,128]{1,0:T(1,128)}', space=vmem, size = 0x12000, scoped, tag = 'internal scratch']
  #allocation2 [shape = 'f32[16,32]{1,0:T(8,128)}', space=vmem, size = 0x2000, scoped, tag = 'scratch operand']
  %s0 = inlined_call_operand.vmem [shape: f32[16,8], index: 0, kind: input, shape index: {}]
  %s1 = inlined_call_operand.vmem [shape: bf16[8,32], index: 1, kind: input, shape index: {}]
  %s2 = inlined_call_operand.vmem [shape: f32[16,32], index: 2, kind: output, shape index: {}]
  %s3 = sld [smem:[#allocation0]]
  $region26: #{fwd.15} parent=0
    _
  %s5 = ssub.s32 1, %s3
  %s6 = scalar_select 0, %s5, %s3
  // Predicated region
  $region2: #{fwd.15} parent=0 // pred_check
    _
  $region3: #{fwd.15} parent=0 // pred_check_branch
    %8 = sbr.rel (0) target = $region5
  $region4: #{fwd.15} parent=0 // pred_region
    _
  $region5: #{fwd.15} parent=0 // pred_fallthru
    _
  // Predicated region
  $region6: #{fwd.15} parent=0 // pred_check
    _
  $region7: #{fwd.15} parent=0 // pred_check_branch
    %10 = sbr.rel (0) target = $region9
  $region8: #{fwd.15} parent=0 // pred_region
    _
  $region9: #{fwd.15} parent=0 // pred_fallthru
    _
  %v12 = vld [vmem:[%s0] sm:$0xff]
  %v13 = vld [vmem:[%s0 + $0x8] sm:$0xff]
  %v14 = vpack.c.bf16 %v13, %v12
  %p15 = scmp.eq.s32.totalorder 0, 0
  // Predicated region
  $region10: #{fwd.15} parent=0 // pred_check
    %p16 = pneg %p15
  $region11: #{fwd.15} parent=0 // pred_check_branch
    %18 = sbr.rel (%p16) target = $region13
  $region12: #{fwd.15} parent=0 // pred_region
    %vm19 = vcmask 261120
    %20 = vst.msk [vmem:[#allocation2] sm:$0xff] %vm19, 0.0
    %21 = vst.msk [vmem:[#allocation2 + $0x8] sm:$0xff] %vm19, 0.0
  $region13: #{fwd.15} parent=0 // pred_fallthru
    _
  %v22 = vld [vmem:[#allocation2] sm:$0xff]
  %v23 = vld [vmem:[#allocation2 + $0x8] sm:$0xff]
  %v24 = vld [vmem:[%s1] sm:$0xf]
  %vm25 = vcmask 64512
  %v27 = vsel %vm25, %v14, 0
  %vm29 = vcmask 1043456
  %v31 = vsel %vm29, %v24, 0
  %33 = vmatprep.subr.bf16.mxu0 0
  %34 = vmatpush1.bf16.msra.mxu0 %v31
  %35 = vmatprep.subr.bf16.mxu0 0
  %36 = vmatpush1.bf16.msra.mxu0 0
  %37 = vmatprep.subr.bf16.mxu0 0
  %38 = vmatpush1.bf16.msra.mxu0 0
  %39 = vmatprep.subr.bf16.mxu0 0
  %40 = vmatpush1.bf16.msra.mxu0 0
  %41 = vmatprep.subr.bf16.mxu0 0
  %42 = vmatpush1.bf16.msra.mxu0 0
  %43 = vmatprep.subr.bf16.mxu0 0
  %44 = vmatpush1.bf16.msra.mxu0 0
  %45 = vmatprep.subr.bf16.mxu0 0
  %46 = vmatpush1.bf16.msra.mxu0 0
  %47 = vmatprep.subr.bf16.mxu0 0
  %48 = vmatpush1.bf16.msra.mxu0 0
  %49 = vmatprep.subr.bf16.mxu0 0
  %50 = vmatpush1.bf16.msra.mxu0 0
  %51 = vmatprep.subr.bf16.mxu0 0
  %52 = vmatpush1.bf16.msra.mxu0 0
  %53 = vmatprep.subr.bf16.mxu0 0
  %54 = vmatpush1.bf16.msra.mxu0 0
  %55 = vmatprep.subr.bf16.mxu0 0
  %56 = vmatpush1.bf16.msra.mxu0 0
  %57 = vmatprep.subr.bf16.mxu0 0
  %58 = vmatpush1.bf16.msra.mxu0 0
  %59 = vmatprep.subr.bf16.mxu0 0
  %60 = vmatpush1.bf16.msra.mxu0 0
  %61 = vmatprep.subr.bf16.mxu0 0
  %62 = vmatpush1.bf16.msra.mxu0 0
  %63 = vmatprep.subr.bf16.mxu0 0
  %64 = vmatpush1.bf16.msra.mxu0 0
  %65 = vmatprep.mubr.bf16.mxu0 0
  %66 = vmatmul.mubr.bf16.gmra.mrb[0].mxu0 %v27
  %v67 = vpop.f32.mrb[0].mxu0
  %v68 = vadd.f32 0.0, %v67
  %v69 = vpop.f32.mrb[0].mxu0
  %v70 = vpop.f32.mrb[0].mxu0
  %v71 = vadd.f32 0.0, %v70
  %v72 = vpop.f32.mrb[0].mxu0
  %73 = vdwg.mxu0
  %v74 = vadd.f32 %v22, %v68
  %v75 = vadd.f32 %v23, %v71
  %vm76 = vcmask 261120
  %77 = vst.msk [vmem:[#allocation2] sm:$0xff] %vm76, %v74
  %78 = vst.msk [vmem:[#allocation2 + $0x8] sm:$0xff] %vm76, %v75
  // Predicated region
  $region14: #{fwd.15} parent=0 // pred_check
    %p79 = pneg %p15
  $region15: #{fwd.15} parent=0 // pred_check_branch
    %81 = sbr.rel (%p79) target = $region17
  $region16: #{fwd.15} parent=0 // pred_region
    %v82 = vld [vmem:[#allocation2] sm:$0xff]
    %v83 = vld [vmem:[#allocation2 + $0x8] sm:$0xff]
    %84 = vst.msk [vmem:[%s2] sm:$0xff] %vm76, %v82
    %85 = vst.msk [vmem:[%s2 + $0x8] sm:$0xff] %vm76, %v83
  $region17: #{fwd.15} parent=0 // pred_fallthru
    _
  // Predicated region
  $region18: #{fwd.15} parent=0 // pred_check
    _
  $region19: #{fwd.15} parent=0 // pred_check_branch
    %87 = sbr.rel (0) target = $region21
  $region20: #{fwd.15} parent=0 // pred_region
    _
  $region21: #{fwd.15} parent=0 // pred_fallthru
    _
  // Predicated region
  $region22: #{fwd.15} parent=0 // pred_check
    _
  $region23: #{fwd.15} parent=0 // pred_check_branch
    %89 = sbr.rel (0) target = $region25
  $region24: #{fwd.15} parent=0 // pred_region
    _
  $region25: #{fwd.15} parent=0 // pred_fallthru
    _

// kernel: fwd.16
$region0: #{fwd.16}
  #allocation0 [shape = 'u32[]', space=smem, size = 0x4, offset = 0x4, fixed_abs, tag = 'smem constant byte address 0x4 - core index']
  #allocation1 [shape = 'u32[144,128]{1,0:T(1,128)}', space=vmem, size = 0x12000, scoped, tag = 'internal scratch']
  %s0 = inlined_call_operand.vmem [shape: f32[18,32], index: 0, kind: input, shape index: {}]
  %s1 = inlined_call_operand.vmem [shape: f32[1,32], index: 1, kind: input, shape index: {}]
  %s2 = inlined_call_operand.vmem [shape: f32[1,32], index: 2, kind: input, shape index: {}]
  %s3 = inlined_call_operand.vmem [shape: f32[18,32], index: 3, kind: output, shape index: {}]
  %s4 = sld [smem:[#allocation0]]
  $region22: #{fwd.16} parent=0
    _
  %s6 = ssub.s32 1, %s4
  %s7 = scalar_select 0, %s6, %s4
  // Predicated region
  $region2: #{fwd.16} parent=0 // pred_check
    _
  $region3: #{fwd.16} parent=0 // pred_check_branch
    %9 = sbr.rel (0) target = $region5
  $region4: #{fwd.16} parent=0 // pred_region
    _
  $region5: #{fwd.16} parent=0 // pred_fallthru
    _
  // Predicated region
  $region6: #{fwd.16} parent=0 // pred_check
    _
  $region7: #{fwd.16} parent=0 // pred_check_branch
    %11 = sbr.rel (0) target = $region9
  $region8: #{fwd.16} parent=0 // pred_region
    _
  $region9: #{fwd.16} parent=0 // pred_fallthru
    _
  // Predicated region
  $region10: #{fwd.16} parent=0 // pred_check
    _
  $region11: #{fwd.16} parent=0 // pred_check_branch
    %13 = sbr.rel (0) target = $region13
  $region12: #{fwd.16} parent=0 // pred_region
    _
  $region13: #{fwd.16} parent=0 // pred_fallthru
    _
  %v14 = vld [vmem:[%s0] sm:$0xff]
  %v15 = vld [vmem:[%s0 + $0x8] sm:$0xff]
  %v16 = vld [vmem:[%s0 + $0x10] sm:$0x3]
  %vm17 = vcmask 261120
  %v18 = vsel %vm17, %v14, 0.0
  %19 = vadd.xlane.f32.xlu0 %v18
  %v20 = vpop.xlane.xlu0 %19
  %v21 = vsel %vm17, %v15, 0.0
  %22 = vadd.xlane.f32.xlu0 %v21
  %v23 = vpop.xlane.xlu0 %22
  %vm24 = vcmask 254976
  %v25 = vsel %vm24, %v16, 0.0
  %26 = vadd.xlane.f32.xlu0 %v25
  %v27 = vpop.xlane.xlu0 %26
  %v28 = vrcp.pop 32.0
  %v29 = vmul.f32 %v20, %v28
  %v30 = vmul.f32 %v23, %v28
  %v31 = vmul.f32 %v27, %v28
  %v32 = vsub.f32 %v14, %v29
  %v33 = vsub.f32 %v15, %v30
  %v34 = vsub.f32 %v16, %v31
  %v35 = vmul.f32 %v32, %v32
  %v36 = vmul.f32 %v33, %v33
  %v37 = vmul.f32 %v34, %v34
  %v38 = vsel %vm17, %v35, 0.0
  %39 = vadd.xlane.f32.xlu0 %v38
  %v40 = vpop.xlane.xlu0 %39
  %v41 = vsel %vm17, %v36, 0.0
  %42 = vadd.xlane.f32.xlu0 %v41
  %v43 = vpop.xlane.xlu0 %42
  %v44 = vsel %vm24, %v37, 0.0
  %45 = vadd.xlane.f32.xlu0 %v44
  %v46 = vpop.xlane.xlu0 %45
  %v47 = vmul.f32 %v40, %v28
  %v48 = vmul.f32 %v43, %v28
  %v49 = vmul.f32 %v46, %v28
  %v50 = vadd.f32 %v47, 1e-05
  %v51 = vadd.f32 %v48, 1e-05
  %v52 = vadd.f32 %v49, 1e-05
  %v53 = vrsqrt.pop %v50
  %v54 = vrsqrt.pop %v51
  %v55 = vrsqrt.pop %v52
  %v56 = vmul.f32 %v32, %v53
  %v57 = vmul.f32 %v33, %v54
  %v58 = vmul.f32 %v34, %v55
  %v59 = vld [vmem:[%s1] sm:$0x1]
  %v61 = vlaneseq
  %v62 = vshrl.u32 %v61, 7
  %v63 = vsub.s32 0, %v62
  %v64 = vrot.slane %v59, %v63
  %v66 = vmul.f32 %v56, %v64
  %v67 = vmul.f32 %v57, %v64
  %v68 = vmul.f32 %v58, %v64
  %v69 = vld [vmem:[%s2] sm:$0x1]
  %v71 = vlaneseq
  %v72 = vshrl.u32 %v71, 7
  %v73 = vsub.s32 0, %v72
  %v74 = vrot.slane %v69, %v73
  %v76 = vadd.f32 %v66, %v74
  %v77 = vadd.f32 %v67, %v74
  %v78 = vadd.f32 %v68, %v74
  %79 = vst.msk [vmem:[%s3] sm:$0xff] %vm17, %v76
  %80 = vst.msk [vmem:[%s3 + $0x8] sm:$0xff] %vm17, %v77
  %81 = vst.msk [vmem:[%s3 + $0x10] sm:$0x3] %vm24, %v78
  // Predicated region
  $region14: #{fwd.16} parent=0 // pred_check
    _
  $region15: #{fwd.16} parent=0 // pred_check_branch
    %83 = sbr.rel (0) target = $region17
  $region16: #{fwd.16} parent=0 // pred_region
    _
  $region17: #{fwd.16} parent=0 // pred_fallthru
    _
  // Predicated region
  $region18: #{fwd.16} parent=0 // pred_check
    _
  $region19: #{fwd.16} parent=0 // pred_check_branch
    %85 = sbr.rel (0) target = $region21
  $region20: #{fwd.16} parent=0 // pred_region
    _
  $region21: #{fwd.16} parent=0 // pred_fallthru
    _

// kernel: fwd.17
$region0: #{fwd.17}
  #allocation0 [shape = 'u32[]', space=smem, size = 0x4, offset = 0x4, fixed_abs, tag = 'smem constant byte address 0x4 - core index']
  #allocation1 [shape = 'u32[144,128]{1,0:T(1,128)}', space=vmem, size = 0x12000, scoped, tag = 'internal scratch']
  #allocation2 [shape = 'f32[9,32]{1,0:T(8,128)}', space=vmem, size = 0x2000, scoped, tag = 'scratch operand']
  %s0 = inlined_call_operand.vmem [shape: f32[2,9,32], index: 0, kind: input, shape index: {}]
  %s1 = inlined_call_operand.vmem [shape: f32[1,32], index: 1, kind: input, shape index: {}]
  %s2 = inlined_call_operand.vmem [shape: f32[1,32], index: 2, kind: input, shape index: {}]
  %s3 = inlined_call_operand.vmem [shape: bf16[32,96], index: 3, kind: input, shape index: {}]
  %s4 = inlined_call_operand.vmem [shape: f32[1,96], index: 4, kind: input, shape index: {}]
  %s5 = inlined_call_operand.vmem [shape: bf16[32,32], index: 5, kind: input, shape index: {}]
  %s6 = inlined_call_operand.vmem [shape: f32[1,32], index: 6, kind: input, shape index: {}]
  %s7 = inlined_call_operand.vmem [shape: f32[1,32], index: 7, kind: input, shape index: {}]
  %s8 = inlined_call_operand.vmem [shape: f32[1,32], index: 8, kind: input, shape index: {}]
  %s9 = inlined_call_operand.vmem [shape: bf16[32,128], index: 9, kind: input, shape index: {}]
  %s10 = inlined_call_operand.vmem [shape: f32[1,128], index: 10, kind: input, shape index: {}]
  %s11 = inlined_call_operand.vmem [shape: bf16[128,32], index: 11, kind: input, shape index: {}]
  %s12 = inlined_call_operand.vmem [shape: f32[1,32], index: 12, kind: input, shape index: {}]
  %s13 = inlined_call_operand.vmem [shape: f32[2,9,32], index: 13, kind: output, shape index: {}]
  %s14 = sld [smem:[#allocation0]]
  $region85: #{fwd.17} parent=0
    _
  %s16 = ssub.s32 1, %s14
  %s17 = scalar_select 0, %s16, %s14
  loop: start=0, step=1, limit=4
  $region2: #{fwd.17} parent=0 // loop_pre_header
    _
  $region3: #{fwd.17} parent=0 // loop_header
    %s19 = sphi 0, %s23
    %p20 = scmp.ge.s32.totalorder %s19, 4
    %s29 = sphi 0, %s31
    %s32 = sphi 0, %s29
    %s33 = sphi 0, %s32
    %s49 = sphi 0, %s33
    %s53 = sphi 0, %s53
    %s55 = sphi 0, %s53
    %s56 = sphi 0, %s55
    %s70 = sphi 0, %s56
    %s74 = sphi 0, %s74
    %s76 = sphi 0, %s74
    %s77 = sphi 0, %s76
    %s91 = sphi 0, %s77
    %s95 = sphi 0, %s95
    %s97 = sphi 0, %s95
    %s98 = sphi 0, %s97
    %s112 = sphi 0, %s98
    %s116 = sphi 0, %s116
    %s118 = sphi 0, %s116
    %s119 = sphi 0, %s118
    %s133 = sphi 0, %s119
    %s137 = sphi 0, %s137
    %s139 = sphi 0, %s137
    %s140 = sphi 0, %s139
    %s154 = sphi 0, %s140
    %s158 = sphi 0, %s158
    %s160 = sphi 0, %s158
    %s161 = sphi 0, %s160
    %s175 = sphi 0, %s161
    %s179 = sphi 0, %s179
    %s181 = sphi 0, %s179
    %s182 = sphi 0, %s181
    %s196 = sphi 0, %s182
    %s200 = sphi 0, %s200
    %s202 = sphi 0, %s200
    %s203 = sphi 0, %s202
    %s217 = sphi 0, %s203
    %s221 = sphi 0, %s221
    %s223 = sphi 0, %s221
    %s224 = sphi 0, %s223
    %s238 = sphi 0, %s224
    %s242 = sphi 0, %s242
    %s244 = sphi 0, %s242
    %s245 = sphi 0, %s244
    %s259 = sphi 0, %s245
    %s263 = sphi 0, %s263
    %s265 = sphi 0, %s263
    %s266 = sphi 0, %s265
    %s280 = sphi 0, %s266
    %s284 = sphi 0, %s284
    %s286 = sphi 0, %s284
    %s287 = sphi 0, %s286
    %s301 = sphi 0, %s287
    %s307 = sphi 0, %s309
    %s310 = sphi 0, %s307
    %s311 = sphi 0, %s310
    %s327 = sphi 0, %s311
  $region4: #{fwd.17} parent=0 // loop_header_branch
    %22 = sbr.rel (%p20) target = $region8
  $region5: #{fwd.17} parent=0 // loop_body
    %s24 = ssub.s32 %s19, 1
    %s25 = ssub.s32 %s19, 2
    %s26 = sadd.s32 %s19, 1
    %s27 = ssub.s32 %s19, %s26
    %p28 = scmp.eq.s32.totalorder %s27, 0
    %s30 = sadd.s32 %s29, 1
    %s31 = scalar_select %p28, %s29, %s30
    %p34 = pneg %p28
    %p35 = scmp.eq.s32.totalorder %s19, 1
    %p36 = por %p34, %p35
    %p37 = scmp.ne.s32.totalorder %s29, %s32
    %p38 = scmp.eq.s32.totalorder %s19, 0
    %p39 = por %p37, %p38
    %p40 = scmp.ne.s32.totalorder %s29, %s32
    %p41 = scmp.eq.s32.totalorder %s24, 1
    %p42 = por %p40, %p41
    %p43 = scmp.ne.s32.totalorder %s32, %s33
    %p44 = scmp.eq.s32.totalorder %s24, 0
    %p45 = por %p43, %p44
    %p46 = scmp.ne.s32.totalorder %s32, %s33
    %p47 = scmp.eq.s32.totalorder %s25, 1
    %p48 = por %p46, %p47
    %p50 = scmp.ne.s32.totalorder %s33, %s49
    %p51 = scmp.eq.s32.totalorder %s25, 0
    %p52 = por %p50, %p51
    %s54 = sadd.s32 %s53, 1
    %p57 = scmp.eq.s32.totalorder %s19, 1
    %p58 = scmp.ne.s32.totalorder %s53, %s55
    %p59 = scmp.eq.s32.totalorder %s19, 0
    %p60 = por %p58, %p59
    %p61 = scmp.ne.s32.totalorder %s53, %s55
    %p62 = scmp.eq.s32.totalorder %s24, 1
    %p63 = por %p61, %p62
    %p64 = scmp.ne.s32.totalorder %s55, %s56
    %p65 = scmp.eq.s32.totalorder %s24, 0
    %p66 = por %p64, %p65
    %p67 = scmp.ne.s32.totalorder %s55, %s56
    %p68 = scmp.eq.s32.totalorder %s25, 1
    %p69 = por %p67, %p68
    %p71 = scmp.ne.s32.totalorder %s56, %s70
    %p72 = scmp.eq.s32.totalorder %s25, 0
    %p73 = por %p71, %p72
    %s75 = sadd.s32 %s74, 1
    %p78 = scmp.eq.s32.totalorder %s19, 1
    %p79 = scmp.ne.s32.totalorder %s74, %s76
    %p80 = scmp.eq.s32.totalorder %s19, 0
    %p81 = por %p79, %p80
    %p82 = scmp.ne.s32.totalorder %s74, %s76
    %p83 = scmp.eq.s32.totalorder %s24, 1
    %p84 = por %p82, %p83
    %p85 = scmp.ne.s32.totalorder %s76, %s77
    %p86 = scmp.eq.s32.totalorder %s24, 0
    %p87 = por %p85, %p86
    %p88 = scmp.ne.s32.totalorder %s76, %s77
    %p89 = scmp.eq.s32.totalorder %s25, 1
    %p90 = por %p88, %p89
    %p92 = scmp.ne.s32.totalorder %s77, %s91
    %p93 = scmp.eq.s32.totalorder %s25, 0
    %p94 = por %p92, %p93
    %s96 = sadd.s32 %s95, 1
    %p99 = scmp.eq.s32.totalorder %s19, 1
    %p100 = scmp.ne.s32.totalorder %s95, %s97
    %p101 = scmp.eq.s32.totalorder %s19, 0
    %p102 = por %p100, %p101
    %p103 = scmp.ne.s32.totalorder %s95, %s97
    %p104 = scmp.eq.s32.totalorder %s24, 1
    %p105 = por %p103, %p104
    %p106 = scmp.ne.s32.totalorder %s97, %s98
    %p107 = scmp.eq.s32.totalorder %s24, 0
    %p108 = por %p106, %p107
    %p109 = scmp.ne.s32.totalorder %s97, %s98
    %p110 = scmp.eq.s32.totalorder %s25, 1
    %p111 = por %p109, %p110
    %p113 = scmp.ne.s32.totalorder %s98, %s112
    %p114 = scmp.eq.s32.totalorder %s25, 0
    %p115 = por %p113, %p114
    %s117 = sadd.s32 %s116, 1
    %p120 = scmp.eq.s32.totalorder %s19, 1
    %p121 = scmp.ne.s32.totalorder %s116, %s118
    %p122 = scmp.eq.s32.totalorder %s19, 0
    %p123 = por %p121, %p122
    %p124 = scmp.ne.s32.totalorder %s116, %s118
    %p125 = scmp.eq.s32.totalorder %s24, 1
    %p126 = por %p124, %p125
    %p127 = scmp.ne.s32.totalorder %s118, %s119
    %p128 = scmp.eq.s32.totalorder %s24, 0
    %p129 = por %p127, %p128
    %p130 = scmp.ne.s32.totalorder %s118, %s119
    %p131 = scmp.eq.s32.totalorder %s25, 1
    %p132 = por %p130, %p131
    %p134 = scmp.ne.s32.totalorder %s119, %s133
    %p135 = scmp.eq.s32.totalorder %s25, 0
    %p136 = por %p134, %p135
    %s138 = sadd.s32 %s137, 1
    %p141 = scmp.eq.s32.totalorder %s19, 1
    %p142 = scmp.ne.s32.totalorder %s137, %s139
    %p143 = scmp.eq.s32.totalorder %s19, 0
    %p144 = por %p142, %p143
    %p145 = scmp.ne.s32.totalorder %s137, %s139
    %p146 = scmp.eq.s32.totalorder %s24, 1
    %p147 = por %p145, %p146
    %p148 = scmp.ne.s32.totalorder %s139, %s140
    %p149 = scmp.eq.s32.totalorder %s24, 0
    %p150 = por %p148, %p149
    %p151 = scmp.ne.s32.totalorder %s139, %s140
    %p152 = scmp.eq.s32.totalorder %s25, 1
    %p153 = por %p151, %p152
    %p155 = scmp.ne.s32.totalorder %s140, %s154
    %p156 = scmp.eq.s32.totalorder %s25, 0
    %p157 = por %p155, %p156
    %s159 = sadd.s32 %s158, 1
    %p162 = scmp.eq.s32.totalorder %s19, 1
    %p163 = scmp.ne.s32.totalorder %s158, %s160
    %p164 = scmp.eq.s32.totalorder %s19, 0
    %p165 = por %p163, %p164
    %p166 = scmp.ne.s32.totalorder %s158, %s160
    %p167 = scmp.eq.s32.totalorder %s24, 1
    %p168 = por %p166, %p167
    %p169 = scmp.ne.s32.totalorder %s160, %s161
    %p170 = scmp.eq.s32.totalorder %s24, 0
    %p171 = por %p169, %p170
    %p172 = scmp.ne.s32.totalorder %s160, %s161
    %p173 = scmp.eq.s32.totalorder %s25, 1
    %p174 = por %p172, %p173
    %p176 = scmp.ne.s32.totalorder %s161, %s175
    %p177 = scmp.eq.s32.totalorder %s25, 0
    %p178 = por %p176, %p177
    %s180 = sadd.s32 %s179, 1
    %p183 = scmp.eq.s32.totalorder %s19, 1
    %p184 = scmp.ne.s32.totalorder %s179, %s181
    %p185 = scmp.eq.s32.totalorder %s19, 0
    %p186 = por %p184, %p185
    %p187 = scmp.ne.s32.totalorder %s179, %s181
    %p188 = scmp.eq.s32.totalorder %s24, 1
    %p189 = por %p187, %p188
    %p190 = scmp.ne.s32.totalorder %s181, %s182
    %p191 = scmp.eq.s32.totalorder %s24, 0
    %p192 = por %p190, %p191
    %p193 = scmp.ne.s32.totalorder %s181, %s182
    %p194 = scmp.eq.s32.totalorder %s25, 1
    %p195 = por %p193, %p194
    %p197 = scmp.ne.s32.totalorder %s182, %s196
    %p198 = scmp.eq.s32.totalorder %s25, 0
    %p199 = por %p197, %p198
    %s201 = sadd.s32 %s200, 1
    %p204 = scmp.eq.s32.totalorder %s19, 1
    %p205 = scmp.ne.s32.totalorder %s200, %s202
    %p206 = scmp.eq.s32.totalorder %s19, 0
    %p207 = por %p205, %p206
    %p208 = scmp.ne.s32.totalorder %s200, %s202
    %p209 = scmp.eq.s32.totalorder %s24, 1
    %p210 = por %p208, %p209
    %p211 = scmp.ne.s32.totalorder %s202, %s203
    %p212 = scmp.eq.s32.totalorder %s24, 0
    %p213 = por %p211, %p212
    %p214 = scmp.ne.s32.totalorder %s202, %s203
    %p215 = scmp.eq.s32.totalorder %s25, 1
    %p216 = por %p214, %p215
    %p218 = scmp.ne.s32.totalorder %s203, %s217
    %p219 = scmp.eq.s32.totalorder %s25, 0
    %p220 = por %p218, %p219
    %s222 = sadd.s32 %s221, 1
    %p225 = scmp.eq.s32.totalorder %s19, 1
    %p226 = scmp.ne.s32.totalorder %s221, %s223
    %p227 = scmp.eq.s32.totalorder %s19, 0
    %p228 = por %p226, %p227
    %p229 = scmp.ne.s32.totalorder %s221, %s223
    %p230 = scmp.eq.s32.totalorder %s24, 1
    %p231 = por %p229, %p230
    %p232 = scmp.ne.s32.totalorder %s223, %s224
    %p233 = scmp.eq.s32.totalorder %s24, 0
    %p234 = por %p232, %p233
    %p235 = scmp.ne.s32.totalorder %s223, %s224
    %p236 = scmp.eq.s32.totalorder %s25, 1
    %p237 = por %p235, %p236
    %p239 = scmp.ne.s32.totalorder %s224, %s238
    %p240 = scmp.eq.s32.totalorder %s25, 0
    %p241 = por %p239, %p240
    %s243 = sadd.s32 %s242, 1
    %p246 = scmp.eq.s32.totalorder %s19, 1
    %p247 = scmp.ne.s32.totalorder %s242, %s244
    %p248 = scmp.eq.s32.totalorder %s19, 0
    %p249 = por %p247, %p248
    %p250 = scmp.ne.s32.totalorder %s242, %s244
    %p251 = scmp.eq.s32.totalorder %s24, 1
    %p252 = por %p250, %p251
    %p253 = scmp.ne.s32.totalorder %s244, %s245
    %p254 = scmp.eq.s32.totalorder %s24, 0
    %p255 = por %p253, %p254
    %p256 = scmp.ne.s32.totalorder %s244, %s245
    %p257 = scmp.eq.s32.totalorder %s25, 1
    %p258 = por %p256, %p257
    %p260 = scmp.ne.s32.totalorder %s245, %s259
    %p261 = scmp.eq.s32.totalorder %s25, 0
    %p262 = por %p260, %p261
    %s264 = sadd.s32 %s263, 1
    %p267 = scmp.eq.s32.totalorder %s19, 1
    %p268 = scmp.ne.s32.totalorder %s263, %s265
    %p269 = scmp.eq.s32.totalorder %s19, 0
    %p270 = por %p268, %p269
    %p271 = scmp.ne.s32.totalorder %s263, %s265
    %p272 = scmp.eq.s32.totalorder %s24, 1
    %p273 = por %p271, %p272
    %p274 = scmp.ne.s32.totalorder %s265, %s266
    %p275 = scmp.eq.s32.totalorder %s24, 0
    %p276 = por %p274, %p275
    %p277 = scmp.ne.s32.totalorder %s265, %s266
    %p278 = scmp.eq.s32.totalorder %s25, 1
    %p279 = por %p277, %p278
    %p281 = scmp.ne.s32.totalorder %s266, %s280
    %p282 = scmp.eq.s32.totalorder %s25, 0
    %p283 = por %p281, %p282
    %s285 = sadd.s32 %s284, 1
    %p288 = scmp.eq.s32.totalorder %s19, 1
    %p289 = scmp.ne.s32.totalorder %s284, %s286
    %p290 = scmp.eq.s32.totalorder %s19, 0
    %p291 = por %p289, %p290
    %p292 = scmp.ne.s32.totalorder %s284, %s286
    %p293 = scmp.eq.s32.totalorder %s24, 1
    %p294 = por %p292, %p293
    %p295 = scmp.ne.s32.totalorder %s286, %s287
    %p296 = scmp.eq.s32.totalorder %s24, 0
    %p297 = por %p295, %p296
    %p298 = scmp.ne.s32.totalorder %s286, %s287
    %p299 = scmp.eq.s32.totalorder %s25, 1
    %p300 = por %p298, %p299
    %p302 = scmp.ne.s32.totalorder %s287, %s301
    %p303 = scmp.eq.s32.totalorder %s25, 0
    %p304 = por %p302, %p303
    %s305 = ssub.s32 %s19, %s26
    %p306 = scmp.eq.s32.totalorder %s305, 0
    %s308 = sadd.s32 %s307, 1
    %s309 = scalar_select %p306, %s307, %s308
    %p312 = pneg %p306
    %p313 = scmp.eq.s32.totalorder %s19, 1
    %p314 = por %p312, %p313
    %p315 = scmp.ne.s32.totalorder %s307, %s310
    %p316 = scmp.eq.s32.totalorder %s19, 0
    %p317 = por %p315, %p316
    %p318 = scmp.ne.s32.totalorder %s307, %s310
    %p319 = scmp.eq.s32.totalorder %s24, 1
    %p320 = por %p318, %p319
    %p321 = scmp.ne.s32.totalorder %s310, %s311
    %p322 = scmp.eq.s32.totalorder %s24, 0
    %p323 = por %p321, %p322
    %p324 = scmp.ne.s32.totalorder %s310, %s311
    %p325 = scmp.eq.s32.totalorder %s25, 1
    %p326 = por %p324, %p325
    %p328 = scmp.ne.s32.totalorder %s311, %s327
    %p329 = scmp.eq.s32.totalorder %s25, 0
    %p330 = por %p328, %p329
    %p331 = scmp.le.s32.totalorder 1, %s19
    %p332 = scmp.lt.s32.totalorder %s19, 3
    %p333 = pnand %p331, %p332
    %p334 = pneg %p333
    // Predicated region
    $region9: #{fwd.17} parent=5 // pred_check
      _
    $region10: #{fwd.17} parent=5 // pred_check_branch
      %336 = sbr.rel (%p333) target = $region12
    $region11: #{fwd.17} parent=5 // pred_region
      %s337 = ssub.s32 %s19, 1
      // Predicated region
      $region13: #{fwd.17} parent=11 // pred_check
        %p338 = pneg %p66
      $region14: #{fwd.17} parent=11 // pred_check_branch
        %340 = sbr.rel (%p338) target = $region16
      $region15: #{fwd.17} parent=11 // pred_region
        _
      $region16: #{fwd.17} parent=11 // pred_fallthru
        _
      // Predicated region
      $region17: #{fwd.17} parent=11 // pred_check
        %p341 = pneg %p87
      $region18: #{fwd.17} parent=11 // pred_check_branch
        %343 = sbr.rel (%p341) target = $region20
      $region19: #{fwd.17} parent=11 // pred_region
        _
      $region20: #{fwd.17} parent=11 // pred_fallthru
        _
      // Predicated region
      $region21: #{fwd.17} parent=11 // pred_check
        %p344 = pneg %p108
      $region22: #{fwd.17} parent=11 // pred_check_branch
        %346 = sbr.rel (%p344) target = $region24
      $region23: #{fwd.17} parent=11 // pred_region
        _
      $region24: #{fwd.17} parent=11 // pred_fallthru
        _
      // Predicated region
      $region25: #{fwd.17} parent=11 // pred_check
        %p347 = pneg %p129
      $region26: #{fwd.17} parent=11 // pred_check_branch
        %349 = sbr.rel (%p347) target = $region28
      $region27: #{fwd.17} parent=11 // pred_region
        _
      $region28: #{fwd.17} parent=11 // pred_fallthru
        _
      // Predicated region
      $region29: #{fwd.17} parent=11 // pred_check
        %p350 = pneg %p150
      $region30: #{fwd.17} parent=11 // pred_check_branch
        %352 = sbr.rel (%p350) target = $region32
      $region31: #{fwd.17} parent=11 // pred_region
        _
      $region32: #{fwd.17} parent=11 // pred_fallthru
        _
      // Predicated region
      $region33: #{fwd.17} parent=11 // pred_check
        %p353 = pneg %p171
      $region34: #{fwd.17} parent=11 // pred_check_branch
        %355 = sbr.rel (%p353) target = $region36
      $region35: #{fwd.17} parent=11 // pred_region
        _
      $region36: #{fwd.17} parent=11 // pred_fallthru
        _
      // Predicated region
      $region37: #{fwd.17} parent=11 // pred_check
        %p356 = pneg %p192
      $region38: #{fwd.17} parent=11 // pred_check_branch
        %358 = sbr.rel (%p356) target = $region40
      $region39: #{fwd.17} parent=11 // pred_region
        _
      $region40: #{fwd.17} parent=11 // pred_fallthru
        _
      // Predicated region
      $region41: #{fwd.17} parent=11 // pred_check
        %p359 = pneg %p213
      $region42: #{fwd.17} parent=11 // pred_check_branch
        %361 = sbr.rel (%p359) target = $region44
      $region43: #{fwd.17} parent=11 // pred_region
        _
      $region44: #{fwd.17} parent=11 // pred_fallthru
        _
      // Predicated region
      $region45: #{fwd.17} parent=11 // pred_check
        %p362 = pneg %p234
      $region46: #{fwd.17} parent=11 // pred_check_branch
        %364 = sbr.rel (%p362) target = $region48
      $region47: #{fwd.17} parent=11 // pred_region
        _
      $region48: #{fwd.17} parent=11 // pred_fallthru
        _
      // Predicated region
      $region49: #{fwd.17} parent=11 // pred_check
        %p365 = pneg %p255
      $region50: #{fwd.17} parent=11 // pred_check_branch
        %367 = sbr.rel (%p365) target = $region52
      $region51: #{fwd.17} parent=11 // pred_region
        _
      $region52: #{fwd.17} parent=11 // pred_fallthru
        _
      // Predicated region
      $region53: #{fwd.17} parent=11 // pred_check
        %p368 = pneg %p276
      $region54: #{fwd.17} parent=11 // pred_check_branch
        %370 = sbr.rel (%p368) target = $region56
      $region55: #{fwd.17} parent=11 // pred_region
        _
      $region56: #{fwd.17} parent=11 // pred_fallthru
        _
      // Predicated region
      $region57: #{fwd.17} parent=11 // pred_check
        %p371 = pneg %p297
      $region58: #{fwd.17} parent=11 // pred_check_branch
        %373 = sbr.rel (%p371) target = $region60
      $region59: #{fwd.17} parent=11 // pred_region
        _
      $region60: #{fwd.17} parent=11 // pred_fallthru
        _
    $region12: #{fwd.17} parent=5 // pred_fallthru
      _
    %p374 = scmp.lt.s32.totalorder %s19, 2
    // Predicated region
    $region61: #{fwd.17} parent=5 // pred_check
      %p375 = pneg %p374
    $region62: #{fwd.17} parent=5 // pred_check_branch
      %377 = sbr.rel (%p375) target = $region64
    $region63: #{fwd.17} parent=5 // pred_region
      // Predicated region
      $region65: #{fwd.17} parent=63 // pred_check
        %p378 = pneg %p39
      $region66: #{fwd.17} parent=63 // pred_check_branch
        %380 = sbr.rel (%p378) target = $region68
      $region67: #{fwd.17} parent=63 // pred_region
        %p381 = scmp.lt.s32.totalorder %s19, 1
        %s382 = scalar_select %p381, %s19, 1
        %s383 = smul.addr %s382, 2
        %s384 = smul.addr %s383, 8
        %s385 = scalar_lea.vmem %s0, %s384
      $region68: #{fwd.17} parent=63 // pred_fallthru
        _
    $region64: #{fwd.17} parent=5 // pred_fallthru
      _
    %p386 = scmp.le.s32.totalorder 1, %s19
    %p387 = scmp.lt.s32.totalorder %s19, 3
    %p388 = pnand %p386, %p387
    %p389 = pneg %p388
    // Predicated region
    $region69: #{fwd.17} parent=5 // pred_check
      _
    $region70: #{fwd.17} parent=5 // pred_check_branch
      %391 = sbr.rel (%p388) target = $region72
    $region71: #{fwd.17} parent=5 // pred_region
      %s392 = ssub.s32 %s19, 1
      %p393 = scmp.lt.s32.totalorder %s24, 1
      %s394 = scalar_select %p393, %s24, 1
      %s395 = smul.addr %s394, 2
      %s396 = smul.addr %s395, 8
      %s397 = scalar_lea.vmem %s0, %s396
      %p398 = pneg %p45
      %p399 = pneg %p42
      %p400 = pneg %p66
      %p401 = pneg %p63
      %p402 = pneg %p87
      %p403 = pneg %p84
      %p404 = pneg %p108
      %p405 = pneg %p105
      %p406 = pneg %p129
      %p407 = pneg %p126
      %p408 = pneg %p150
      %p409 = pneg %p147
      %p410 = pneg %p171
      %p411 = pneg %p168
      %p412 = pneg %p192
      %p413 = pneg %p189
      %p414 = pneg %p213
      %p415 = pneg %p210
      %p416 = pneg %p234
      %p417 = pneg %p231
      %p418 = pneg %p255
      %p419 = pneg %p252
      %p420 = pneg %p276
      %p421 = pneg %p273
      %p422 = pneg %p297
      %p423 = pneg %p294
      %p424 = pneg %p323
      %p425 = pneg %p320
      %p426 = scmp.lt.s32.totalorder %s24, 1
      %s427 = scalar_select %p426, %s24, 1
      %s428 = smul.addr %s427, 2
      %s429 = smul.addr %s428, 8
      %s430 = scalar_lea.vmem %s13, %s429
      %p431 = scmp.lt.s32.totalorder %s24, 1
      %s432 = scalar_select %p431, %s24, 1
      %s433 = smul.addr %s432, 2
      %s434 = smul.addr %s433, 8
      %s435 = scalar_lea.vmem %s0, %s434
      %p436 = scmp.lt.s32.totalorder %s24, 1
      %s437 = scalar_select %p436, %s24, 1
      %s438 = smul.addr %s437, 2
      %s439 = smul.addr %s438, 8
      %s440 = scalar_lea.vmem %s13, %s439
      %v442 = vld [vmem:[%s435] sm:$0xff]
      %v443 = vld [vmem:[%s435 + $0x8] sm:$0x1]
      %vm444 = vcmask 261120
      %v445 = vsel %vm444, %v442, 0.0
      %446 = vadd.xlane.f32.xlu0 %v445
      %v447 = vpop.xlane.xlu0 %446
      %vm448 = vcmask 253952
      %v449 = vsel %vm448, %v443, 0.0
      %450 = vadd.xlane.f32.xlu0 %v449
      %v451 = vpop.xlane.xlu0 %450
      %v452 = vrcp.pop 32.0
      %v453 = vmul.f32 %v447, %v452
      %v454 = vmul.f32 %v451, %v452
      %v455 = vsub.f32 %v442, %v453
      %v456 = vsub.f32 %v443, %v454
      %v457 = vmul.f32 %v455, %v455
      %v458 = vmul.f32 %v456, %v456
      %v459 = vsel %vm444, %v457, 0.0
      %460 = vadd.xlane.f32.xlu0 %v459
      %v461 = vpop.xlane.xlu0 %460
      %v462 = vsel %vm448, %v458, 0.0
      %463 = vadd.xlane.f32.xlu0 %v462
      %v464 = vpop.xlane.xlu0 %463
      %v465 = vmul.f32 %v461, %v452
      %v466 = vmul.f32 %v464, %v452
      %v467 = vadd.f32 %v465, 1e-05
      %v468 = vadd.f32 %v466, 1e-05
      %v469 = vrsqrt.pop %v467
      %v470 = vrsqrt.pop %v468
      %v471 = vmul.f32 %v455, %v469
      %v472 = vmul.f32 %v456, %v470
      %v473 = vld [vmem:[%s1] sm:$0x1]
      %v475 = vlaneseq
      %v476 = vshrl.u32 %v475, 7
      %v477 = vsub.s32 0, %v476
      %v478 = vrot.slane %v473, %v477
      %v480 = vmul.f32 %v471, %v478
      %v481 = vmul.f32 %v472, %v478
      %v482 = vld [vmem:[%s2] sm:$0x1]
      %v484 = vlaneseq
      %v485 = vshrl.u32 %v484, 7
      %v486 = vsub.s32 0, %v485
      %v487 = vrot.slane %v482, %v486
      %v489 = vadd.f32 %v480, %v487
      %v490 = vadd.f32 %v481, %v487
      %v491 = vpack.c.bf16 %v490, %v489
      %v492 = vld [vmem:[%s3] sm:$0xf]
      %v493 = vld [vmem:[%s3 + $0x4] sm:$0xf]
      %v494 = vld [vmem:[%s3 + $0x8] sm:$0xf]
      %v495 = vld [vmem:[%s3 + $0xc] sm:$0xf]
      %v496 = vld [vmem:[%s4] sm:$0x1]
      %v498 = vlaneseq
      %v499 = vshrl.u32 %v498, 7
      %v500 = vsub.s32 0, %v499
      %v501 = vrot.slane %v496, %v500
      %v507 = vunpack.c.l.b16 %v492
      %v508 = vunpack.c.l.b16 %v493
      %v509 = vunpack.c.l.b16 %v494
      %v510 = vunpack.c.l.b16 %v495
      %v511 = vpack.c.b16 %v508, %v507
      %v512 = vpack.c.b16 %v510, %v509
      %v516 = vsel %vm444, %v491, 0
      %518 = vmatprep.subr.bf16.mxu0 0
      %519 = vmatpush1.bf16.msra.mxu0 %v511
      %520 = vmatprep.subr.bf16.mxu0 0
      %521 = vmatpush1.bf16.msra.mxu0 %v512
      %522 = vmatprep.subr.bf16.mxu0 0
      %523 = vmatpush1.bf16.msra.mxu0 0
      %524 = vmatprep.subr.bf16.mxu0 0
      %525 = vmatpush1.bf16.msra.mxu0 0
      %526 = vmatprep.subr.bf16.mxu0 0
      %527 = vmatpush1.bf16.msra.mxu0 0
      %528 = vmatprep.subr.bf16.mxu0 0
      %529 = vmatpush1.bf16.msra.mxu0 0
      %530 = vmatprep.subr.bf16.mxu0 0
      %531 = vmatpush1.bf16.msra.mxu0 0
      %532 = vmatprep.subr.bf16.mxu0 0
      %533 = vmatpush1.bf16.msra.mxu0 0
      %534 = vmatprep.subr.bf16.mxu0 0
      %535 = vmatpush1.bf16.msra.mxu0 0
      %536 = vmatprep.subr.bf16.mxu0 0
      %537 = vmatpush1.bf16.msra.mxu0 0
      %538 = vmatprep.subr.bf16.mxu0 0
      %539 = vmatpush1.bf16.msra.mxu0 0
      %540 = vmatprep.subr.bf16.mxu0 0
      %541 = vmatpush1.bf16.msra.mxu0 0
      %542 = vmatprep.subr.bf16.mxu0 0
      %543 = vmatpush1.bf16.msra.mxu0 0
      %544 = vmatprep.subr.bf16.mxu0 0
      %545 = vmatpush1.bf16.msra.mxu0 0
      %546 = vmatprep.subr.bf16.mxu0 0
      %547 = vmatpush1.bf16.msra.mxu0 0
      %548 = vmatprep.subr.bf16.mxu0 0
      %549 = vmatpush1.bf16.msra.mxu0 0
      %550 = vmatprep.mubr.bf16.mxu0 0
      %551 = vmatmul.mubr.bf16.gmra.mrb[0].mxu0 %v516
      %v552 = vpop.f32.mrb[0].mxu0
      %v553 = vadd.f32 %v501, %v552
      %v554 = vpop.f32.mrb[0].mxu0
      %v555 = vpop.f32.mrb[0].mxu0
      %v556 = vadd.f32 %v501, %v555
      %v557 = vpop.f32.mrb[0].mxu0
      %558 = vdwg.mxu0
      %v559 = vpack.c.bf16 %v556, %v553
      %561 = vrot.lane.b32.xlu0 %v559, 96
      %v562 = vpop.permute.xlu0 %561
      %vm563 = vcmask 64512
      %v565 = vsel %vm563, %v559, 0
      %v568 = vsel %vm563, %v562, 0
      %570 = vmatprep.subr.bf16.mxu0 0
      %571 = vmatpush1.bf16.xpose.msra.mxu0 %v568
      %572 = vmatprep.subr.bf16.mxu0 0
      %573 = vmatpush1.bf16.xpose.msra.mxu0 0
      %574 = vmatprep.subr.bf16.mxu0 0
      %575 = vmatpush1.bf16.xpose.msra.mxu0 0
      %576 = vmatprep.subr.bf16.mxu0 0
      %577 = vmatpush1.bf16.xpose.msra.mxu0 0
      %578 = vmatprep.subr.bf16.mxu0 0
      %579 = vmatpush1.bf16.xpose.msra.mxu0 0
      %580 = vmatprep.subr.bf16.mxu0 0
      %581 = vmatpush1.bf16.xpose.msra.mxu0 0
      %582 = vmatprep.subr.bf16.mxu0 0
      %583 = vmatpush1.bf16.xpose.msra.mxu0 0
      %584 = vmatprep.subr.bf16.mxu0 0
      %585 = vmatpush1.bf16.xpose.msra.mxu0 0
      %586 = vmatprep.subr.bf16.mxu0 0
      %587 = vmatpush1.bf16.xpose.msra.mxu0 0
      %588 = vmatprep.subr.bf16.mxu0 0
      %589 = vmatpush1.bf16.xpose.msra.mxu0 0
      %590 = vmatprep.subr.bf16.mxu0 0
      %591 = vmatpush1.bf16.xpose.msra.mxu0 0
      %592 = vmatprep.subr.bf16.mxu0 0
      %593 = vmatpush1.bf16.xpose.msra.mxu0 0
      %594 = vmatprep.subr.bf16.mxu0 0
      %595 = vmatpush1.bf16.xpose.msra.mxu0 0
      %596 = vmatprep.subr.bf16.mxu0 0
      %597 = vmatpush1.bf16.xpose.msra.mxu0 0
      %598 = vmatprep.subr.bf16.mxu0 0
      %599 = vmatpush1.bf16.xpose.msra.mxu0 0
      %600 = vmatprep.subr.bf16.mxu0 0
      %601 = vmatpush1.bf16.xpose.msra.mxu0 0
      %602 = vmatprep.mubr.bf16.mxu0 0
      %603 = vmatmul.mubr.bf16.gmra.mrb[0].mxu0 %v565
      %v604 = vpop.f32.mrb[0].mxu0
      %v605 = vadd.f32 0.0, %v604
      %v606 = vpop.f32.mrb[0].mxu0
      %v607 = vpop.f32.mrb[0].mxu0
      %v608 = vadd.f32 0.0, %v607
      %v609 = vpop.f32.mrb[0].mxu0
      %610 = vdwg.mxu0
      %v611 = vmul.f32 %v605, 0.35355338
      %v612 = vmul.f32 %v608, 0.35355338
      %vm613 = vcmask 72704
      %v614 = vsel %vm613, %v611, -inf
      %615 = vmax.xlane.f32.xlu0 %v614
      %v616 = vpop.xlane.xlu0 %615
      %vm617 = vcmask 65536
      %v618 = vsel %vm617, %v612, -inf
      %619 = vmax.xlane.f32.xlu0 %v618
      %v620 = vpop.xlane.xlu0 %619
      %v621 = vsub.f32 %v611, %v616
      %v622 = vsub.f32 %v612, %v620
      %v623 = vmul.f32 %v621, 1.442695
      %v624 = vpow.pop %v623
      %v625 = vmul.f32 %v622, 1.442695
      %v626 = vpow.pop %v625
      %v627 = vsel %vm613, %v624, 0.0
      %628 = vadd.xlane.f32.xlu0 %v627
      %v629 = vpop.xlane.xlu0 %628
      %v630 = vsel %vm617, %v626, 0.0
      %631 = vadd.xlane.f32.xlu0 %v630
      %v632 = vpop.xlane.xlu0 %631
      %v633 = vrcp.pop %v629
      %v634 = vrcp.pop %v632
      %v635 = vmul.f32 %v624, %v633
      %v636 = vmul.f32 %v626, %v634
      %v637 = vpack.c.bf16 %v636, %v635
      %638 = vrot.lane.b32.xlu0 %v559, 64
      %v639 = vpop.permute.xlu0 %638
      %v641 = vsel %vm613, %v637, 0
      %vm643 = vcmask 1043456
      %vm644 = vcmask 1044480
      %v645 = vsel %vm643, 4294967295, 65535
      %v646 = vsel %vm644, %v645, 0
      %v648 = vand.u32 %v639, %v646
      %650 = vmatprep.subr.bf16.mxu0 0
      %651 = vmatpush1.bf16.msra.mxu0 %v648
      %652 = vmatprep.subr.bf16.mxu0 0
      %653 = vmatpush1.bf16.msra.mxu0 0
      %654 = vmatprep.subr.bf16.mxu0 0
      %655 = vmatpush1.bf16.msra.mxu0 0
      %656 = vmatprep.subr.bf16.mxu0 0
      %657 = vmatpush1.bf16.msra.mxu0 0
      %658 = vmatprep.subr.bf16.mxu0 0
      %659 = vmatpush1.bf16.msra.mxu0 0
      %660 = vmatprep.subr.bf16.mxu0 0
      %661 = vmatpush1.bf16.msra.mxu0 0
      %662 = vmatprep.subr.bf16.mxu0 0
      %663 = vmatpush1.bf16.msra.mxu0 0
      %664 = vmatprep.subr.bf16.mxu0 0
      %665 = vmatpush1.bf16.msra.mxu0 0
      %666 = vmatprep.subr.bf16.mxu0 0
      %667 = vmatpush1.bf16.msra.mxu0 0
      %668 = vmatprep.subr.bf16.mxu0 0
      %669 = vmatpush1.bf16.msra.mxu0 0
      %670 = vmatprep.subr.bf16.mxu0 0
      %671 = vmatpush1.bf16.msra.mxu0 0
      %672 = vmatprep.subr.bf16.mxu0 0
      %673 = vmatpush1.bf16.msra.mxu0 0
      %674 = vmatprep.subr.bf16.mxu0 0
      %675 = vmatpush1.bf16.msra.mxu0 0
      %676 = vmatprep.subr.bf16.mxu0 0
      %677 = vmatpush1.bf16.msra.mxu0 0
      %678 = vmatprep.subr.bf16.mxu0 0
      %679 = vmatpush1.bf16.msra.mxu0 0
      %680 = vmatprep.subr.bf16.mxu0 0
      %681 = vmatpush1.bf16.msra.mxu0 0
      %682 = vmatprep.mubr.bf16.mxu0 0
      %683 = vmatmul.mubr.bf16.gmra.mrb[0].mxu0 %v641
      %v684 = vpop.f32.mrb[0].mxu0
      %v685 = vadd.f32 0.0, %v684
      %v686 = vpop.f32.mrb[0].mxu0
      %v687 = vpop.f32.mrb[0].mxu0
      %v688 = vadd.f32 0.0, %v687
      %v689 = vpop.f32.mrb[0].mxu0
      %690 = vdwg.mxu0
      %691 = vst.msk [vmem:[#allocation2] sm:$0xff] %vm563, %v685
      %vm692 = vcmask 57344
      %693 = vst.msk [vmem:[#allocation2 + $0x8] sm:$0x1] %vm692, %v688
      %694 = vrot.lane.b32.xlu0 %v559, 120
      %v695 = vpop.permute.xlu0 %694
      %696 = vrot.lane.b32.xlu0 %v559, 88
      %v697 = vpop.permute.xlu0 %696
      %v699 = vsel %vm563, %v695, 0
      %v702 = vsel %vm563, %v697, 0
      %704 = vmatprep.subr.bf16.mxu0 0
      %705 = vmatpush1.bf16.xpose.msra.mxu0 %v702
      %706 = vmatprep.subr.bf16.mxu0 0
      %707 = vmatpush1.bf16.xpose.msra.mxu0 0
      %708 = vmatprep.subr.bf16.mxu0 0
      %709 = vmatpush1.bf16.xpose.msra.mxu0 0
      %710 = vmatprep.subr.bf16.mxu0 0
      %711 = vmatpush1.bf16.xpose.msra.mxu0 0
      %712 = vmatprep.subr.bf16.mxu0 0
      %713 = vmatpush1.bf16.xpose.msra.mxu0 0
      %714 = vmatprep.subr.bf16.mxu0 0
      %715 = vmatpush1.bf16.xpose.msra.mxu0 0
      %716 = vmatprep.subr.bf16.mxu0 0
      %717 = vmatpush1.bf16.xpose.msra.mxu0 0
      %718 = vmatprep.subr.bf16.mxu0 0
      %719 = vmatpush1.bf16.xpose.msra.mxu0 0
      %720 = vmatprep.subr.bf16.mxu0 0
      %721 = vmatpush1.bf16.xpose.msra.mxu0 0
      %722 = vmatprep.subr.bf16.mxu0 0
      %723 = vmatpush1.bf16.xpose.msra.mxu0 0
      %724 = vmatprep.subr.bf16.mxu0 0
      %725 = vmatpush1.bf16.xpose.msra.mxu0 0
      %726 = vmatprep.subr.bf16.mxu0 0
      %727 = vmatpush1.bf16.xpose.msra.mxu0 0
      %728 = vmatprep.subr.bf16.mxu0 0
      %729 = vmatpush1.bf16.xpose.msra.mxu0 0
      %730 = vmatprep.subr.bf16.mxu0 0
      %731 = vmatpush1.bf16.xpose.msra.mxu0 0
      %732 = vmatprep.subr.bf16.mxu0 0
      %733 = vmatpush1.bf16.xpose.msra.mxu0 0
      %734 = vmatprep.subr.bf16.mxu0 0
      %735 = vmatpush1.bf16.xpose.msra.mxu0 0
      %736 = vmatprep.mubr.bf16.mxu0 0
      %737 = vmatmul.mubr.bf16.gmra.mrb[0].mxu0 %v699
      %v738 = vpop.f32.mrb[0].mxu0
      %v739 = vadd.f32 0.0, %v738
      %v740 = vpop.f32.mrb[0].mxu0
      %v741 = vpop.f32.mrb[0].mxu0
      %v742 = vadd.f32 0.0, %v741
      %v743 = vpop.f32.mrb[0].mxu0
      %744 = vdwg.mxu0
      %v745 = vmul.f32 %v739, 0.35355338
      %v746 = vmul.f32 %v742, 0.35355338
      %v747 = vsel %vm613, %v745, -inf
      %748 = vmax.xlane.f32.xlu0 %v747
      %v749 = vpop.xlane.xlu0 %748
      %v750 = vsel %vm617, %v746, -inf
      %751 = vmax.xlane.f32.xlu0 %v750
      %v752 = vpop.xlane.xlu0 %751
      %v753 = vsub.f32 %v745, %v749
      %v754 = vsub.f32 %v746, %v752
      %v755 = vmul.f32 %v753, 1.442695
      %v756 = vpow.pop %v755
      %v757 = vmul.f32 %v754, 1.442695
      %v758 = vpow.pop %v757
      %v759 = vsel %vm613, %v756, 0.0
      %760 = vadd.xlane.f32.xlu0 %v759
      %v761 = vpop.xlane.xlu0 %760
      %v762 = vsel %vm617, %v758, 0.0
      %763 = vadd.xlane.f32.xlu0 %v762
      %v764 = vpop.xlane.xlu0 %763
      %v765 = vrcp.pop %v761
      %v766 = vrcp.pop %v764
      %v767 = vmul.f32 %v756, %v765
      %v768 = vmul.f32 %v758, %v766
      %v769 = vpack.c.bf16 %v768, %v767
      %770 = vrot.lane.b32.xlu0 %v559, 56
      %v771 = vpop.permute.xlu0 %770
      %v773 = vsel %vm613, %v769, 0
      %v776 = vand.u32 %v771, %v646
      %778 = vmatprep.subr.bf16.mxu0 0
      %779 = vmatpush1.bf16.msra.mxu0 %v776
      %780 = vmatprep.subr.bf16.mxu0 0
      %781 = vmatpush1.bf16.msra.mxu0 0
      %782 = vmatprep.subr.bf16.mxu0 0
      %783 = vmatpush1.bf16.msra.mxu0 0
      %784 = vmatprep.subr.bf16.mxu0 0
      %785 = vmatpush1.bf16.msra.mxu0 0
      %786 = vmatprep.subr.bf16.mxu0 0
      %787 = vmatpush1.bf16.msra.mxu0 0
      %788 = vmatprep.subr.bf16.mxu0 0
      %789 = vmatpush1.bf16.msra.mxu0 0
      %790 = vmatprep.subr.bf16.mxu0 0
      %791 = vmatpush1.bf16.msra.mxu0 0
      %792 = vmatprep.subr.bf16.mxu0 0
      %793 = vmatpush1.bf16.msra.mxu0 0
      %794 = vmatprep.subr.bf16.mxu0 0
      %795 = vmatpush1.bf16.msra.mxu0 0
      %796 = vmatprep.subr.bf16.mxu0 0
      %797 = vmatpush1.bf16.msra.mxu0 0
      %798 = vmatprep.subr.bf16.mxu0 0
      %799 = vmatpush1.bf16.msra.mxu0 0
      %800 = vmatprep.subr.bf16.mxu0 0
      %801 = vmatpush1.bf16.msra.mxu0 0
      %802 = vmatprep.subr.bf16.mxu0 0
      %803 = vmatpush1.bf16.msra.mxu0 0
      %804 = vmatprep.subr.bf16.mxu0 0
      %805 = vmatpush1.bf16.msra.mxu0 0
      %806 = vmatprep.subr.bf16.mxu0 0
      %807 = vmatpush1.bf16.msra.mxu0 0
      %808 = vmatprep.subr.bf16.mxu0 0
      %809 = vmatpush1.bf16.msra.mxu0 0
      %810 = vmatprep.mubr.bf16.mxu0 0
      %811 = vmatmul.mubr.bf16.gmra.mrb[0].mxu0 %v773
      %v812 = vpop.f32.mrb[0].mxu0
      %v813 = vadd.f32 0.0, %v812
      %v814 = vpop.f32.mrb[0].mxu0
      %v815 = vpop.f32.mrb[0].mxu0
      %v816 = vadd.f32 0.0, %v815
      %v817 = vpop.f32.mrb[0].mxu0
      %818 = vdwg.mxu0
      %821 = vrot.lane.b32.xlu0 %v813, 8
      %v822 = vpop.permute.xlu0 %821
      %823 = vrot.lane.b32.xlu0 %v816, 8
      %v824 = vpop.permute.xlu0 %823
      %vm827 = vcmask 130112
      %828 = vst.msk [vmem:[#allocation2] sm:$0xff] %vm827, %v822
      %vm829 = vcmask 122944
      %830 = vst.msk [vmem:[#allocation2 + $0x8] sm:$0x1] %vm829, %v824
      %831 = vrot.lane.b32.xlu0 %v559, 112
      %v832 = vpop.permute.xlu0 %831
      %833 = vrot.lane.b32.xlu0 %v559, 80
      %v834 = vpop.permute.xlu0 %833
      %v836 = vsel %vm563, %v832, 0
      %v839 = vsel %vm563, %v834, 0
      %841 = vmatprep.subr.bf16.mxu0 0
      %842 = vmatpush1.bf16.xpose.msra.mxu0 %v839
      %843 = vmatprep.subr.bf16.mxu0 0
      %844 = vmatpush1.bf16.xpose.msra.mxu0 0
      %845 = vmatprep.subr.bf16.mxu0 0
      %846 = vmatpush1.bf16.xpose.msra.mxu0 0
      %847 = vmatprep.subr.bf16.mxu0 0
      %848 = vmatpush1.bf16.xpose.msra.mxu0 0
      %849 = vmatprep.subr.bf16.mxu0 0
      %850 = vmatpush1.bf16.xpose.msra.mxu0 0
      %851 = vmatprep.subr.bf16.mxu0 0
      %852 = vmatpush1.bf16.xpose.msra.mxu0 0
      %853 = vmatprep.subr.bf16.mxu0 0
      %854 = vmatpush1.bf16.xpose.msra.mxu0 0
      %855 = vmatprep.subr.bf16.mxu0 0
      %856 = vmatpush1.bf16.xpose.msra.mxu0 0
      %857 = vmatprep.subr.bf16.mxu0 0
      %858 = vmatpush1.bf16.xpose.msra.mxu0 0
      %859 = vmatprep.subr.bf16.mxu0 0
      %860 = vmatpush1.bf16.xpose.msra.mxu0 0
      %861 = vmatprep.subr.bf16.mxu0 0
      %862 = vmatpush1.bf16.xpose.msra.mxu0 0
      %863 = vmatprep.subr.bf16.mxu0 0
      %864 = vmatpush1.bf16.xpose.msra.mxu0 0
      %865 = vmatprep.subr.bf16.mxu0 0
      %866 = vmatpush1.bf16.xpose.msra.mxu0 0
      %867 = vmatprep.subr.bf16.mxu0 0
      %868 = vmatpush1.bf16.xpose.msra.mxu0 0
      %869 = vmatprep.subr.bf16.mxu0 0
      %870 = vmatpush1.bf16.xpose.msra.mxu0 0
      %871 = vmatprep.subr.bf16.mxu0 0
      %872 = vmatpush1.bf16.xpose.msra.mxu0 0
      %873 = vmatprep.mubr.bf16.mxu0 0
      %874 = vmatmul.mubr.bf16.gmra.mrb[0].mxu0 %v836
      %v875 = vpop.f32.mrb[0].mxu0
      %v876 = vadd.f32 0.0, %v875
      %v877 = vpop.f32.mrb[0].mxu0
      %v878 = vpop.f32.mrb[0].mxu0
      %v879 = vadd.f32 0.0, %v878
      %v880 = vpop.f32.mrb[0].mxu0
      %881 = vdwg.mxu0
      %v882 = vmul.f32 %v876, 0.35355338
      %v883 = vmul.f32 %v879, 0.35355338
      %v884 = vsel %vm613, %v882, -inf
      %885 = vmax.xlane.f32.xlu0 %v884
      %v886 = vpop.xlane.xlu0 %885
      %v887 = vsel %vm617, %v883, -inf
      %888 = vmax.xlane.f32.xlu0 %v887
      %v889 = vpop.xlane.xlu0 %888
      %v890 = vsub.f32 %v882, %v886
      %v891 = vsub.f32 %v883, %v889
      %v892 = vmul.f32 %v890, 1.442695
      %v893 = vpow.pop %v892
      %v894 = vmul.f32 %v891, 1.442695
      %v895 = vpow.pop %v894
      %v896 = vsel %vm613, %v893, 0.0
      %897 = vadd.xlane.f32.xlu0 %v896
      %v898 = vpop.xlane.xlu0 %897
      %v899 = vsel %vm617, %v895, 0.0
      %900 = vadd.xlane.f32.xlu0 %v899
      %v901 = vpop.xlane.xlu0 %900
      %v902 = vrcp.pop %v898
      %v903 = vrcp.pop %v901
      %v904 = vmul.f32 %v893, %v902
      %v905 = vmul.f32 %v895, %v903
      %v906 = vpack.c.bf16 %v905, %v904
      %907 = vrot.lane.b32.xlu0 %v559, 48
      %v908 = vpop.permute.xlu0 %907
      %v910 = vsel %vm613, %v906, 0
      %v913 = vand.u32 %v908, %v646
      %915 = vmatprep.subr.bf16.mxu0 0
      %916 = vmatpush1.bf16.msra.mxu0 %v913
      %917 = vmatprep.subr.bf16.mxu0 0
      %918 = vmatpush1.bf16.msra.mxu0 0
      %919 = vmatprep.subr.bf16.mxu0 0
      %920 = vmatpush1.bf16.msra.mxu0 0
      %921 = vmatprep.subr.bf16.mxu0 0
      %922 = vmatpush1.bf16.msra.mxu0 0
      %923 = vmatprep.subr.bf16.mxu0 0
      %924 = vmatpush1.bf16.msra.mxu0 0
      %925 = vmatprep.subr.bf16.mxu0 0
      %926 = vmatpush1.bf16.msra.mxu0 0
      %927 = vmatprep.subr.bf16.mxu0 0
      %928 = vmatpush1.bf16.msra.mxu0 0
      %929 = vmatprep.subr.bf16.mxu0 0
      %930 = vmatpush1.bf16.msra.mxu0 0
      %931 = vmatprep.subr.bf16.mxu0 0
      %932 = vmatpush1.bf16.msra.mxu0 0
      %933 = vmatprep.subr.bf16.mxu0 0
      %934 = vmatpush1.bf16.msra.mxu0 0
      %935 = vmatprep.subr.bf16.mxu0 0
      %936 = vmatpush1.bf16.msra.mxu0 0
      %937 = vmatprep.subr.bf16.mxu0 0
      %938 = vmatpush1.bf16.msra.mxu0 0
      %939 = vmatprep.subr.bf16.mxu0 0
      %940 = vmatpush1.bf16.msra.mxu0 0
      %941 = vmatprep.subr.bf16.mxu0 0
      %942 = vmatpush1.bf16.msra.mxu0 0
      %943 = vmatprep.subr.bf16.mxu0 0
      %944 = vmatpush1.bf16.msra.mxu0 0
      %945 = vmatprep.subr.bf16.mxu0 0
      %946 = vmatpush1.bf16.msra.mxu0 0
      %947 = vmatprep.mubr.bf16.mxu0 0
      %948 = vmatmul.mubr.bf16.gmra.mrb[0].mxu0 %v910
      %v949 = vpop.f32.mrb[0].mxu0
      %v950 = vadd.f32 0.0, %v949
      %v951 = vpop.f32.mrb[0].mxu0
      %v952 = vpop.f32.mrb[0].mxu0
      %v953 = vadd.f32 0.0, %v952
      %v954 = vpop.f32.mrb[0].mxu0
      %955 = vdwg.mxu0
      %958 = vrot.lane.b32.xlu0 %v950, 16
      %v959 = vpop.permute.xlu0 %958
      %960 = vrot.lane.b32.xlu0 %v953, 16
      %v961 = vpop.permute.xlu0 %960
      %vm964 = vcmask 195712
      %965 = vst.msk [vmem:[#allocation2] sm:$0xff] %vm964, %v959
      %vm966 = vcmask 188544
      %967 = vst.msk [vmem:[#allocation2 + $0x8] sm:$0x1] %vm966, %v961
      %968 = vrot.lane.b32.xlu0 %v559, 104
      %v969 = vpop.permute.xlu0 %968
      %970 = vrot.lane.b32.xlu0 %v559, 72
      %v971 = vpop.permute.xlu0 %970
      %v973 = vsel %vm563, %v969, 0
      %v976 = vsel %vm563, %v971, 0
      %978 = vmatprep.subr.bf16.mxu0 0
      %979 = vmatpush1.bf16.xpose.msra.mxu0 %v976
      %980 = vmatprep.subr.bf16.mxu0 0
      %981 = vmatpush1.bf16.xpose.msra.mxu0 0
      %982 = vmatprep.subr.bf16.mxu0 0
      %983 = vmatpush1.bf16.xpose.msra.mxu0 0
      %984 = vmatprep.subr.bf16.mxu0 0
      %985 = vmatpush1.bf16.xpose.msra.mxu0 0
      %986 = vmatprep.subr.bf16.mxu0 0
      %987 = vmatpush1.bf16.xpose.msra.mxu0 0
      %988 = vmatprep.subr.bf16.mxu0 0
      %989 = vmatpush1.bf16.xpose.msra.mxu0 0
      %990 = vmatprep.subr.bf16.mxu0 0
      %991 = vmatpush1.bf16.xpose.msra.mxu0 0
      %992 = vmatprep.subr.bf16.mxu0 0
      %993 = vmatpush1.bf16.xpose.msra.mxu0 0
      %994 = vmatprep.subr.bf16.mxu0 0
      %995 = vmatpush1.bf16.xpose.msra.mxu0 0
      %996 = vmatprep.subr.bf16.mxu0 0
      %997 = vmatpush1.bf16.xpose.msra.mxu0 0
      %998 = vmatprep.subr.bf16.mxu0 0
      %999 = vmatpush1.bf16.xpose.msra.mxu0 0
      %1000 = vmatprep.subr.bf16.mxu0 0
      %1001 = vmatpush1.bf16.xpose.msra.mxu0 0
      %1002 = vmatprep.subr.bf16.mxu0 0
      %1003 = vmatpush1.bf16.xpose.msra.mxu0 0
      %1004 = vmatprep.subr.bf16.mxu0 0
      %1005 = vmatpush1.bf16.xpose.msra.mxu0 0
      %1006 = vmatprep.subr.bf16.mxu0 0
      %1007 = vmatpush1.bf16.xpose.msra.mxu0 0
      %1008 = vmatprep.subr.bf16.mxu0 0
      %1009 = vmatpush1.bf16.xpose.msra.mxu0 0
      %1010 = vmatprep.mubr.bf16.mxu0 0
      %1011 = vmatmul.mubr.bf16.gmra.mrb[0].mxu0 %v973
      %v1012 = vpop.f32.mrb[0].mxu0
      %v1013 = vadd.f32 0.0, %v1012
      %v1014 = vpop.f32.mrb[0].mxu0
      %v1015 = vpop.f32.mrb[0].mxu0
      %v1016 = vadd.f32 0.0, %v1015
      %v1017 = vpop.f32.mrb[0].mxu0
      %1018 = vdwg.mxu0
      %v1019 = vmul.f32 %v1013, 0.35355338
      %v1020 = vmul.f32 %v1016, 0.35355338
      %v1021 = vsel %vm613, %v1019, -inf
      %1022 = vmax.xlane.f32.xlu0 %v1021
      %v1023 = vpop.xlane.xlu0 %1022
      %v1024 = vsel %vm617, %v1020, -inf
      %1025 = vmax.xlane.f32.xlu0 %v1024
      %v1026 = vpop.xlane.xlu0 %1025
      %v1027 = vsub.f32 %v1019, %v1023
      %v1028 = vsub.f32 %v1020, %v1026
      %v1029 = vmul.f32 %v1027, 1.442695
      %v1030 = vpow.pop %v1029
      %v1031 = vmul.f32 %v1028, 1.442695
      %v1032 = vpow.pop %v1031
      %v1033 = vsel %vm613, %v1030, 0.0
      %1034 = vadd.xlane.f32.xlu0 %v1033
      %v1035 = vpop.xlane.xlu0 %1034
      %v1036 = vsel %vm617, %v1032, 0.0
      %1037 = vadd.xlane.f32.xlu0 %v1036
      %v1038 = vpop.xlane.xlu0 %1037
      %v1039 = vrcp.pop %v1035
      %v1040 = vrcp.pop %v1038
      %v1041 = vmul.f32 %v1030, %v1039
      %v1042 = vmul.f32 %v1032, %v1040
      %v1043 = vpack.c.bf16 %v1042, %v1041
      %1044 = vrot.lane.b32.xlu0 %v559, 40
      %v1045 = vpop.permute.xlu0 %1044
      %v1047 = vsel %vm613, %v1043, 0
      %v1050 = vand.u32 %v1045, %v646
      %1052 = vmatprep.subr.bf16.mxu0 0
      %1053 = vmatpush1.bf16.msra.mxu0 %v1050
      %1054 = vmatprep.subr.bf16.mxu0 0
      %1055 = vmatpush1.bf16.msra.mxu0 0
      %1056 = vmatprep.subr.bf16.mxu0 0
      %1057 = vmatpush1.bf16.msra.mxu0 0
      %1058 = vmatprep.subr.bf16.mxu0 0
      %1059 = vmatpush1.bf16.msra.mxu0 0
      %1060 = vmatprep.subr.bf16.mxu0 0
      %1061 = vmatpush1.bf16.msra.mxu0 0
      %1062 = vmatprep.subr.bf16.mxu0 0
      %1063 = vmatpush1.bf16.msra.mxu0 0
      %1064 = vmatprep.subr.bf16.mxu0 0
      %1065 = vmatpush1.bf16.msra.mxu0 0
      %1066 = vmatprep.subr.bf16.mxu0 0
      %1067 = vmatpush1.bf16.msra.mxu0 0
      %1068 = vmatprep.subr.bf16.mxu0 0
      %1069 = vmatpush1.bf16.msra.mxu0 0
      %1070 = vmatprep.subr.bf16.mxu0 0
      %1071 = vmatpush1.bf16.msra.mxu0 0
      %1072 = vmatprep.subr.bf16.mxu0 0
      %1073 = vmatpush1.bf16.msra.mxu0 0
      %1074 = vmatprep.subr.bf16.mxu0 0
      %1075 = vmatpush1.bf16.msra.mxu0 0
      %1076 = vmatprep.subr.bf16.mxu0 0
      %1077 = vmatpush1.bf16.msra.mxu0 0
      %1078 = vmatprep.subr.bf16.mxu0 0
      %1079 = vmatpush1.bf16.msra.mxu0 0
      %1080 = vmatprep.subr.bf16.mxu0 0
      %1081 = vmatpush1.bf16.msra.mxu0 0
      %1082 = vmatprep.subr.bf16.mxu0 0
      %1083 = vmatpush1.bf16.msra.mxu0 0
      %1084 = vmatprep.mubr.bf16.mxu0 0
      %1085 = vmatmul.mubr.bf16.gmra.mrb[0].mxu0 %v1047
      %v1086 = vpop.f32.mrb[0].mxu0
      %v1087 = vadd.f32 0.0, %v1086
      %v1088 = vpop.f32.mrb[0].mxu0
      %v1089 = vpop.f32.mrb[0].mxu0
      %v1090 = vadd.f32 0.0, %v1089
      %v1091 = vpop.f32.mrb[0].mxu0
      %1092 = vdwg.mxu0
      %1095 = vrot.lane.b32.xlu0 %v1087, 24
      %v1096 = vpop.permute.xlu0 %1095
      %1097 = vrot.lane.b32.xlu0 %v1090, 24
      %v1098 = vpop.permute.xlu0 %1097
      %vm1101 = vcmask 261312
      %1102 = vst.msk [vmem:[#allocation2] sm:$0xff] %vm1101, %v1096
      %vm1103 = vcmask 254144
      %1104 = vst.msk [vmem:[#allocation2 + $0x8] sm:$0x1] %vm1103, %v1098
      %v1105 = vld [vmem:[#allocation2] sm:$0xff]
      %v1106 = vld [vmem:[#allocation2 + $0x8] sm:$0x1]
      %v1107 = vpack.c.bf16 %v1106, %v1105
      %v1108 = vld [vmem:[%s5] sm:$0xf]
      %v1109 = vld [vmem:[%s5 + $0x4] sm:$0xf]
      %v1110 = vld [vmem:[%s5 + $0x8] sm:$0xf]
      %v1111 = vld [vmem:[%s5 + $0xc] sm:$0xf]
      %v1116 = vunpack.c.l.b16 %v1108
      %v1117 = vunpack.c.l.b16 %v1109
      %v1118 = vunpack.c.l.b16 %v1110
      %v1119 = vunpack.c.l.b16 %v1111
      %v1120 = vpack.c.b16 %v1117, %v1116
      %v1121 = vpack.c.b16 %v1119, %v1118
      %v1125 = vsel %vm444, %v1107, 0
      %1127 = vmatprep.subr.bf16.mxu0 0
      %1128 = vmatpush1.bf16.msra.mxu0 %v1120
      %1129 = vmatprep.subr.bf16.mxu0 0
      %1130 = vmatpush1.bf16.msra.mxu0 %v1121
      %1131 = vmatprep.subr.bf16.mxu0 0
      %1132 = vmatpush1.bf16.msra.mxu0 0
      %1133 = vmatprep.subr.bf16.mxu0 0
      %1134 = vmatpush1.bf16.msra.mxu0 0
      %1135 = vmatprep.subr.bf16.mxu0 0
      %1136 = vmatpush1.bf16.msra.mxu0 0
      %1137 = vmatprep.subr.bf16.mxu0 0
      %1138 = vmatpush1.bf16.msra.mxu0 0
      %1139 = vmatprep.subr.bf16.mxu0 0
      %1140 = vmatpush1.bf16.msra.mxu0 0
      %1141 = vmatprep.subr.bf16.mxu0 0
      %1142 = vmatpush1.bf16.msra.mxu0 0
      %1143 = vmatprep.subr.bf16.mxu0 0
      %1144 = vmatpush1.bf16.msra.mxu0 0
      %1145 = vmatprep.subr.bf16.mxu0 0
      %1146 = vmatpush1.bf16.msra.mxu0 0
      %1147 = vmatprep.subr.bf16.mxu0 0
      %1148 = vmatpush1.bf16.msra.mxu0 0
      %1149 = vmatprep.subr.bf16.mxu0 0
      %1150 = vmatpush1.bf16.msra.mxu0 0
      %1151 = vmatprep.subr.bf16.mxu0 0
      %1152 = vmatpush1.bf16.msra.mxu0 0
      %1153 = vmatprep.subr.bf16.mxu0 0
      %1154 = vmatpush1.bf16.msra.mxu0 0
      %1155 = vmatprep.subr.bf16.mxu0 0
      %1156 = vmatpush1.bf16.msra.mxu0 0
      %1157 = vmatprep.subr.bf16.mxu0 0
      %1158 = vmatpush1.bf16.msra.mxu0 0
      %1159 = vmatprep.mubr.bf16.mxu0 0
      %1160 = vmatmul.mubr.bf16.gmra.mrb[0].mxu0 %v1125
      %v1161 = vpop.f32.mrb[0].mxu0
      %v1162 = vadd.f32 0.0, %v1161
      %v1163 = vpop.f32.mrb[0].mxu0
      %v1164 = vpop.f32.mrb[0].mxu0
      %v1165 = vadd.f32 0.0, %v1164
      %v1166 = vpop.f32.mrb[0].mxu0
      %1167 = vdwg.mxu0
      %v1168 = vadd.f32 %v442, %v1162
      %v1169 = vadd.f32 %v443, %v1165
      %v1170 = vld [vmem:[%s6] sm:$0x1]
      %v1172 = vlaneseq
      %v1173 = vshrl.u32 %v1172, 7
      %v1174 = vsub.s32 0, %v1173
      %v1175 = vrot.slane %v1170, %v1174
      %v1177 = vadd.f32 %v1168, %v1175
      %v1178 = vadd.f32 %v1169, %v1175
      %v1179 = vsel %vm444, %v1177, 0.0
      %1180 = vadd.xlane.f32.xlu0 %v1179
      %v1181 = vpop.xlane.xlu0 %1180
      %v1182 = vsel %vm448, %v1178, 0.0
      %1183 = vadd.xlane.f32.xlu0 %v1182
      %v1184 = vpop.xlane.xlu0 %1183
      %v1185 = vmul.f32 %v1181, %v452
      %v1186 = vmul.f32 %v1184, %v452
      %v1187 = vsub.f32 %v1177, %v1185
      %v1188 = vsub.f32 %v1178, %v1186
      %v1189 = vmul.f32 %v1187, %v1187
      %v1190 = vmul.f32 %v1188, %v1188
      %v1191 = vsel %vm444, %v1189, 0.0
      %1192 = vadd.xlane.f32.xlu0 %v1191
      %v1193 = vpop.xlane.xlu0 %1192
      %v1194 = vsel %vm448, %v1190, 0.0
      %1195 = vadd.xlane.f32.xlu0 %v1194
      %v1196 = vpop.xlane.xlu0 %1195
      %v1197 = vmul.f32 %v1193, %v452
      %v1198 = vmul.f32 %v1196, %v452
      %v1199 = vadd.f32 %v1197, 1e-05
      %v1200 = vadd.f32 %v1198, 1e-05
      %v1201 = vrsqrt.pop %v1199
      %v1202 = vrsqrt.pop %v1200
      %v1203 = vmul.f32 %v1187, %v1201
      %v1204 = vmul.f32 %v1188, %v1202
      %v1205 = vld [vmem:[%s7] sm:$0x1]
      %v1207 = vlaneseq
      %v1208 = vshrl.u32 %v1207, 7
      %v1209 = vsub.s32 0, %v1208
      %v1210 = vrot.slane %v1205, %v1209
      %v1212 = vmul.f32 %v1203, %v1210
      %v1213 = vmul.f32 %v1204, %v1210
      %v1214 = vld [vmem:[%s8] sm:$0x1]
      %v1216 = vlaneseq
      %v1217 = vshrl.u32 %v1216, 7
      %v1218 = vsub.s32 0, %v1217
      %v1219 = vrot.slane %v1214, %v1218
      %v1221 = vadd.f32 %v1212, %v1219
      %v1222 = vadd.f32 %v1213, %v1219
      %v1223 = vpack.c.bf16 %v1222, %v1221
      %v1224 = vld [vmem:[%s9] sm:$0xf]
      %v1225 = vld [vmem:[%s9 + $0x4] sm:$0xf]
      %v1226 = vld [vmem:[%s9 + $0x8] sm:$0xf]
      %v1227 = vld [vmem:[%s9 + $0xc] sm:$0xf]
      %v1228 = vld [vmem:[%s10] sm:$0x1]
      %v1230 = vlaneseq
      %v1231 = vshrl.u32 %v1230, 7
      %v1232 = vsub.s32 0, %v1231
      %v1233 = vrot.slane %v1228, %v1232
      %v1239 = vunpack.c.l.b16 %v1224
      %v1240 = vunpack.c.l.b16 %v1225
      %v1241 = vunpack.c.l.b16 %v1226
      %v1242 = vunpack.c.l.b16 %v1227
      %v1243 = vpack.c.b16 %v1240, %v1239
      %v1244 = vpack.c.b16 %v1242, %v1241
      %v1248 = vsel %vm444, %v1223, 0
      %1250 = vmatprep.subr.bf16.mxu0 0
      %1251 = vmatpush1.bf16.msra.mxu0 %v1243
      %1252 = vmatprep.subr.bf16.mxu0 0
      %1253 = vmatpush1.bf16.msra.mxu0 %v1244
      %1254 = vmatprep.subr.bf16.mxu0 0
      %1255 = vmatpush1.bf16.msra.mxu0 0
      %1256 = vmatprep.subr.bf16.mxu0 0
      %1257 = vmatpush1.bf16.msra.mxu0 0
      %1258 = vmatprep.subr.bf16.mxu0 0
      %1259 = vmatpush1.bf16.msra.mxu0 0
      %1260 = vmatprep.subr.bf16.mxu0 0
      %1261 = vmatpush1.bf16.msra.mxu0 0
      %1262 = vmatprep.subr.bf16.mxu0 0
      %1263 = vmatpush1.bf16.msra.mxu0 0
      %1264 = vmatprep.subr.bf16.mxu0 0
      %1265 = vmatpush1.bf16.msra.mxu0 0
      %1266 = vmatprep.subr.bf16.mxu0 0
      %1267 = vmatpush1.bf16.msra.mxu0 0
      %1268 = vmatprep.subr.bf16.mxu0 0
      %1269 = vmatpush1.bf16.msra.mxu0 0
      %1270 = vmatprep.subr.bf16.mxu0 0
      %1271 = vmatpush1.bf16.msra.mxu0 0
      %1272 = vmatprep.subr.bf16.mxu0 0
      %1273 = vmatpush1.bf16.msra.mxu0 0
      %1274 = vmatprep.subr.bf16.mxu0 0
      %1275 = vmatpush1.bf16.msra.mxu0 0
      %1276 = vmatprep.subr.bf16.mxu0 0
      %1277 = vmatpush1.bf16.msra.mxu0 0
      %1278 = vmatprep.subr.bf16.mxu0 0
      %1279 = vmatpush1.bf16.msra.mxu0 0
      %1280 = vmatprep.subr.bf16.mxu0 0
      %1281 = vmatpush1.bf16.msra.mxu0 0
      %1282 = vmatprep.mubr.bf16.mxu0 0
      %1283 = vmatmul.mubr.bf16.gmra.mrb[0].mxu0 %v1248
      %v1284 = vpop.f32.mrb[0].mxu0
      %v1285 = vadd.f32 %v1233, %v1284
      %v1286 = vpop.f32.mrb[0].mxu0
      %v1287 = vpop.f32.mrb[0].mxu0
      %v1288 = vadd.f32 %v1233, %v1287
      %v1289 = vpop.f32.mrb[0].mxu0
      %1290 = vdwg.mxu0
      %v1291 = vmul.f32 %v1285, 1.702
      %v1292 = vmul.f32 %v1288, 1.702
      %v1293 = vxor.u32 %v1291, 2147483648
      %v1294 = vxor.u32 %v1292, 2147483648
      %v1295 = vmul.f32 %v1293, 1.442695
      %v1296 = vpow.pop %v1295
      %v1297 = vmul.f32 %v1294, 1.442695
      %v1298 = vpow.pop %v1297
      %v1299 = vadd.f32 %v1296, 1.0
      %v1300 = vadd.f32 %v1298, 1.0
      %v1301 = vrcp.pop %v1299
      %v1302 = vmul.f32 1.0, %v1301
      %v1303 = vrcp.pop %v1300
      %v1304 = vmul.f32 1.0, %v1303
      %v1305 = vmul.f32 %v1285, %v1302
      %v1306 = vmul.f32 %v1288, %v1304
      %v1307 = vpack.c.bf16 %v1306, %v1305
      %v1308 = vld [vmem:[%s11] sm:$0xf]
      %v1309 = vld [vmem:[%s11 + $0x4] sm:$0xf]
      %v1310 = vld [vmem:[%s11 + $0x8] sm:$0xf]
      %v1311 = vld [vmem:[%s11 + $0xc] sm:$0xf]
      %v1312 = vld [vmem:[%s11 + $0x10] sm:$0xf]
      %v1313 = vld [vmem:[%s11 + $0x14] sm:$0xf]
      %v1314 = vld [vmem:[%s11 + $0x18] sm:$0xf]
      %v1315 = vld [vmem:[%s11 + $0x1c] sm:$0xf]
      %v1316 = vld [vmem:[%s11 + $0x20] sm:$0xf]
      %v1317 = vld [vmem:[%s11 + $0x24] sm:$0xf]
      %v1318 = vld [vmem:[%s11 + $0x28] sm:$0xf]
      %v1319 = vld [vmem:[%s11 + $0x2c] sm:$0xf]
      %v1320 = vld [vmem:[%s11 + $0x30] sm:$0xf]
      %v1321 = vld [vmem:[%s11 + $0x34] sm:$0xf]
      %v1322 = vld [vmem:[%s11 + $0x38] sm:$0xf]
      %v1323 = vld [vmem:[%s11 + $0x3c] sm:$0xf]
      %v1340 = vunpack.c.l.b16 %v1308
      %v1341 = vunpack.c.l.b16 %v1309
      %v1342 = vunpack.c.l.b16 %v1310
      %v1343 = vunpack.c.l.b16 %v1311
      %v1344 = vunpack.c.l.b16 %v1312
      %v1345 = vunpack.c.l.b16 %v1313
      %v1346 = vunpack.c.l.b16 %v1314
      %v1347 = vunpack.c.l.b16 %v1315
      %v1348 = vunpack.c.l.b16 %v1316
      %v1349 = vunpack.c.l.b16 %v1317
      %v1350 = vunpack.c.l.b16 %v1318
      %v1351 = vunpack.c.l.b16 %v1319
      %v1352 = vunpack.c.l.b16 %v1320
      %v1353 = vunpack.c.l.b16 %v1321
      %v1354 = vunpack.c.l.b16 %v1322
      %v1355 = vunpack.c.l.b16 %v1323
      %v1356 = vpack.c.b16 %v1341, %v1340
      %v1357 = vpack.c.b16 %v1343, %v1342
      %v1358 = vpack.c.b16 %v1345, %v1344
      %v1359 = vpack.c.b16 %v1347, %v1346
      %v1360 = vpack.c.b16 %v1349, %v1348
      %v1361 = vpack.c.b16 %v1351, %v1350
      %v1362 = vpack.c.b16 %v1353, %v1352
      %v1363 = vpack.c.b16 %v1355, %v1354
      %1372 = vmatprep.subr.bf16.mxu0 0
      %1373 = vmatpush1.bf16.msra.mxu0 %v1356
      %1374 = vmatprep.subr.bf16.mxu0 0
      %1375 = vmatpush1.bf16.msra.mxu0 %v1357
      %1376 = vmatprep.subr.bf16.mxu0 0
      %1377 = vmatpush1.bf16.msra.mxu0 %v1358
      %1378 = vmatprep.subr.bf16.mxu0 0
      %1379 = vmatpush1.bf16.msra.mxu0 %v1359
      %1380 = vmatprep.subr.bf16.mxu0 0
      %1381 = vmatpush1.bf16.msra.mxu0 %v1360
      %1382 = vmatprep.subr.bf16.mxu0 0
      %1383 = vmatpush1.bf16.msra.mxu0 %v1361
      %1384 = vmatprep.subr.bf16.mxu0 0
      %1385 = vmatpush1.bf16.msra.mxu0 %v1362
      %1386 = vmatprep.subr.bf16.mxu0 0
      %1387 = vmatpush1.bf16.msra.mxu0 %v1363
      %1388 = vmatprep.subr.bf16.mxu0 0
      %1389 = vmatpush1.bf16.msra.mxu0 0
      %1390 = vmatprep.subr.bf16.mxu0 0
      %1391 = vmatpush1.bf16.msra.mxu0 0
      %1392 = vmatprep.subr.bf16.mxu0 0
      %1393 = vmatpush1.bf16.msra.mxu0 0
      %1394 = vmatprep.subr.bf16.mxu0 0
      %1395 = vmatpush1.bf16.msra.mxu0 0
      %1396 = vmatprep.subr.bf16.mxu0 0
      %1397 = vmatpush1.bf16.msra.mxu0 0
      %1398 = vmatprep.subr.bf16.mxu0 0
      %1399 = vmatpush1.bf16.msra.mxu0 0
      %1400 = vmatprep.subr.bf16.mxu0 0
      %1401 = vmatpush1.bf16.msra.mxu0 0
      %1402 = vmatprep.subr.bf16.mxu0 0
      %1403 = vmatpush1.bf16.msra.mxu0 0
      %1404 = vmatprep.mubr.bf16.mxu0 0
      %1405 = vmatmul.mubr.bf16.gmra.mrb[0].mxu0 %v1307
      %v1406 = vpop.f32.mrb[0].mxu0
      %v1407 = vadd.f32 0.0, %v1406
      %v1408 = vpop.f32.mrb[0].mxu0
      %v1409 = vpop.f32.mrb[0].mxu0
      %v1410 = vadd.f32 0.0, %v1409
      %v1411 = vpop.f32.mrb[0].mxu0
      %1412 = vdwg.mxu0
      %v1413 = vadd.f32 %v1177, %v1407
      %v1414 = vadd.f32 %v1178, %v1410
      %v1415 = vld [vmem:[%s12] sm:$0x1]
      %v1417 = vlaneseq
      %v1418 = vshrl.u32 %v1417, 7
      %v1419 = vsub.s32 0, %v1418
      %v1420 = vrot.slane %v1415, %v1419
      %v1422 = vadd.f32 %v1413, %v1420
      %v1423 = vadd.f32 %v1414, %v1420
      %1424 = vst.msk [vmem:[%s440] sm:$0xff] %vm444, %v1422
      %1425 = vst.msk [vmem:[%s440 + $0x8] sm:$0x1] %vm448, %v1423
      %p1426 = scmp.lt.s32.totalorder %s24, 1
      %s1427 = scalar_select %p1426, %s24, 1
      %s1428 = smul.addr %s1427, 2
      %s1429 = smul.addr %s1428, 8
      %s1430 = scalar_lea.vmem %s13, %s1429
      // Predicated region
      $region73: #{fwd.17} parent=71 // pred_check
        %p1431 = pneg %p320
      $region74: #{fwd.17} parent=71 // pred_check_branch
        %1433 = sbr.rel (%p1431) target = $region76
      $region75: #{fwd.17} parent=71 // pred_region
        _
      $region76: #{fwd.17} parent=71 // pred_fallthru
        _
    $region72: #{fwd.17} parent=5 // pred_fallthru
      _
    %p1434 = scmp.le.s32.totalorder 2, %s19
    // Predicated region
    $region77: #{fwd.17} parent=5 // pred_check
      %p1435 = pneg %p1434
    $region78: #{fwd.17} parent=5 // pred_check_branch
      %1437 = sbr.rel (%p1435) target = $region80
    $region79: #{fwd.17} parent=5 // pred_region
      %s1438 = ssub.s32 %s19, 2
      // Predicated region
      $region81: #{fwd.17} parent=79 // pred_check
        %p1439 = pneg %p326
      $region82: #{fwd.17} parent=79 // pred_check_branch
        %1441 = sbr.rel (%p1439) target = $region84
      $region83: #{fwd.17} parent=79 // pred_region
        %p1442 = scmp.lt.s32.totalorder %s25, 1
        %s1443 = scalar_select %p1442, %s25, 1
        %s1444 = smul.addr %s1443, 2
        %s1445 = smul.addr %s1444, 8
        %s1446 = scalar_lea.vmem %s13, %s1445
      $region84: #{fwd.17} parent=79 // pred_fallthru
        _
    $region80: #{fwd.17} parent=5 // pred_fallthru
      _
  $region6: #{fwd.17} parent=0 // loop_footer
    %s23 = sadd.s32 1, %s19
  $region7: #{fwd.17} parent=0 // loop_footer_branch
    %18 = sbr.rel target = $region3
  $region8: #{fwd.17} parent=0 // loop_exit
    _

</llo_original>
